<compile_context>
chip_gen: v7x
topology: tpu7x:2x2x1
jax: 0.10.0
libtpu: 0.0.40
codegen_flags: <defaults>
</compile_context>

<pallas_src>
import functools

import numpy as np
import jax
import jax.numpy as jnp
from jax import lax
from jax.experimental import pallas as pl
from jax.experimental.pallas import tpu as pltpu


_LANE = 128
_ADJ_RESIDENT_BUDGET = 24 * 1024 * 1024   # VMEM bytes allowed for a resident adjacency
_ADJ_STREAM_BUDGET = 16 * 1024 * 1024     # VMEM bytes for the double-buffered adj stream
_VMEM_LIMIT_FLOOR = 16 * 1024 * 1024      # never request more than any generation's default
_VMEM_LIMIT_CAP = 56 * 1024 * 1024        # stay under v7x's 64 MiB physical VMEM


def _round_up(x, m):
    return (x + m - 1) // m * m


def _pick_tile(npad, stream_budget, itemsize):
    """Largest lane-aligned adjacency column tile that divides npad and keeps the
    double-buffered (npad, tm) streamed block inside the VMEM budget."""
    if npad <= 512:
        return npad
    for t in (1024, 512, 256, 128):
        if npad % t == 0 and 2 * npad * t * itemsize <= stream_budget:
            return t
    return _LANE


def gwt_kernel(adj_ref, xt_ref, w_ref, b_ref, alpha_ref, out_ref, dbuf_ref,
               *, tm, adj_resident):
    """One grid point = one (step s, row-tile m) full-N propagation.

    Transposed-state layout: every diffusion state lives as (F, Npad).

    adj_ref:   (Npad, tm)   streaming path: A[:, m*tm:(m+1)*tm]
               (Npad, Npad) resident path: all of A (fetched once)
    xt_ref:    (F, Npad)    seq^T, resident
    w_ref:     (6F, O)      fc weight transposed, resident
    b_ref:     (O, 1)       bias column, resident
    alpha_ref: (1, 1)       PReLU slope (SMEM)
    out_ref:   (O, Npad)    transposed output, fully resident, one final writeback
    dbuf_ref:  (4, F, Npad) VMEM scratch holding d0..d3 (d4 is never stored)
    """
    s = pl.program_id(0)
    m = pl.program_id(1)
    ns = pl.num_programs(0)

    F = xt_ref.shape[0]
    row_start = pl.multiple_of(m * tm, tm)

    # Stage seq^T as diffusion level 0 exactly once per call.
    @pl.when((s == 0) & (m == 0))
    def _():
        dbuf_ref[0, :, :] = xt_ref[...]

    if adj_resident:
        a_blk = adj_ref[:, pl.ds(row_start, tm)]        # (Npad, tm)
    else:
        a_blk = adj_ref[...]                            # (Npad, tm)

    # d_{s+1}^T[:, tile] = d_s^T @ A[:, tile]   (== (A^T d_s)^T restricted to the tile)
    state = dbuf_ref[s, :, :].astype(adj_ref.dtype)     # (F, Npad); no-op cast for f32
    d_next = lax.dot_general(
        state, a_blk,
        dimension_numbers=(((1,), (0,)), ((), ())),
        preferred_element_type=jnp.float32)             # (F, tm)

    @pl.when(s < ns - 1)
    def _():
        dbuf_ref[s + 1, :, pl.ds(row_start, tm)] = d_next

    # Final step: fused fc + bias + PReLU for this row tile, kept transposed.
    @pl.when(s == ns - 1)
    def _():
        cols = pl.ds(row_start, tm)
        d1 = dbuf_ref[1, :, cols]
        d2 = dbuf_ref[2, :, cols]
        d3 = dbuf_ref[3, :, cols]
        d4 = d_next                                    # this tile's d4, never stored
        a12 = jnp.abs(d1 - d2)                         # == |d2-d1|, shared by blocks 1&3

        def blk(i):
            return w_ref[i * F:(i + 1) * F, :]

        def wdot(wb, db):
            # contract over F: (F, O) x (F, tm) -> (O, tm)
            return lax.dot_general(wb, db,
                                   dimension_numbers=(((0,), (0,)), ((), ())),
                                   preferred_element_type=jnp.float32)

        out = wdot(blk(0), d4)
        out = out + wdot(blk(1) + blk(3), a12)
        out = out + wdot(blk(2), jnp.abs(d2 - d4))
        out = out + wdot(blk(4), jnp.abs(d3 - d2))
        out = out + wdot(blk(5), jnp.abs(d4 - d3))
        out = out + b_ref[...]                          # (O,1) broadcast over lanes
        alpha = alpha_ref[0, 0]
        out_ref[:, cols] = jnp.where(out > 0, out, alpha * out)


def graph_wavelet_transform(seq, adj, w_t, bias, alpha, J=3,
                            adj_dtype=jnp.float32,
                            adj_resident=None, tile_n=None):
    """seq: (N, in_ft) f32, adj: (N, N) dense adjacency (un-transposed),
    w_t: (6*in_ft, out_ft) fc weight transposed, bias: (out_ft,), alpha: PReLU slope."""
    seq = jnp.asarray(seq, jnp.float32)
    adj = jnp.asarray(adj, adj_dtype)
    w_t = jnp.asarray(w_t, jnp.float32)

    N, in_ft = seq.shape
    total_dim, out_ft = w_t.shape
    assert J == 3 and total_dim == 6 * in_ft, "kernel specialised for J=3"
    max_scale = 2 ** (J - 1)                      # 4 propagation steps

    itemsize = np.dtype(adj_dtype).itemsize
    npad = _round_up(N, _LANE)
    if adj_resident is None:
        adj_resident = 2 * npad * npad * itemsize <= _ADJ_RESIDENT_BUDGET
    tm = tile_n if tile_n is not None else _pick_tile(npad, _ADJ_STREAM_BUDGET, itemsize)
    assert npad % tm == 0 and (tm % _LANE == 0 or tm == npad)
    num_m = npad // tm

    pad_n = npad - N
    if pad_n:
        adj = jnp.pad(adj, ((0, pad_n), (0, pad_n)))
        seq = jnp.pad(seq, ((0, pad_n), (0, 0)))
    xt = seq.T                                    # (in_ft, npad): node axis -> lanes
    b2 = bias.reshape(out_ft, 1).astype(jnp.float32)
    a2 = alpha.reshape(1, 1).astype(jnp.float32)

    if adj_resident:
        adj_spec = pl.BlockSpec((npad, npad), lambda s, m: (0, 0))   # fetched once
        adj_vmem = 2 * npad * npad * itemsize
    else:
        adj_spec = pl.BlockSpec((npad, tm), lambda s, m: (0, m))     # streamed 4x
        adj_vmem = 2 * npad * tm * itemsize

    f_pad = _round_up(in_ft, 8)
    o_pad = _round_up(out_ft, 8)
    vmem_needed = (adj_vmem
                   + max_scale * f_pad * npad * 4        # dbuf scratch (d0..d3)
                   + 2 * f_pad * npad * 4                # resident seq^T
                   + 2 * o_pad * npad * 4                # resident transposed output
                   + 2 * _round_up(total_dim, 8) * _round_up(out_ft, _LANE) * 4)
    vmem_limit = int(min(_VMEM_LIMIT_CAP, max(_VMEM_LIMIT_FLOOR, 2 * vmem_needed)))

    adj_reads = 1 if adj_resident else max_scale
    cost = pl.CostEstimate(
        flops=int(2 * max_scale * npad * npad * in_ft + 2 * npad * total_dim * out_ft),
        transcendentals=0,
        bytes_accessed=int(adj_reads * npad * npad * itemsize + npad * in_ft * 4
                           + total_dim * out_ft * 4 + npad * out_ft * 4))

    out_t = pl.pallas_call(
        functools.partial(gwt_kernel, tm=tm, adj_resident=adj_resident),
        out_shape=jax.ShapeDtypeStruct((out_ft, npad), jnp.float32),
        grid=(max_scale, num_m),
        in_specs=[
            adj_spec,
            pl.BlockSpec((in_ft, npad), lambda s, m: (0, 0)),
            pl.BlockSpec((total_dim, out_ft), lambda s, m: (0, 0)),
            pl.BlockSpec((out_ft, 1), lambda s, m: (0, 0)),
            pl.BlockSpec(memory_space=pltpu.MemorySpace.SMEM),
        ],
        out_specs=pl.BlockSpec((out_ft, npad), lambda s, m: (0, 0)),
        scratch_shapes=[
            pltpu.VMEM((max_scale, in_ft, npad), jnp.float32),   # d0..d3 (transposed)
        ],
        compiler_params=pltpu.CompilerParams(
            dimension_semantics=("arbitrary", "arbitrary"),
            vmem_limit_bytes=vmem_limit),
        cost_estimate=cost,
    )(adj, xt, w_t, b2, a2)

    return out_t[:, :N].T


def reference(seq, adj, w_t, bias, alpha, J=3):
    """Literal pure-JAX transcription of the PyTorch forward (for checking)."""
    P = adj.T
    max_scale = 2 ** (J - 1)
    diff_list = []
    x_curr = seq
    for step in range(1, max_scale + 1):
        x_curr = P @ x_curr
        if step & (step - 1) == 0:
            diff_list.append(x_curr)
    F0 = diff_list[-1]
    F1 = jnp.concatenate(
        [jnp.abs(diff_list[i - 1] - diff_list[i]) for i in range(1, len(diff_list))], 1)
    U = jnp.concatenate(diff_list, 1)
    nf = diff_list[0].shape[1]
    U_diff = [U]
    for _ in range(1, max_scale):
        U_diff.append(P @ U_diff[-1])
    feats2 = []
    for j in range(J):
        for jp in range(j + 1, J):
            feats2.append(jnp.abs(U_diff[jp][:, j * nf:(j + 1) * nf]
                                  - U_diff[jp - 1][:, j * nf:(j + 1) * nf]))
    F2 = jnp.concatenate(feats2, 1)
    feats = jnp.concatenate([F0, F1, F2], 1)
    out = feats @ w_t + bias[None, :]
    return jnp.where(out > 0, out, alpha * out)


def _make_inputs(key, N, in_ft, out_ft, J=3):
    total_dim = in_ft * (1 + (J - 1) + J * (J - 1) // 2)
    k_x, k_a, k_m, k_w = jax.random.split(key, 4)
    seq = jax.random.normal(k_x, (N, in_ft), dtype=jnp.float32)
    weights = jax.random.uniform(k_a, (N, N), dtype=jnp.float32)
    mask = (jax.random.uniform(k_m, (N, N)) < 0.5).astype(jnp.float32)
    adj = weights * mask * (2.0 / N)          # scaled so P^4 stays O(1)
    std = 1.414 * (2.0 / (total_dim + out_ft)) ** 0.5   # xavier_normal_(gain=1.414)
    w = std * jax.random.normal(k_w, (out_ft, total_dim), dtype=jnp.float32)
    w_t = jnp.asarray(w.T)
    bias = jnp.zeros((out_ft,), dtype=jnp.float32)       # torch.zeros(out_ft)
    alpha = jnp.array(0.25, dtype=jnp.float32)           # nn.PReLU() default
    return seq, adj, w_t, bias, alpha


if __name__ == "__main__":
    jax.config.update("jax_default_matmul_precision", "highest")

    # Small graph: N=16 is not a multiple of 128 -> exercises padding; resident adjacency.
    seq, adj, w_t, bias, alpha = _make_inputs(jax.random.PRNGKey(0),
                                              N=16, in_ft=8, out_ft=16)
    out = jax.block_until_ready(graph_wavelet_transform(seq, adj, w_t, bias, alpha))
    ref = reference(seq, adj, w_t, bias, alpha)
    assert out.shape == (16, 16)
    assert jnp.allclose(out, ref, rtol=1e-4, atol=1e-4), "mismatch vs reference (N=16)"

    # Medium graph: resident adjacency, single row tile.
    seq2, adj2, w_t2, bias2, alpha2 = _make_inputs(jax.random.PRNGKey(1),
                                                   N=384, in_ft=8, out_ft=16)
    out2 = jax.block_until_ready(
        graph_wavelet_transform(seq2, adj2, w_t2, bias2, alpha2))
    ref2 = reference(seq2, adj2, w_t2, bias2, alpha2)
    assert out2.shape == (384, 16)
    assert jnp.allclose(out2, ref2, rtol=1e-4, atol=1e-4), "mismatch vs reference (N=384)"

    # Same graph forced down the streamed, multi-row-tile path (the large-graph path).
    out3 = jax.block_until_ready(
        graph_wavelet_transform(seq2, adj2, w_t2, bias2, alpha2,
                                adj_resident=False, tile_n=128))
    assert jnp.allclose(out3, ref2, rtol=1e-4, atol=1e-4), "mismatch (streamed path)"

    print("KERNEL_OK")
</pallas_src>

<mosaic_0001>
module attributes {stable_mosaic.version = 11 : i64} {
  func.func @gwt_kernel(%arg0: i32, %arg1: i32, %arg2: memref<128x128xf32, #tpu.memory_space<vmem>>, %arg3: memref<8x128xf32, #tpu.memory_space<vmem>>, %arg4: memref<48x16xf32, #tpu.memory_space<vmem>>, %arg5: memref<16x1xf32, #tpu.memory_space<vmem>>, %arg6: memref<1x1xf32, #tpu.memory_space<smem>>, %arg7: memref<16x128xf32, #tpu.memory_space<vmem>>, %arg8: memref<4x8x128xf32, #tpu.memory_space<vmem>>) attributes {dimension_semantics = [#tpu.dimension_semantics<arbitrary>, #tpu.dimension_semantics<arbitrary>], iteration_bounds = array<i64: 4, 1>, scalar_prefetch = 0 : i64, scratch_operands = 1 : i64, tpu.core_type = #tpu.core_type<tc>, window_params = [{pipeline_mode = #tpu.pipeline_mode<synchronous>, transform_indices = @transform_0, window_bounds = array<i64: 128, 128>}, {pipeline_mode = #tpu.pipeline_mode<synchronous>, transform_indices = @transform_1, window_bounds = array<i64: 8, 128>}, {pipeline_mode = #tpu.pipeline_mode<synchronous>, transform_indices = @transform_2, window_bounds = array<i64: 48, 16>}, {pipeline_mode = #tpu.pipeline_mode<synchronous>, transform_indices = @transform_3, window_bounds = array<i64: 16, 1>}, {transform_indices = @transform_4, window_bounds = array<i64: 1, 1>}, {pipeline_mode = #tpu.pipeline_mode<synchronous>, transform_indices = @transform_5, window_bounds = array<i64: 16, 128>}]} {
    %c128_i32 = arith.constant 128 : i32
    %0 = arith.muli %arg1, %c128_i32 : i32
    %1 = tpu.assume_multiple %0, 128 : i32
    %c0_i32 = arith.constant 0 : i32
    %2 = arith.cmpi eq, %arg0, %c0_i32 : i32
    %c0_i32_0 = arith.constant 0 : i32
    %3 = arith.cmpi eq, %arg1, %c0_i32_0 : i32
    %4 = arith.andi %2, %3 : i1
    %5 = arith.extui %4 : i1 to i32
    %c0_i32_1 = arith.constant 0 : i32
    %6 = arith.cmpi ne, %5, %c0_i32_1 : i32
    scf.if %6 {
      %c0_7 = arith.constant 0 : index
      %c0_8 = arith.constant 0 : index
      %19 = vector.load %arg3[%c0_7, %c0_8] : memref<8x128xf32, #tpu.memory_space<vmem>>, vector<8x128xf32>
      %c0_9 = arith.constant 0 : index
      %c0_10 = arith.constant 0 : index
      %c0_11 = arith.constant 0 : index
      %20 = vector.load %arg8[%c0_9, %c0_10, %c0_11] : memref<4x8x128xf32, #tpu.memory_space<vmem>>, vector<1x8x128xf32>
      %21 = vector.shape_cast %20 : vector<1x8x128xf32> to vector<8x128xf32>
      %22 = vector.shape_cast %19 : vector<8x128xf32> to vector<1x8x128xf32>
      tpu.vector_store %arg8[%c0_9, %c0_10, %c0_11], %22 {strides = array<i32>} : memref<4x8x128xf32, #tpu.memory_space<vmem>>, vector<1x8x128xf32>,
    } else {
    }
    %c0 = arith.constant 0 : index
    %7 = arith.index_cast %1 : i32 to index
    %8 = vector.load %arg2[%c0, %7] : memref<128x128xf32, #tpu.memory_space<vmem>>, vector<128x128xf32>
    %9 = arith.index_cast %arg0 : i32 to index
    %c0_2 = arith.constant 0 : index
    %c0_3 = arith.constant 0 : index
    %10 = vector.load %arg8[%9, %c0_2, %c0_3] : memref<4x8x128xf32, #tpu.memory_space<vmem>>, vector<1x8x128xf32>
    %11 = vector.shape_cast %10 : vector<1x8x128xf32> to vector<8x128xf32>
    %cst = arith.constant dense<0.000000e+00> : vector<8x128xf32>
    %12 = tpu.matmul %11, %8, %cst {dimension_numbers = #tpu.dot_dimension_numbers<[1], [0], [0], [1], [0, 0, 1, 1], [], []>, precision = #tpu.contract_precision<fp32>} : vector<8x128xf32>, vector<128x128xf32>, vector<8x128xf32> -> vector<8x128xf32>
    %c3_i32 = arith.constant 3 : i32
    %13 = arith.cmpi slt, %arg0, %c3_i32 : i32
    %14 = arith.extui %13 : i1 to i32
    %c0_i32_4 = arith.constant 0 : i32
    %15 = arith.cmpi ne, %14, %c0_i32_4 : i32
    scf.if %15 {
      %c1_i32 = arith.constant 1 : i32
      %19 = arith.addi %arg0, %c1_i32 : i32
      %20 = arith.index_cast %19 : i32 to index
      %c0_7 = arith.constant 0 : index
      %21 = arith.index_cast %1 : i32 to index
      %22 = vector.load %arg8[%20, %c0_7, %21] : memref<4x8x128xf32, #tpu.memory_space<vmem>>, vector<1x8x128xf32>
      %23 = vector.shape_cast %22 : vector<1x8x128xf32> to vector<8x128xf32>
      %24 = vector.shape_cast %12 : vector<8x128xf32> to vector<1x8x128xf32>
      tpu.vector_store %arg8[%20, %c0_7, %21], %24 {strides = array<i32>} : memref<4x8x128xf32, #tpu.memory_space<vmem>>, vector<1x8x128xf32>,
    } else {
    }
    %c3_i32_5 = arith.constant 3 : i32
    %16 = arith.cmpi eq, %arg0, %c3_i32_5 : i32
    %17 = arith.extui %16 : i1 to i32
    %c0_i32_6 = arith.constant 0 : i32
    %18 = arith.cmpi ne, %17, %c0_i32_6 : i32
    scf.if %18 {
      %c1 = arith.constant 1 : index
      %c0_7 = arith.constant 0 : index
      %19 = arith.index_cast %1 : i32 to index
      %20 = vector.load %arg8[%c1, %c0_7, %19] : memref<4x8x128xf32, #tpu.memory_space<vmem>>, vector<1x8x128xf32>
      %21 = vector.shape_cast %20 : vector<1x8x128xf32> to vector<8x128xf32>
      %c2 = arith.constant 2 : index
      %c0_8 = arith.constant 0 : index
      %22 = arith.index_cast %1 : i32 to index
      %23 = vector.load %arg8[%c2, %c0_8, %22] : memref<4x8x128xf32, #tpu.memory_space<vmem>>, vector<1x8x128xf32>
      %24 = vector.shape_cast %23 : vector<1x8x128xf32> to vector<8x128xf32>
      %c3 = arith.constant 3 : index
      %c0_9 = arith.constant 0 : index
      %25 = arith.index_cast %1 : i32 to index
      %26 = vector.load %arg8[%c3, %c0_9, %25] : memref<4x8x128xf32, #tpu.memory_space<vmem>>, vector<1x8x128xf32>
      %27 = vector.shape_cast %26 : vector<1x8x128xf32> to vector<8x128xf32>
      %28 = arith.subf %21, %24 : vector<8x128xf32>
      %29 = math.absf %28 : vector<8x128xf32>
      %c0_10 = arith.constant 0 : index
      %c0_11 = arith.constant 0 : index
      %30 = vector.load %arg4[%c0_10, %c0_11] : memref<48x16xf32, #tpu.memory_space<vmem>>, vector<8x16xf32>
      %cst_12 = arith.constant dense<0.000000e+00> : vector<16x128xf32>
      %31 = tpu.matmul %30, %12, %cst_12 {dimension_numbers = #tpu.dot_dimension_numbers<[0], [0], [1], [1], [0, 1, 1, 1], [], []>, precision = #tpu.contract_precision<fp32>} : vector<8x16xf32>, vector<8x128xf32>, vector<16x128xf32> -> vector<16x128xf32>
      %c8 = arith.constant 8 : index
      %c0_13 = arith.constant 0 : index
      %32 = vector.load %arg4[%c8, %c0_13] : memref<48x16xf32, #tpu.memory_space<vmem>>, vector<8x16xf32>
      %c24 = arith.constant 24 : index
      %c0_14 = arith.constant 0 : index
      %33 = vector.load %arg4[%c24, %c0_14] : memref<48x16xf32, #tpu.memory_space<vmem>>, vector<8x16xf32>
      %34 = arith.addf %32, %33 : vector<8x16xf32>
      %cst_15 = arith.constant dense<0.000000e+00> : vector<16x128xf32>
      %35 = tpu.matmul %34, %29, %cst_15 {dimension_numbers = #tpu.dot_dimension_numbers<[0], [0], [1], [1], [0, 1, 1, 1], [], []>, precision = #tpu.contract_precision<fp32>} : vector<8x16xf32>, vector<8x128xf32>, vector<16x128xf32> -> vector<16x128xf32>
      %36 = arith.addf %31, %35 : vector<16x128xf32>
      %c16 = arith.constant 16 : index
      %c0_16 = arith.constant 0 : index
      %37 = vector.load %arg4[%c16, %c0_16] : memref<48x16xf32, #tpu.memory_space<vmem>>, vector<8x16xf32>
      %38 = arith.subf %24, %12 : vector<8x128xf32>
      %39 = math.absf %38 : vector<8x128xf32>
      %cst_17 = arith.constant dense<0.000000e+00> : vector<16x128xf32>
      %40 = tpu.matmul %37, %39, %cst_17 {dimension_numbers = #tpu.dot_dimension_numbers<[0], [0], [1], [1], [0, 1, 1, 1], [], []>, precision = #tpu.contract_precision<fp32>} : vector<8x16xf32>, vector<8x128xf32>, vector<16x128xf32> -> vector<16x128xf32>
      %41 = arith.addf %36, %40 : vector<16x128xf32>
      %c32 = arith.constant 32 : index
      %c0_18 = arith.constant 0 : index
      %42 = vector.load %arg4[%c32, %c0_18] : memref<48x16xf32, #tpu.memory_space<vmem>>, vector<8x16xf32>
      %43 = arith.subf %27, %24 : vector<8x128xf32>
      %44 = math.absf %43 : vector<8x128xf32>
      %cst_19 = arith.constant dense<0.000000e+00> : vector<16x128xf32>
      %45 = tpu.matmul %42, %44, %cst_19 {dimension_numbers = #tpu.dot_dimension_numbers<[0], [0], [1], [1], [0, 1, 1, 1], [], []>, precision = #tpu.contract_precision<fp32>} : vector<8x16xf32>, vector<8x128xf32>, vector<16x128xf32> -> vector<16x128xf32>
      %46 = arith.addf %41, %45 : vector<16x128xf32>
      %c40 = arith.constant 40 : index
      %c0_20 = arith.constant 0 : index
      %47 = vector.load %arg4[%c40, %c0_20] : memref<48x16xf32, #tpu.memory_space<vmem>>, vector<8x16xf32>
      %48 = arith.subf %12, %27 : vector<8x128xf32>
      %49 = math.absf %48 : vector<8x128xf32>
      %cst_21 = arith.constant dense<0.000000e+00> : vector<16x128xf32>
      %50 = tpu.matmul %47, %49, %cst_21 {dimension_numbers = #tpu.dot_dimension_numbers<[0], [0], [1], [1], [0, 1, 1, 1], [], []>, precision = #tpu.contract_precision<fp32>} : vector<8x16xf32>, vector<8x128xf32>, vector<16x128xf32> -> vector<16x128xf32>
      %51 = arith.addf %46, %50 : vector<16x128xf32>
      %c0_22 = arith.constant 0 : index
      %c0_23 = arith.constant 0 : index
      %52 = vector.load %arg5[%c0_22, %c0_23] : memref<16x1xf32, #tpu.memory_space<vmem>>, vector<16x1xf32>
      %53 = vector.broadcast %52 : vector<16x1xf32> to vector<16x128xf32>
      %54 = arith.addf %51, %53 : vector<16x128xf32>
      %c0_24 = arith.constant 0 : index
      %c0_25 = arith.constant 0 : index
      %55 = memref.load %arg6[%c0_24, %c0_25] : memref<1x1xf32, #tpu.memory_space<smem>>
      %cst_26 = arith.constant 0.000000e+00 : f32
      %56 = vector.broadcast %cst_26 : f32 to vector<16x128xf32>
      %57 = arith.cmpf ogt, %54, %56 : vector<16x128xf32>
      %58 = vector.broadcast %55 : f32 to vector<16x128xf32>
      %59 = arith.mulf %58, %54 : vector<16x128xf32>
      %60 = arith.select %57, %54, %59 : vector<16x128xi1>, vector<16x128xf32>
      %c0_27 = arith.constant 0 : index
      %61 = arith.index_cast %1 : i32 to index
      %62 = vector.load %arg7[%c0_27, %61] : memref<16x128xf32, #tpu.memory_space<vmem>>, vector<16x128xf32>
      tpu.vector_store %arg7[%c0_27, %61], %60 {strides = array<i32>} : memref<16x128xf32, #tpu.memory_space<vmem>>, vector<16x128xf32>,
    } else {
    }
    return
  }
  func.func @transform_0(%arg0: i32, %arg1: i32) -> (i32, i32) {
    %c0_i32 = arith.constant 0 : i32
    %c0_i32_0 = arith.constant 0 : i32
    %c0_i32_1 = arith.constant 0 : i32
    return %c0_i32, %c0_i32_0 : i32, i32
  }
  func.func @transform_1(%arg0: i32, %arg1: i32) -> (i32, i32) {
    %c0_i32 = arith.constant 0 : i32
    %c0_i32_0 = arith.constant 0 : i32
    %c0_i32_1 = arith.constant 0 : i32
    return %c0_i32, %c0_i32_0 : i32, i32
  }
  func.func @transform_2(%arg0: i32, %arg1: i32) -> (i32, i32) {
    %c0_i32 = arith.constant 0 : i32
    %c0_i32_0 = arith.constant 0 : i32
    %c0_i32_1 = arith.constant 0 : i32
    return %c0_i32, %c0_i32_0 : i32, i32
  }
  func.func @transform_3(%arg0: i32, %arg1: i32) -> (i32, i32) {
    %c0_i32 = arith.constant 0 : i32
    %c0_i32_0 = arith.constant 0 : i32
    %c0_i32_1 = arith.constant 0 : i32
    return %c0_i32, %c0_i32_0 : i32, i32
  }
  func.func @transform_4(%arg0: i32, %arg1: i32) -> (i32, i32) {
    %c0_i32 = arith.constant 0 : i32
    %c0_i32_0 = arith.constant 0 : i32
    %c0_i32_1 = arith.constant 0 : i32
    return %c0_i32, %c0_i32_0 : i32, i32
  }
  func.func @transform_5(%arg0: i32, %arg1: i32) -> (i32, i32) {
    %c0_i32 = arith.constant 0 : i32
    %c0_i32_0 = arith.constant 0 : i32
    %c0_i32_1 = arith.constant 0 : i32
    return %c0_i32, %c0_i32_0 : i32, i32
  }
}

</mosaic_0001>

<llo_original>
// kernel: tpu_custom_call.1
$region0: #{tpu_custom_call.1}
  #allocation0 [shape = 'u32[]', space=smem, size = 0x4, offset = 0x4, fixed_abs, tag = 'smem constant byte address 0x4 - core index']
  #allocation1 [shape = 'u32[144,128]{1,0:T(1,128)}', space=vmem, size = 0x12000, scoped, tag = 'internal scratch']
  #allocation2 [shape = 'f32[4,8,128]{2,1,0:T(8,128)}', space=vmem, size = 0x4000, scoped, tag = 'scratch operand']
  #allocation3 [shape = 'f32[1,1]{1,0:T(1,128)S(6)}', space=smem, size = 0x200, scoped, tag = 'scoped memory for tpu_custom_call.1']
  %s0 = inlined_call_operand.hbm [shape: f32[128,128], index: 0, kind: input, shape index: {}]
  %s1 = inlined_call_operand.vmem [shape: f32[8,128], index: 1, kind: input, shape index: {}]
  %s2 = inlined_call_operand.vmem [shape: f32[48,16], index: 2, kind: input, shape index: {}]
  %s3 = inlined_call_operand.vmem [shape: f32[16,1], index: 3, kind: input, shape index: {}]
  %s4 = inlined_call_operand.<no memory space> [shape: f32[1,1], index: 4, kind: input, shape index: {}]
  %s5 = inlined_call_operand.hbm [shape: f32[16,128], index: 5, kind: output, shape index: {}]
  %s6 = sld [smem:[#allocation0]]
  $region69: #{tpu_custom_call.1} parent=0
    _
  %s8 = ssub.s32 1, %s6
  %s9 = scalar_select 0, %s8, %s6
  %10 = sst [smem:[#allocation3]] %s4
  $region1: #{tpu_custom_call.1} parent=0
    #allocation4 [shape = 'u8[65536]{0}', space=vmem, size = 0x10000, scoped, tag = 'input window, operand 0, single buffered']
    #allocation5 [shape = 's32[2]{0}', space=sflag, size = 0x8, scoped, tag = 'scoped memory for tpu_custom_call.1']
    #allocation6 [shape = 's32[2]{0}', space=sflag, size = 0x8, scoped, tag = 'scoped memory for tpu_custom_call.1']
    #allocation7 [shape = 'u8[8192]{0}', space=vmem, size = 0x2000, scoped, tag = 'output window, operand 0, single buffered']
    %11 = vsyncpa [#allocation5], 0
    %12 = vsyncpa [#allocation6], 0
    loop: start=0, step=1, limit=6
    $region2: #{tpu_custom_call.1} parent=1 // loop_pre_header
      _
    $region3: #{tpu_custom_call.1} parent=1 // loop_header
      %s14 = sphi 0, %s18
      %p15 = scmp.ge.s32.totalorder %s14, 6
      %s21 = sphi 0, %s33
      %s22 = sphi 0, %s29
      %s23 = sphi 0, %s21
      %s24 = sphi 0, %s22
      %s25 = sphi 0, %s23
      %s26 = sphi 0, %s24
      %s34 = sphi 0, %s34
      %s36 = sphi 0, %s34
      %s37 = sphi 0, %s36
      %s51 = sphi 0, %s37
      %s55 = sphi 0, %s55
      %s57 = sphi 0, %s55
      %s58 = sphi 0, %s57
      %s72 = sphi 0, %s58
      %s76 = sphi 0, %s76
      %s78 = sphi 0, %s76
      %s79 = sphi 0, %s78
      %s93 = sphi 0, %s79
      %s97 = sphi 0, %s97
      %s99 = sphi 0, %s97
      %s100 = sphi 0, %s99
      %s114 = sphi 0, %s100
      %s118 = sphi 0, %s118
      %s120 = sphi 0, %s118
      %s121 = sphi 0, %s120
      %s135 = sphi 0, %s121
      %s139 = sphi 0, %s139
      %s141 = sphi 0, %s139
      %s142 = sphi 0, %s141
      %s156 = sphi 0, %s142
    $region4: #{tpu_custom_call.1} parent=1 // loop_header_branch
      %17 = sbr.rel (%p15) target = $region8
    $region5: #{tpu_custom_call.1} parent=1 // loop_body
      %s19 = ssub.s32 %s14, 1
      %s20 = ssub.s32 %s14, 2
      %s27 = sadd.s32 1, %s22
      %p28 = scmp.ge.s32.totalorder %s27, 1
      %s29 = scalar_select %p28, 0, %s27
      %s30 = sadd.s32 1, %s21
      %s31 = scalar_select %p28, %s30, %s21
      %p32 = scmp.ge.s32.totalorder %s31, 4
      %s33 = scalar_select %p32, 0, %s31
      %s35 = sadd.s32 %s34, 1
      %p38 = scmp.eq.s32.totalorder %s14, 3
      %p39 = scmp.ne.s32.totalorder %s34, %s36
      %p40 = scmp.eq.s32.totalorder %s14, 0
      %p41 = por %p39, %p40
      %p42 = scmp.ne.s32.totalorder %s34, %s36
      %p43 = scmp.eq.s32.totalorder %s19, 3
      %p44 = por %p42, %p43
      %p45 = scmp.ne.s32.totalorder %s36, %s37
      %p46 = scmp.eq.s32.totalorder %s19, 0
      %p47 = por %p45, %p46
      %p48 = scmp.ne.s32.totalorder %s36, %s37
      %p49 = scmp.eq.s32.totalorder %s20, 3
      %p50 = por %p48, %p49
      %p52 = scmp.ne.s32.totalorder %s37, %s51
      %p53 = scmp.eq.s32.totalorder %s20, 0
      %p54 = por %p52, %p53
      %s56 = sadd.s32 %s55, 1
      %p59 = scmp.eq.s32.totalorder %s14, 3
      %p60 = scmp.ne.s32.totalorder %s55, %s57
      %p61 = scmp.eq.s32.totalorder %s14, 0
      %p62 = por %p60, %p61
      %p63 = scmp.ne.s32.totalorder %s55, %s57
      %p64 = scmp.eq.s32.totalorder %s19, 3
      %p65 = por %p63, %p64
      %p66 = scmp.ne.s32.totalorder %s57, %s58
      %p67 = scmp.eq.s32.totalorder %s19, 0
      %p68 = por %p66, %p67
      %p69 = scmp.ne.s32.totalorder %s57, %s58
      %p70 = scmp.eq.s32.totalorder %s20, 3
      %p71 = por %p69, %p70
      %p73 = scmp.ne.s32.totalorder %s58, %s72
      %p74 = scmp.eq.s32.totalorder %s20, 0
      %p75 = por %p73, %p74
      %s77 = sadd.s32 %s76, 1
      %p80 = scmp.eq.s32.totalorder %s14, 3
      %p81 = scmp.ne.s32.totalorder %s76, %s78
      %p82 = scmp.eq.s32.totalorder %s14, 0
      %p83 = por %p81, %p82
      %p84 = scmp.ne.s32.totalorder %s76, %s78
      %p85 = scmp.eq.s32.totalorder %s19, 3
      %p86 = por %p84, %p85
      %p87 = scmp.ne.s32.totalorder %s78, %s79
      %p88 = scmp.eq.s32.totalorder %s19, 0
      %p89 = por %p87, %p88
      %p90 = scmp.ne.s32.totalorder %s78, %s79
      %p91 = scmp.eq.s32.totalorder %s20, 3
      %p92 = por %p90, %p91
      %p94 = scmp.ne.s32.totalorder %s79, %s93
      %p95 = scmp.eq.s32.totalorder %s20, 0
      %p96 = por %p94, %p95
      %s98 = sadd.s32 %s97, 1
      %p101 = scmp.eq.s32.totalorder %s14, 3
      %p102 = scmp.ne.s32.totalorder %s97, %s99
      %p103 = scmp.eq.s32.totalorder %s14, 0
      %p104 = por %p102, %p103
      %p105 = scmp.ne.s32.totalorder %s97, %s99
      %p106 = scmp.eq.s32.totalorder %s19, 3
      %p107 = por %p105, %p106
      %p108 = scmp.ne.s32.totalorder %s99, %s100
      %p109 = scmp.eq.s32.totalorder %s19, 0
      %p110 = por %p108, %p109
      %p111 = scmp.ne.s32.totalorder %s99, %s100
      %p112 = scmp.eq.s32.totalorder %s20, 3
      %p113 = por %p111, %p112
      %p115 = scmp.ne.s32.totalorder %s100, %s114
      %p116 = scmp.eq.s32.totalorder %s20, 0
      %p117 = por %p115, %p116
      %s119 = sadd.s32 %s118, 1
      %p122 = scmp.eq.s32.totalorder %s14, 3
      %p123 = scmp.ne.s32.totalorder %s118, %s120
      %p124 = scmp.eq.s32.totalorder %s14, 0
      %p125 = por %p123, %p124
      %p126 = scmp.ne.s32.totalorder %s118, %s120
      %p127 = scmp.eq.s32.totalorder %s19, 3
      %p128 = por %p126, %p127
      %p129 = scmp.ne.s32.totalorder %s120, %s121
      %p130 = scmp.eq.s32.totalorder %s19, 0
      %p131 = por %p129, %p130
      %p132 = scmp.ne.s32.totalorder %s120, %s121
      %p133 = scmp.eq.s32.totalorder %s20, 3
      %p134 = por %p132, %p133
      %p136 = scmp.ne.s32.totalorder %s121, %s135
      %p137 = scmp.eq.s32.totalorder %s20, 0
      %p138 = por %p136, %p137
      %s140 = sadd.s32 %s139, 1
      %p143 = scmp.eq.s32.totalorder %s14, 3
      %p144 = scmp.ne.s32.totalorder %s139, %s141
      %p145 = scmp.eq.s32.totalorder %s14, 0
      %p146 = por %p144, %p145
      %p147 = scmp.ne.s32.totalorder %s139, %s141
      %p148 = scmp.eq.s32.totalorder %s19, 3
      %p149 = por %p147, %p148
      %p150 = scmp.ne.s32.totalorder %s141, %s142
      %p151 = scmp.eq.s32.totalorder %s19, 0
      %p152 = por %p150, %p151
      %p153 = scmp.ne.s32.totalorder %s141, %s142
      %p154 = scmp.eq.s32.totalorder %s20, 3
      %p155 = por %p153, %p154
      %p157 = scmp.ne.s32.totalorder %s142, %s156
      %p158 = scmp.eq.s32.totalorder %s20, 0
      %p159 = por %p157, %p158
      %p160 = scmp.le.s32.totalorder 1, %s14
      %p161 = scmp.lt.s32.totalorder %s14, 5
      %p162 = pnand %p160, %p161
      %p163 = pneg %p162
      // Predicated region
      $region9: #{tpu_custom_call.1} parent=5 // pred_check
        _
      $region10: #{tpu_custom_call.1} parent=5 // pred_check_branch
        %165 = sbr.rel (%p162) target = $region12
      $region11: #{tpu_custom_call.1} parent=5 // pred_region
        %s166 = ssub.s32 %s14, 1
        // Predicated region
        $region13: #{tpu_custom_call.1} parent=11 // pred_check
          %p167 = pneg %p47
        $region14: #{tpu_custom_call.1} parent=11 // pred_check_branch
          %169 = sbr.rel (%p167) target = $region16
        $region15: #{tpu_custom_call.1} parent=11 // pred_region
          %s171 = ssub.s32 2048, 2048
          %172 = vsyncadd [#allocation5], %s171
          %s173 = sshll.u32 [#allocation4], 4
          %s174 = int_to_ptr.vmem [resolvable:$true] %s173
          %179 = dma.hbm_to_vmem [thread:$0]  %s0, 2048, %s174, [#allocation5], 128, 128, 8
        $region16: #{tpu_custom_call.1} parent=11 // pred_fallthru
          _
        // Predicated region
        $region17: #{tpu_custom_call.1} parent=11 // pred_check
          %p180 = pneg %p68
        $region18: #{tpu_custom_call.1} parent=11 // pred_check_branch
          %182 = sbr.rel (%p180) target = $region20
        $region19: #{tpu_custom_call.1} parent=11 // pred_region
          _
        $region20: #{tpu_custom_call.1} parent=11 // pred_fallthru
          _
        // Predicated region
        $region21: #{tpu_custom_call.1} parent=11 // pred_check
          %p183 = pneg %p89
        $region22: #{tpu_custom_call.1} parent=11 // pred_check_branch
          %185 = sbr.rel (%p183) target = $region24
        $region23: #{tpu_custom_call.1} parent=11 // pred_region
          _
        $region24: #{tpu_custom_call.1} parent=11 // pred_fallthru
          _
        // Predicated region
        $region25: #{tpu_custom_call.1} parent=11 // pred_check
          %p186 = pneg %p110
        $region26: #{tpu_custom_call.1} parent=11 // pred_check_branch
          %188 = sbr.rel (%p186) target = $region28
        $region27: #{tpu_custom_call.1} parent=11 // pred_region
          _
        $region28: #{tpu_custom_call.1} parent=11 // pred_fallthru
          _
        // Predicated region
        $region29: #{tpu_custom_call.1} parent=11 // pred_check
          %p189 = pneg %p131
        $region30: #{tpu_custom_call.1} parent=11 // pred_check_branch
          %191 = sbr.rel (%p189) target = $region32
        $region31: #{tpu_custom_call.1} parent=11 // pred_region
          _
        $region32: #{tpu_custom_call.1} parent=11 // pred_fallthru
          _
      $region12: #{tpu_custom_call.1} parent=5 // pred_fallthru
        _
      %p192 = scmp.lt.s32.totalorder %s14, 4
      // Predicated region
      $region33: #{tpu_custom_call.1} parent=5 // pred_check
        %p193 = pneg %p192
      $region34: #{tpu_custom_call.1} parent=5 // pred_check_branch
        %195 = sbr.rel (%p193) target = $region36
      $region35: #{tpu_custom_call.1} parent=5 // pred_region
        _
      $region36: #{tpu_custom_call.1} parent=5 // pred_fallthru
        _
      %p196 = scmp.le.s32.totalorder 1, %s14
      %p197 = scmp.lt.s32.totalorder %s14, 5
      %p198 = pnand %p196, %p197
      %p199 = pneg %p198
      // Predicated region
      $region37: #{tpu_custom_call.1} parent=5 // pred_check
        _
      $region38: #{tpu_custom_call.1} parent=5 // pred_check_branch
        %201 = sbr.rel (%p198) target = $region40
      $region39: #{tpu_custom_call.1} parent=5 // pred_region
        %s202 = ssub.s32 %s14, 1
        // Predicated region
        $region41: #{tpu_custom_call.1} parent=39 // pred_check
          %p203 = pneg %p47
        $region42: #{tpu_custom_call.1} parent=39 // pred_check_branch
          %205 = sbr.rel (%p203) target = $region44
        $region43: #{tpu_custom_call.1} parent=39 // pred_region
          %206 = dma.done [#allocation5], 2048
        $region44: #{tpu_custom_call.1} parent=39 // pred_fallthru
          _
        %p207 = pneg %p47
        %p208 = pneg %p44
        %p209 = pneg %p68
        %p210 = pneg %p65
        %p211 = pneg %p89
        %p212 = pneg %p86
        %p213 = pneg %p110
        %p214 = pneg %p107
        %p215 = pneg %p131
        %p216 = pneg %p128
        %p217 = pneg %p152
        %p218 = pneg %p149
        %s219 = smul.u32 %s24, 128
        %p220 = scmp.eq.s32.totalorder %s23, 0
        %p221 = scmp.eq.s32.totalorder %s24, 0
        %p222 = pnand %p220, %p221
        %p223 = pneg %p222
        // Predicated region
        $region45: #{tpu_custom_call.1} parent=39 // pred_check
          _
        $region46: #{tpu_custom_call.1} parent=39 // pred_check_branch
          %225 = sbr.rel (%p222) target = $region48
        $region47: #{tpu_custom_call.1} parent=39 // pred_region
          %v226 = vld [vmem:[%s1] sm:$0xff]
          %227 = vst [vmem:[#allocation2] sm:$0xff] %v226
        $region48: #{tpu_custom_call.1} parent=39 // pred_fallthru
          _
        %s228 = sshra.s32 %s219, 7
        %s229 = sand.u32 %s219, 127
        %s230 = scalar_lea.vmem [#allocation4], %s228
        %v231 = vld [vmem:[%s230] sm:$0xff]
        %v232 = vld [vmem:[%s230 + $0x8] sm:$0xff]
        %v233 = vld [vmem:[%s230 + $0x10] sm:$0xff]
        %v234 = vld [vmem:[%s230 + $0x18] sm:$0xff]
        %v235 = vld [vmem:[%s230 + $0x20] sm:$0xff]
        %v236 = vld [vmem:[%s230 + $0x28] sm:$0xff]
        %v237 = vld [vmem:[%s230 + $0x30] sm:$0xff]
        %v238 = vld [vmem:[%s230 + $0x38] sm:$0xff]
        %v239 = vld [vmem:[%s230 + $0x40] sm:$0xff]
        %v240 = vld [vmem:[%s230 + $0x48] sm:$0xff]
        %v241 = vld [vmem:[%s230 + $0x50] sm:$0xff]
        %v242 = vld [vmem:[%s230 + $0x58] sm:$0xff]
        %v243 = vld [vmem:[%s230 + $0x60] sm:$0xff]
        %v244 = vld [vmem:[%s230 + $0x68] sm:$0xff]
        %v245 = vld [vmem:[%s230 + $0x70] sm:$0xff]
        %v246 = vld [vmem:[%s230 + $0x78] sm:$0xff]
        %s247 = smul.u32 %s23, 8
        %s248 = scalar_lea.vmem [#allocation2], %s247
        %v249 = vld [vmem:[%s248] sm:$0xff]
        %250 = vmatprep.subr.mxu0 0.0
        %v251 = vand.u32 %v231, 4294901760
        %252 = vmatpush1.msra.mxu0 %v251
        %253 = vmatprep.subr.mxu0 0.0
        %v254 = vand.u32 %v232, 4294901760
        %255 = vmatpush1.msra.mxu0 %v254
        %256 = vmatprep.subr.mxu0 0.0
        %v257 = vand.u32 %v233, 4294901760
        %258 = vmatpush1.msra.mxu0 %v257
        %259 = vmatprep.subr.mxu0 0.0
        %v260 = vand.u32 %v234, 4294901760
        %261 = vmatpush1.msra.mxu0 %v260
        %262 = vmatprep.subr.mxu0 0.0
        %v263 = vand.u32 %v235, 4294901760
        %264 = vmatpush1.msra.mxu0 %v263
        %265 = vmatprep.subr.mxu0 0.0
        %v266 = vand.u32 %v236, 4294901760
        %267 = vmatpush1.msra.mxu0 %v266
        %268 = vmatprep.subr.mxu0 0.0
        %v269 = vand.u32 %v237, 4294901760
        %270 = vmatpush1.msra.mxu0 %v269
        %271 = vmatprep.subr.mxu0 0.0
        %v272 = vand.u32 %v238, 4294901760
        %273 = vmatpush1.msra.mxu0 %v272
        %274 = vmatprep.subr.mxu0 0.0
        %v275 = vand.u32 %v239, 4294901760
        %276 = vmatpush1.msra.mxu0 %v275
        %277 = vmatprep.subr.mxu0 0.0
        %v278 = vand.u32 %v240, 4294901760
        %279 = vmatpush1.msra.mxu0 %v278
        %280 = vmatprep.subr.mxu0 0.0
        %v281 = vand.u32 %v241, 4294901760
        %282 = vmatpush1.msra.mxu0 %v281
        %283 = vmatprep.subr.mxu0 0.0
        %v284 = vand.u32 %v242, 4294901760
        %285 = vmatpush1.msra.mxu0 %v284
        %286 = vmatprep.subr.mxu0 0.0
        %v287 = vand.u32 %v243, 4294901760
        %288 = vmatpush1.msra.mxu0 %v287
        %289 = vmatprep.subr.mxu0 0.0
        %v290 = vand.u32 %v244, 4294901760
        %291 = vmatpush1.msra.mxu0 %v290
        %292 = vmatprep.subr.mxu0 0.0
        %v293 = vand.u32 %v245, 4294901760
        %294 = vmatpush1.msra.mxu0 %v293
        %295 = vmatprep.subr.mxu0 0.0
        %v296 = vand.u32 %v246, 4294901760
        %297 = vmatpush1.msra.mxu0 %v296
        %298 = vmatprep.subr.mxu0 0.0
        %299 = vmatpush1.msra.mxu0 0.0
        %300 = vmatprep.subr.mxu0 0.0
        %301 = vmatpush1.msra.mxu0 0.0
        %302 = vmatprep.subr.mxu0 0.0
        %303 = vmatpush1.msra.mxu0 0.0
        %304 = vmatprep.subr.mxu0 0.0
        %305 = vmatpush1.msra.mxu0 0.0
        %306 = vmatprep.subr.mxu0 0.0
        %307 = vmatpush1.msra.mxu0 0.0
        %308 = vmatprep.subr.mxu0 0.0
        %309 = vmatpush1.msra.mxu0 0.0
        %310 = vmatprep.subr.mxu0 0.0
        %311 = vmatpush1.msra.mxu0 0.0
        %312 = vmatprep.subr.mxu0 0.0
        %313 = vmatpush1.msra.mxu0 0.0
        %314 = vmatprep.subr.mxu0 0.0
        %315 = vmatpush1.msra.mxu0 0.0
        %316 = vmatprep.subr.mxu0 0.0
        %317 = vmatpush1.msra.mxu0 0.0
        %318 = vmatprep.subr.mxu0 0.0
        %319 = vmatpush1.msra.mxu0 0.0
        %320 = vmatprep.subr.mxu0 0.0
        %321 = vmatpush1.msra.mxu0 0.0
        %322 = vmatprep.subr.mxu0 0.0
        %323 = vmatpush1.msra.mxu0 0.0
        %324 = vmatprep.subr.mxu0 0.0
        %325 = vmatpush1.msra.mxu0 0.0
        %326 = vmatprep.subr.mxu0 0.0
        %327 = vmatpush1.msra.mxu0 0.0
        %328 = vmatprep.subr.mxu0 0.0
        %329 = vmatpush1.msra.mxu0 0.0
        %330 = vmatprep.mubr.f32.mxu0 0.0
        %v331 = vand.u32 %v249, 4294901760
        %v332 = vsub.f32 %v249, %v331
        %v333 = vand.u32 %v332, 4294901760
        %v334 = vsub.f32 %v332, %v333
        %v335 = vand.u32 %v334, 4294901760
        %336 = vmatmul.mubr.f32.gmra.mrb[0].mxu0 %v335
        %v337 = vpop.f32.mrb[0].mxu0
        %v338 = vadd.f32 0.0, %v337
        %v339 = vpop.f32.mrb[0].mxu0
        %340 = vdwg.mxu0
        %341 = vmatprep.subr.mxu0 0.0
        %v342 = vand.u32 %v231, 4294901760
        %v343 = vsub.f32 %v231, %v342
        %v344 = vand.u32 %v343, 4294901760
        %v345 = vsub.f32 %v343, %v344
        %v346 = vand.u32 %v345, 4294901760
        %347 = vmatpush1.msra.mxu0 %v346
        %348 = vmatprep.subr.mxu0 0.0
        %v349 = vand.u32 %v232, 4294901760
        %v350 = vsub.f32 %v232, %v349
        %v351 = vand.u32 %v350, 4294901760
        %v352 = vsub.f32 %v350, %v351
        %v353 = vand.u32 %v352, 4294901760
        %354 = vmatpush1.msra.mxu0 %v353
        %355 = vmatprep.subr.mxu0 0.0
        %v356 = vand.u32 %v233, 4294901760
        %v357 = vsub.f32 %v233, %v356
        %v358 = vand.u32 %v357, 4294901760
        %v359 = vsub.f32 %v357, %v358
        %v360 = vand.u32 %v359, 4294901760
        %361 = vmatpush1.msra.mxu0 %v360
        %362 = vmatprep.subr.mxu0 0.0
        %v363 = vand.u32 %v234, 4294901760
        %v364 = vsub.f32 %v234, %v363
        %v365 = vand.u32 %v364, 4294901760
        %v366 = vsub.f32 %v364, %v365
        %v367 = vand.u32 %v366, 4294901760
        %368 = vmatpush1.msra.mxu0 %v367
        %369 = vmatprep.subr.mxu0 0.0
        %v370 = vand.u32 %v235, 4294901760
        %v371 = vsub.f32 %v235, %v370
        %v372 = vand.u32 %v371, 4294901760
        %v373 = vsub.f32 %v371, %v372
        %v374 = vand.u32 %v373, 4294901760
        %375 = vmatpush1.msra.mxu0 %v374
        %376 = vmatprep.subr.mxu0 0.0
        %v377 = vand.u32 %v236, 4294901760
        %v378 = vsub.f32 %v236, %v377
        %v379 = vand.u32 %v378, 4294901760
        %v380 = vsub.f32 %v378, %v379
        %v381 = vand.u32 %v380, 4294901760
        %382 = vmatpush1.msra.mxu0 %v381
        %383 = vmatprep.subr.mxu0 0.0
        %v384 = vand.u32 %v237, 4294901760
        %v385 = vsub.f32 %v237, %v384
        %v386 = vand.u32 %v385, 4294901760
        %v387 = vsub.f32 %v385, %v386
        %v388 = vand.u32 %v387, 4294901760
        %389 = vmatpush1.msra.mxu0 %v388
        %390 = vmatprep.subr.mxu0 0.0
        %v391 = vand.u32 %v238, 4294901760
        %v392 = vsub.f32 %v238, %v391
        %v393 = vand.u32 %v392, 4294901760
        %v394 = vsub.f32 %v392, %v393
        %v395 = vand.u32 %v394, 4294901760
        %396 = vmatpush1.msra.mxu0 %v395
        %397 = vmatprep.subr.mxu0 0.0
        %v398 = vand.u32 %v239, 4294901760
        %v399 = vsub.f32 %v239, %v398
        %v400 = vand.u32 %v399, 4294901760
        %v401 = vsub.f32 %v399, %v400
        %v402 = vand.u32 %v401, 4294901760
        %403 = vmatpush1.msra.mxu0 %v402
        %404 = vmatprep.subr.mxu0 0.0
        %v405 = vand.u32 %v240, 4294901760
        %v406 = vsub.f32 %v240, %v405
        %v407 = vand.u32 %v406, 4294901760
        %v408 = vsub.f32 %v406, %v407
        %v409 = vand.u32 %v408, 4294901760
        %410 = vmatpush1.msra.mxu0 %v409
        %411 = vmatprep.subr.mxu0 0.0
        %v412 = vand.u32 %v241, 4294901760
        %v413 = vsub.f32 %v241, %v412
        %v414 = vand.u32 %v413, 4294901760
        %v415 = vsub.f32 %v413, %v414
        %v416 = vand.u32 %v415, 4294901760
        %417 = vmatpush1.msra.mxu0 %v416
        %418 = vmatprep.subr.mxu0 0.0
        %v419 = vand.u32 %v242, 4294901760
        %v420 = vsub.f32 %v242, %v419
        %v421 = vand.u32 %v420, 4294901760
        %v422 = vsub.f32 %v420, %v421
        %v423 = vand.u32 %v422, 4294901760
        %424 = vmatpush1.msra.mxu0 %v423
        %425 = vmatprep.subr.mxu0 0.0
        %v426 = vand.u32 %v243, 4294901760
        %v427 = vsub.f32 %v243, %v426
        %v428 = vand.u32 %v427, 4294901760
        %v429 = vsub.f32 %v427, %v428
        %v430 = vand.u32 %v429, 4294901760
        %431 = vmatpush1.msra.mxu0 %v430
        %432 = vmatprep.subr.mxu0 0.0
        %v433 = vand.u32 %v244, 4294901760
        %v434 = vsub.f32 %v244, %v433
        %v435 = vand.u32 %v434, 4294901760
        %v436 = vsub.f32 %v434, %v435
        %v437 = vand.u32 %v436, 4294901760
        %438 = vmatpush1.msra.mxu0 %v437
        %439 = vmatprep.subr.mxu0 0.0
        %v440 = vand.u32 %v245, 4294901760
        %v441 = vsub.f32 %v245, %v440
        %v442 = vand.u32 %v441, 4294901760
        %v443 = vsub.f32 %v441, %v442
        %v444 = vand.u32 %v443, 4294901760
        %445 = vmatpush1.msra.mxu0 %v444
        %446 = vmatprep.subr.mxu0 0.0
        %v447 = vand.u32 %v246, 4294901760
        %v448 = vsub.f32 %v246, %v447
        %v449 = vand.u32 %v448, 4294901760
        %v450 = vsub.f32 %v448, %v449
        %v451 = vand.u32 %v450, 4294901760
        %452 = vmatpush1.msra.mxu0 %v451
        %453 = vmatprep.subr.mxu0 0.0
        %454 = vmatpush1.msra.mxu0 0.0
        %455 = vmatprep.subr.mxu0 0.0
        %456 = vmatpush1.msra.mxu0 0.0
        %457 = vmatprep.subr.mxu0 0.0
        %458 = vmatpush1.msra.mxu0 0.0
        %459 = vmatprep.subr.mxu0 0.0
        %460 = vmatpush1.msra.mxu0 0.0
        %461 = vmatprep.subr.mxu0 0.0
        %462 = vmatpush1.msra.mxu0 0.0
        %463 = vmatprep.subr.mxu0 0.0
        %464 = vmatpush1.msra.mxu0 0.0
        %465 = vmatprep.subr.mxu0 0.0
        %466 = vmatpush1.msra.mxu0 0.0
        %467 = vmatprep.subr.mxu0 0.0
        %468 = vmatpush1.msra.mxu0 0.0
        %469 = vmatprep.subr.mxu0 0.0
        %470 = vmatpush1.msra.mxu0 0.0
        %471 = vmatprep.subr.mxu0 0.0
        %472 = vmatpush1.msra.mxu0 0.0
        %473 = vmatprep.subr.mxu0 0.0
        %474 = vmatpush1.msra.mxu0 0.0
        %475 = vmatprep.subr.mxu0 0.0
        %476 = vmatpush1.msra.mxu0 0.0
        %477 = vmatprep.subr.mxu0 0.0
        %478 = vmatpush1.msra.mxu0 0.0
        %479 = vmatprep.subr.mxu0 0.0
        %480 = vmatpush1.msra.mxu0 0.0
        %481 = vmatprep.subr.mxu0 0.0
        %482 = vmatpush1.msra.mxu0 0.0
        %483 = vmatprep.subr.mxu0 0.0
        %484 = vmatpush1.msra.mxu0 0.0
        %485 = vmatprep.mubr.f32.mxu0 0.0
        %v486 = vand.u32 %v249, 4294901760
        %487 = vmatmul.mubr.f32.gmra.mrb[0].mxu0 %v486
        %v488 = vpop.f32.mrb[0].mxu0
        %v489 = vadd.f32 %v338, %v488
        %v490 = vpop.f32.mrb[0].mxu0
        %491 = vdwg.mxu0
        %492 = vmatprep.subr.mxu0 0.0
        %v493 = vand.u32 %v231, 4294901760
        %v494 = vsub.f32 %v231, %v493
        %495 = vmatpush1.msra.mxu0 %v494
        %496 = vmatprep.subr.mxu0 0.0
        %v497 = vand.u32 %v232, 4294901760
        %v498 = vsub.f32 %v232, %v497
        %499 = vmatpush1.msra.mxu0 %v498
        %500 = vmatprep.subr.mxu0 0.0
        %v501 = vand.u32 %v233, 4294901760
        %v502 = vsub.f32 %v233, %v501
        %503 = vmatpush1.msra.mxu0 %v502
        %504 = vmatprep.subr.mxu0 0.0
        %v505 = vand.u32 %v234, 4294901760
        %v506 = vsub.f32 %v234, %v505
        %507 = vmatpush1.msra.mxu0 %v506
        %508 = vmatprep.subr.mxu0 0.0
        %v509 = vand.u32 %v235, 4294901760
        %v510 = vsub.f32 %v235, %v509
        %511 = vmatpush1.msra.mxu0 %v510
        %512 = vmatprep.subr.mxu0 0.0
        %v513 = vand.u32 %v236, 4294901760
        %v514 = vsub.f32 %v236, %v513
        %515 = vmatpush1.msra.mxu0 %v514
        %516 = vmatprep.subr.mxu0 0.0
        %v517 = vand.u32 %v237, 4294901760
        %v518 = vsub.f32 %v237, %v517
        %519 = vmatpush1.msra.mxu0 %v518
        %520 = vmatprep.subr.mxu0 0.0
        %v521 = vand.u32 %v238, 4294901760
        %v522 = vsub.f32 %v238, %v521
        %523 = vmatpush1.msra.mxu0 %v522
        %524 = vmatprep.subr.mxu0 0.0
        %v525 = vand.u32 %v239, 4294901760
        %v526 = vsub.f32 %v239, %v525
        %527 = vmatpush1.msra.mxu0 %v526
        %528 = vmatprep.subr.mxu0 0.0
        %v529 = vand.u32 %v240, 4294901760
        %v530 = vsub.f32 %v240, %v529
        %531 = vmatpush1.msra.mxu0 %v530
        %532 = vmatprep.subr.mxu0 0.0
        %v533 = vand.u32 %v241, 4294901760
        %v534 = vsub.f32 %v241, %v533
        %535 = vmatpush1.msra.mxu0 %v534
        %536 = vmatprep.subr.mxu0 0.0
        %v537 = vand.u32 %v242, 4294901760
        %v538 = vsub.f32 %v242, %v537
        %539 = vmatpush1.msra.mxu0 %v538
        %540 = vmatprep.subr.mxu0 0.0
        %v541 = vand.u32 %v243, 4294901760
        %v542 = vsub.f32 %v243, %v541
        %543 = vmatpush1.msra.mxu0 %v542
        %544 = vmatprep.subr.mxu0 0.0
        %v545 = vand.u32 %v244, 4294901760
        %v546 = vsub.f32 %v244, %v545
        %547 = vmatpush1.msra.mxu0 %v546
        %548 = vmatprep.subr.mxu0 0.0
        %v549 = vand.u32 %v245, 4294901760
        %v550 = vsub.f32 %v245, %v549
        %551 = vmatpush1.msra.mxu0 %v550
        %552 = vmatprep.subr.mxu0 0.0
        %v553 = vand.u32 %v246, 4294901760
        %v554 = vsub.f32 %v246, %v553
        %555 = vmatpush1.msra.mxu0 %v554
        %556 = vmatprep.subr.mxu0 0.0
        %557 = vmatpush1.msra.mxu0 0.0
        %558 = vmatprep.subr.mxu0 0.0
        %559 = vmatpush1.msra.mxu0 0.0
        %560 = vmatprep.subr.mxu0 0.0
        %561 = vmatpush1.msra.mxu0 0.0
        %562 = vmatprep.subr.mxu0 0.0
        %563 = vmatpush1.msra.mxu0 0.0
        %564 = vmatprep.subr.mxu0 0.0
        %565 = vmatpush1.msra.mxu0 0.0
        %566 = vmatprep.subr.mxu0 0.0
        %567 = vmatpush1.msra.mxu0 0.0
        %568 = vmatprep.subr.mxu0 0.0
        %569 = vmatpush1.msra.mxu0 0.0
        %570 = vmatprep.subr.mxu0 0.0
        %571 = vmatpush1.msra.mxu0 0.0
        %572 = vmatprep.subr.mxu0 0.0
        %573 = vmatpush1.msra.mxu0 0.0
        %574 = vmatprep.subr.mxu0 0.0
        %575 = vmatpush1.msra.mxu0 0.0
        %576 = vmatprep.subr.mxu0 0.0
        %577 = vmatpush1.msra.mxu0 0.0
        %578 = vmatprep.subr.mxu0 0.0
        %579 = vmatpush1.msra.mxu0 0.0
        %580 = vmatprep.subr.mxu0 0.0
        %581 = vmatpush1.msra.mxu0 0.0
        %582 = vmatprep.subr.mxu0 0.0
        %583 = vmatpush1.msra.mxu0 0.0
        %584 = vmatprep.subr.mxu0 0.0
        %585 = vmatpush1.msra.mxu0 0.0
        %586 = vmatprep.subr.mxu0 0.0
        %587 = vmatpush1.msra.mxu0 0.0
        %588 = vmatprep.mubr.f32.mxu0 0.0
        %v589 = vand.u32 %v249, 4294901760
        %v590 = vsub.f32 %v249, %v589
        %591 = vmatmul.mubr.f32.gmra.mrb[0].mxu0 %v590
        %v592 = vpop.f32.mrb[0].mxu0
        %v593 = vadd.f32 %v489, %v592
        %v594 = vpop.f32.mrb[0].mxu0
        %595 = vdwg.mxu0
        %596 = vmatprep.subr.mxu0 0.0
        %v597 = vand.u32 %v231, 4294901760
        %598 = vmatpush1.msra.mxu0 %v597
        %599 = vmatprep.subr.mxu0 0.0
        %v600 = vand.u32 %v232, 4294901760
        %601 = vmatpush1.msra.mxu0 %v600
        %602 = vmatprep.subr.mxu0 0.0
        %v603 = vand.u32 %v233, 4294901760
        %604 = vmatpush1.msra.mxu0 %v603
        %605 = vmatprep.subr.mxu0 0.0
        %v606 = vand.u32 %v234, 4294901760
        %607 = vmatpush1.msra.mxu0 %v606
        %608 = vmatprep.subr.mxu0 0.0
        %v609 = vand.u32 %v235, 4294901760
        %610 = vmatpush1.msra.mxu0 %v609
        %611 = vmatprep.subr.mxu0 0.0
        %v612 = vand.u32 %v236, 4294901760
        %613 = vmatpush1.msra.mxu0 %v612
        %614 = vmatprep.subr.mxu0 0.0
        %v615 = vand.u32 %v237, 4294901760
        %616 = vmatpush1.msra.mxu0 %v615
        %617 = vmatprep.subr.mxu0 0.0
        %v618 = vand.u32 %v238, 4294901760
        %619 = vmatpush1.msra.mxu0 %v618
        %620 = vmatprep.subr.mxu0 0.0
        %v621 = vand.u32 %v239, 4294901760
        %622 = vmatpush1.msra.mxu0 %v621
        %623 = vmatprep.subr.mxu0 0.0
        %v624 = vand.u32 %v240, 4294901760
        %625 = vmatpush1.msra.mxu0 %v624
        %626 = vmatprep.subr.mxu0 0.0
        %v627 = vand.u32 %v241, 4294901760
        %628 = vmatpush1.msra.mxu0 %v627
        %629 = vmatprep.subr.mxu0 0.0
        %v630 = vand.u32 %v242, 4294901760
        %631 = vmatpush1.msra.mxu0 %v630
        %632 = vmatprep.subr.mxu0 0.0
        %v633 = vand.u32 %v243, 4294901760
        %634 = vmatpush1.msra.mxu0 %v633
        %635 = vmatprep.subr.mxu0 0.0
        %v636 = vand.u32 %v244, 4294901760
        %637 = vmatpush1.msra.mxu0 %v636
        %638 = vmatprep.subr.mxu0 0.0
        %v639 = vand.u32 %v245, 4294901760
        %640 = vmatpush1.msra.mxu0 %v639
        %641 = vmatprep.subr.mxu0 0.0
        %v642 = vand.u32 %v246, 4294901760
        %643 = vmatpush1.msra.mxu0 %v642
        %644 = vmatprep.subr.mxu0 0.0
        %645 = vmatpush1.msra.mxu0 0.0
        %646 = vmatprep.subr.mxu0 0.0
        %647 = vmatpush1.msra.mxu0 0.0
        %648 = vmatprep.subr.mxu0 0.0
        %649 = vmatpush1.msra.mxu0 0.0
        %650 = vmatprep.subr.mxu0 0.0
        %651 = vmatpush1.msra.mxu0 0.0
        %652 = vmatprep.subr.mxu0 0.0
        %653 = vmatpush1.msra.mxu0 0.0
        %654 = vmatprep.subr.mxu0 0.0
        %655 = vmatpush1.msra.mxu0 0.0
        %656 = vmatprep.subr.mxu0 0.0
        %657 = vmatpush1.msra.mxu0 0.0
        %658 = vmatprep.subr.mxu0 0.0
        %659 = vmatpush1.msra.mxu0 0.0
        %660 = vmatprep.subr.mxu0 0.0
        %661 = vmatpush1.msra.mxu0 0.0
        %662 = vmatprep.subr.mxu0 0.0
        %663 = vmatpush1.msra.mxu0 0.0
        %664 = vmatprep.subr.mxu0 0.0
        %665 = vmatpush1.msra.mxu0 0.0
        %666 = vmatprep.subr.mxu0 0.0
        %667 = vmatpush1.msra.mxu0 0.0
        %668 = vmatprep.subr.mxu0 0.0
        %669 = vmatpush1.msra.mxu0 0.0
        %670 = vmatprep.subr.mxu0 0.0
        %671 = vmatpush1.msra.mxu0 0.0
        %672 = vmatprep.subr.mxu0 0.0
        %673 = vmatpush1.msra.mxu0 0.0
        %674 = vmatprep.subr.mxu0 0.0
        %675 = vmatpush1.msra.mxu0 0.0
        %676 = vmatprep.mubr.f32.mxu0 0.0
        %v677 = vand.u32 %v249, 4294901760
        %v678 = vsub.f32 %v249, %v677
        %v679 = vand.u32 %v678, 4294901760
        %680 = vmatmul.mubr.f32.gmra.mrb[0].mxu0 %v679
        %v681 = vpop.f32.mrb[0].mxu0
        %v682 = vadd.f32 %v593, %v681
        %v683 = vpop.f32.mrb[0].mxu0
        %684 = vdwg.mxu0
        %685 = vmatprep.subr.mxu0 0.0
        %v686 = vand.u32 %v231, 4294901760
        %v687 = vsub.f32 %v231, %v686
        %v688 = vand.u32 %v687, 4294901760
        %689 = vmatpush1.msra.mxu0 %v688
        %690 = vmatprep.subr.mxu0 0.0
        %v691 = vand.u32 %v232, 4294901760
        %v692 = vsub.f32 %v232, %v691
        %v693 = vand.u32 %v692, 4294901760
        %694 = vmatpush1.msra.mxu0 %v693
        %695 = vmatprep.subr.mxu0 0.0
        %v696 = vand.u32 %v233, 4294901760
        %v697 = vsub.f32 %v233, %v696
        %v698 = vand.u32 %v697, 4294901760
        %699 = vmatpush1.msra.mxu0 %v698
        %700 = vmatprep.subr.mxu0 0.0
        %v701 = vand.u32 %v234, 4294901760
        %v702 = vsub.f32 %v234, %v701
        %v703 = vand.u32 %v702, 4294901760
        %704 = vmatpush1.msra.mxu0 %v703
        %705 = vmatprep.subr.mxu0 0.0
        %v706 = vand.u32 %v235, 4294901760
        %v707 = vsub.f32 %v235, %v706
        %v708 = vand.u32 %v707, 4294901760
        %709 = vmatpush1.msra.mxu0 %v708
        %710 = vmatprep.subr.mxu0 0.0
        %v711 = vand.u32 %v236, 4294901760
        %v712 = vsub.f32 %v236, %v711
        %v713 = vand.u32 %v712, 4294901760
        %714 = vmatpush1.msra.mxu0 %v713
        %715 = vmatprep.subr.mxu0 0.0
        %v716 = vand.u32 %v237, 4294901760
        %v717 = vsub.f32 %v237, %v716
        %v718 = vand.u32 %v717, 4294901760
        %719 = vmatpush1.msra.mxu0 %v718
        %720 = vmatprep.subr.mxu0 0.0
        %v721 = vand.u32 %v238, 4294901760
        %v722 = vsub.f32 %v238, %v721
        %v723 = vand.u32 %v722, 4294901760
        %724 = vmatpush1.msra.mxu0 %v723
        %725 = vmatprep.subr.mxu0 0.0
        %v726 = vand.u32 %v239, 4294901760
        %v727 = vsub.f32 %v239, %v726
        %v728 = vand.u32 %v727, 4294901760
        %729 = vmatpush1.msra.mxu0 %v728
        %730 = vmatprep.subr.mxu0 0.0
        %v731 = vand.u32 %v240, 4294901760
        %v732 = vsub.f32 %v240, %v731
        %v733 = vand.u32 %v732, 4294901760
        %734 = vmatpush1.msra.mxu0 %v733
        %735 = vmatprep.subr.mxu0 0.0
        %v736 = vand.u32 %v241, 4294901760
        %v737 = vsub.f32 %v241, %v736
        %v738 = vand.u32 %v737, 4294901760
        %739 = vmatpush1.msra.mxu0 %v738
        %740 = vmatprep.subr.mxu0 0.0
        %v741 = vand.u32 %v242, 4294901760
        %v742 = vsub.f32 %v242, %v741
        %v743 = vand.u32 %v742, 4294901760
        %744 = vmatpush1.msra.mxu0 %v743
        %745 = vmatprep.subr.mxu0 0.0
        %v746 = vand.u32 %v243, 4294901760
        %v747 = vsub.f32 %v243, %v746
        %v748 = vand.u32 %v747, 4294901760
        %749 = vmatpush1.msra.mxu0 %v748
        %750 = vmatprep.subr.mxu0 0.0
        %v751 = vand.u32 %v244, 4294901760
        %v752 = vsub.f32 %v244, %v751
        %v753 = vand.u32 %v752, 4294901760
        %754 = vmatpush1.msra.mxu0 %v753
        %755 = vmatprep.subr.mxu0 0.0
        %v756 = vand.u32 %v245, 4294901760
        %v757 = vsub.f32 %v245, %v756
        %v758 = vand.u32 %v757, 4294901760
        %759 = vmatpush1.msra.mxu0 %v758
        %760 = vmatprep.subr.mxu0 0.0
        %v761 = vand.u32 %v246, 4294901760
        %v762 = vsub.f32 %v246, %v761
        %v763 = vand.u32 %v762, 4294901760
        %764 = vmatpush1.msra.mxu0 %v763
        %765 = vmatprep.subr.mxu0 0.0
        %766 = vmatpush1.msra.mxu0 0.0
        %767 = vmatprep.subr.mxu0 0.0
        %768 = vmatpush1.msra.mxu0 0.0
        %769 = vmatprep.subr.mxu0 0.0
        %770 = vmatpush1.msra.mxu0 0.0
        %771 = vmatprep.subr.mxu0 0.0
        %772 = vmatpush1.msra.mxu0 0.0
        %773 = vmatprep.subr.mxu0 0.0
        %774 = vmatpush1.msra.mxu0 0.0
        %775 = vmatprep.subr.mxu0 0.0
        %776 = vmatpush1.msra.mxu0 0.0
        %777 = vmatprep.subr.mxu0 0.0
        %778 = vmatpush1.msra.mxu0 0.0
        %779 = vmatprep.subr.mxu0 0.0
        %780 = vmatpush1.msra.mxu0 0.0
        %781 = vmatprep.subr.mxu0 0.0
        %782 = vmatpush1.msra.mxu0 0.0
        %783 = vmatprep.subr.mxu0 0.0
        %784 = vmatpush1.msra.mxu0 0.0
        %785 = vmatprep.subr.mxu0 0.0
        %786 = vmatpush1.msra.mxu0 0.0
        %787 = vmatprep.subr.mxu0 0.0
        %788 = vmatpush1.msra.mxu0 0.0
        %789 = vmatprep.subr.mxu0 0.0
        %790 = vmatpush1.msra.mxu0 0.0
        %791 = vmatprep.subr.mxu0 0.0
        %792 = vmatpush1.msra.mxu0 0.0
        %793 = vmatprep.subr.mxu0 0.0
        %794 = vmatpush1.msra.mxu0 0.0
        %795 = vmatprep.subr.mxu0 0.0
        %796 = vmatpush1.msra.mxu0 0.0
        %797 = vmatprep.mubr.f32.mxu0 0.0
        %v798 = vand.u32 %v249, 4294901760
        %799 = vmatmul.mubr.f32.gmra.mrb[0].mxu0 %v798
        %v800 = vpop.f32.mrb[0].mxu0
        %v801 = vadd.f32 %v682, %v800
        %v802 = vpop.f32.mrb[0].mxu0
        %803 = vdwg.mxu0
        %804 = vmatprep.subr.mxu0 0.0
        %v805 = vand.u32 %v231, 4294901760
        %806 = vmatpush1.msra.mxu0 %v805
        %807 = vmatprep.subr.mxu0 0.0
        %v808 = vand.u32 %v232, 4294901760
        %809 = vmatpush1.msra.mxu0 %v808
        %810 = vmatprep.subr.mxu0 0.0
        %v811 = vand.u32 %v233, 4294901760
        %812 = vmatpush1.msra.mxu0 %v811
        %813 = vmatprep.subr.mxu0 0.0
        %v814 = vand.u32 %v234, 4294901760
        %815 = vmatpush1.msra.mxu0 %v814
        %816 = vmatprep.subr.mxu0 0.0
        %v817 = vand.u32 %v235, 4294901760
        %818 = vmatpush1.msra.mxu0 %v817
        %819 = vmatprep.subr.mxu0 0.0
        %v820 = vand.u32 %v236, 4294901760
        %821 = vmatpush1.msra.mxu0 %v820
        %822 = vmatprep.subr.mxu0 0.0
        %v823 = vand.u32 %v237, 4294901760
        %824 = vmatpush1.msra.mxu0 %v823
        %825 = vmatprep.subr.mxu0 0.0
        %v826 = vand.u32 %v238, 4294901760
        %827 = vmatpush1.msra.mxu0 %v826
        %828 = vmatprep.subr.mxu0 0.0
        %v829 = vand.u32 %v239, 4294901760
        %830 = vmatpush1.msra.mxu0 %v829
        %831 = vmatprep.subr.mxu0 0.0
        %v832 = vand.u32 %v240, 4294901760
        %833 = vmatpush1.msra.mxu0 %v832
        %834 = vmatprep.subr.mxu0 0.0
        %v835 = vand.u32 %v241, 4294901760
        %836 = vmatpush1.msra.mxu0 %v835
        %837 = vmatprep.subr.mxu0 0.0
        %v838 = vand.u32 %v242, 4294901760
        %839 = vmatpush1.msra.mxu0 %v838
        %840 = vmatprep.subr.mxu0 0.0
        %v841 = vand.u32 %v243, 4294901760
        %842 = vmatpush1.msra.mxu0 %v841
        %843 = vmatprep.subr.mxu0 0.0
        %v844 = vand.u32 %v244, 4294901760
        %845 = vmatpush1.msra.mxu0 %v844
        %846 = vmatprep.subr.mxu0 0.0
        %v847 = vand.u32 %v245, 4294901760
        %848 = vmatpush1.msra.mxu0 %v847
        %849 = vmatprep.subr.mxu0 0.0
        %v850 = vand.u32 %v246, 4294901760
        %851 = vmatpush1.msra.mxu0 %v850
        %852 = vmatprep.subr.mxu0 0.0
        %853 = vmatpush1.msra.mxu0 0.0
        %854 = vmatprep.subr.mxu0 0.0
        %855 = vmatpush1.msra.mxu0 0.0
        %856 = vmatprep.subr.mxu0 0.0
        %857 = vmatpush1.msra.mxu0 0.0
        %858 = vmatprep.subr.mxu0 0.0
        %859 = vmatpush1.msra.mxu0 0.0
        %860 = vmatprep.subr.mxu0 0.0
        %861 = vmatpush1.msra.mxu0 0.0
        %862 = vmatprep.subr.mxu0 0.0
        %863 = vmatpush1.msra.mxu0 0.0
        %864 = vmatprep.subr.mxu0 0.0
        %865 = vmatpush1.msra.mxu0 0.0
        %866 = vmatprep.subr.mxu0 0.0
        %867 = vmatpush1.msra.mxu0 0.0
        %868 = vmatprep.subr.mxu0 0.0
        %869 = vmatpush1.msra.mxu0 0.0
        %870 = vmatprep.subr.mxu0 0.0
        %871 = vmatpush1.msra.mxu0 0.0
        %872 = vmatprep.subr.mxu0 0.0
        %873 = vmatpush1.msra.mxu0 0.0
        %874 = vmatprep.subr.mxu0 0.0
        %875 = vmatpush1.msra.mxu0 0.0
        %876 = vmatprep.subr.mxu0 0.0
        %877 = vmatpush1.msra.mxu0 0.0
        %878 = vmatprep.subr.mxu0 0.0
        %879 = vmatpush1.msra.mxu0 0.0
        %880 = vmatprep.subr.mxu0 0.0
        %881 = vmatpush1.msra.mxu0 0.0
        %882 = vmatprep.subr.mxu0 0.0
        %883 = vmatpush1.msra.mxu0 0.0
        %884 = vmatprep.mubr.f32.mxu0 0.0
        %v885 = vand.u32 %v249, 4294901760
        %886 = vmatmul.mubr.f32.gmra.mrb[0].mxu0 %v885
        %v887 = vpop.f32.mrb[0].mxu0
        %v888 = vadd.f32 %v801, %v887
        %v889 = vpop.f32.mrb[0].mxu0
        %890 = vdwg.mxu0
        %p891 = scmp.lt.s32.totalorder %s23, 3
        // Predicated region
        $region49: #{tpu_custom_call.1} parent=39 // pred_check
          %p892 = pneg %p891
        $region50: #{tpu_custom_call.1} parent=39 // pred_check_branch
          %894 = sbr.rel (%p892) target = $region52
        $region51: #{tpu_custom_call.1} parent=39 // pred_region
          %s895 = sadd.s32 %s23, 1
          %s896 = smul.u32 %s895, 8
          %s897 = sadd.s32 %s228, %s896
          %s898 = scalar_lea.vmem [#allocation2], %s897
          %899 = vst [vmem:[%s898] sm:$0xff] %v888
        $region52: #{tpu_custom_call.1} parent=39 // pred_fallthru
          _
        %p900 = scmp.eq.s32.totalorder %s23, 3
        // Predicated region
        $region53: #{tpu_custom_call.1} parent=39 // pred_check
          %p901 = pneg %p900
        $region54: #{tpu_custom_call.1} parent=39 // pred_check_branch
          %903 = sbr.rel (%p901) target = $region56
        $region55: #{tpu_custom_call.1} parent=39 // pred_region
          %s904 = sadd.s32 %s228, 8
          %s905 = scalar_lea.vmem [#allocation2], %s904
          %v906 = vld [vmem:[%s905] sm:$0xff]
          %s907 = sadd.s32 %s228, 16
          %s908 = scalar_lea.vmem [#allocation2], %s907
          %v909 = vld [vmem:[%s908] sm:$0xff]
          %s910 = sadd.s32 %s228, 24
          %s911 = scalar_lea.vmem [#allocation2], %s910
          %v912 = vld [vmem:[%s911] sm:$0xff]
          %v913 = vsub.f32 %v906, %v909
          %v914 = vand.u32 2147483647, %v913
          %v915 = vld [vmem:[%s2] sm:$0xff]
          %v916 = vld [vmem:[%s2 + $0x8] sm:$0xff]
          %v917 = vld [vmem:[%s2 + $0x18] sm:$0xff]
          %v918 = vadd.f32 %v916, %v917
          %919 = vxpose.xlu0.b32.start [1/16] %v918, 128
          %920 = vxpose.xlu0.b32.cont [2/16] 0.0, 128
          %921 = vxpose.xlu0.b32.cont [3/16] 0.0, 128
          %922 = vxpose.xlu0.b32.cont [4/16] 0.0, 128
          %923 = vxpose.xlu0.b32.cont [5/16] 0.0, 128
          %924 = vxpose.xlu0.b32.cont [6/16] 0.0, 128
          %925 = vxpose.xlu0.b32.cont [7/16] 0.0, 128
          %926 = vxpose.xlu0.b32.cont [8/16] 0.0, 128
          %927 = vxpose.xlu0.b32.cont [9/16] 0.0, 128
          %928 = vxpose.xlu0.b32.cont [10/16] 0.0, 128
          %929 = vxpose.xlu0.b32.cont [11/16] 0.0, 128
          %930 = vxpose.xlu0.b32.cont [12/16] 0.0, 128
          %931 = vxpose.xlu0.b32.cont [13/16] 0.0, 128
          %932 = vxpose.xlu0.b32.cont [14/16] 0.0, 128
          %933 = vxpose.xlu0.b32.cont [15/16] 0.0, 128
          %934 = vxpose.xlu0.b32.end [16/16] 0.0, 128
          %v935 = vpop.trf.xlu0
          %v936 = vpop.trf.xlu0
          %v937 = vpop.trf.xlu0
          %v938 = vpop.trf.xlu0
          %v939 = vpop.trf.xlu0
          %v940 = vpop.trf.xlu0
          %v941 = vpop.trf.xlu0
          %v942 = vpop.trf.xlu0
          %v943 = vpop.trf.xlu0
          %v944 = vpop.trf.xlu0
          %v945 = vpop.trf.xlu0
          %v946 = vpop.trf.xlu0
          %v947 = vpop.trf.xlu0
          %v948 = vpop.trf.xlu0
          %v949 = vpop.trf.xlu0
          %v950 = vpop.trf.xlu0
          %vm951 = vcmask 64512
          %v953 = vsel %vm951, %v935, 0
          %v956 = vsel %vm951, %v936, 0
          %958 = vmatprep.subr.mxu0 0.0
          %v959 = vand.u32 %v914, 4294901760
          %960 = vmatpush1.msra.mxu0 %v959
          %961 = vmatprep.subr.mxu0 0.0
          %962 = vmatpush1.msra.mxu0 0.0
          %963 = vmatprep.subr.mxu0 0.0
          %964 = vmatpush1.msra.mxu0 0.0
          %965 = vmatprep.subr.mxu0 0.0
          %966 = vmatpush1.msra.mxu0 0.0
          %967 = vmatprep.subr.mxu0 0.0
          %968 = vmatpush1.msra.mxu0 0.0
          %969 = vmatprep.subr.mxu0 0.0
          %970 = vmatpush1.msra.mxu0 0.0
          %971 = vmatprep.subr.mxu0 0.0
          %972 = vmatpush1.msra.mxu0 0.0
          %973 = vmatprep.subr.mxu0 0.0
          %974 = vmatpush1.msra.mxu0 0.0
          %975 = vmatprep.subr.mxu0 0.0
          %976 = vmatpush1.msra.mxu0 0.0
          %977 = vmatprep.subr.mxu0 0.0
          %978 = vmatpush1.msra.mxu0 0.0
          %979 = vmatprep.subr.mxu0 0.0
          %980 = vmatpush1.msra.mxu0 0.0
          %981 = vmatprep.subr.mxu0 0.0
          %982 = vmatpush1.msra.mxu0 0.0
          %983 = vmatprep.subr.mxu0 0.0
          %984 = vmatpush1.msra.mxu0 0.0
          %985 = vmatprep.subr.mxu0 0.0
          %986 = vmatpush1.msra.mxu0 0.0
          %987 = vmatprep.subr.mxu0 0.0
          %988 = vmatpush1.msra.mxu0 0.0
          %989 = vmatprep.subr.mxu0 0.0
          %990 = vmatpush1.msra.mxu0 0.0
          %991 = vmatprep.subr.mxu0 0.0
          %992 = vmatpush1.msra.mxu0 0.0
          %993 = vmatprep.subr.mxu0 0.0
          %994 = vmatpush1.msra.mxu0 0.0
          %995 = vmatprep.subr.mxu0 0.0
          %996 = vmatpush1.msra.mxu0 0.0
          %997 = vmatprep.subr.mxu0 0.0
          %998 = vmatpush1.msra.mxu0 0.0
          %999 = vmatprep.subr.mxu0 0.0
          %1000 = vmatpush1.msra.mxu0 0.0
          %1001 = vmatprep.subr.mxu0 0.0
          %1002 = vmatpush1.msra.mxu0 0.0
          %1003 = vmatprep.subr.mxu0 0.0
          %1004 = vmatpush1.msra.mxu0 0.0
          %1005 = vmatprep.subr.mxu0 0.0
          %1006 = vmatpush1.msra.mxu0 0.0
          %1007 = vmatprep.subr.mxu0 0.0
          %1008 = vmatpush1.msra.mxu0 0.0
          %1009 = vmatprep.subr.mxu0 0.0
          %1010 = vmatpush1.msra.mxu0 0.0
          %1011 = vmatprep.subr.mxu0 0.0
          %1012 = vmatpush1.msra.mxu0 0.0
          %1013 = vmatprep.subr.mxu0 0.0
          %1014 = vmatpush1.msra.mxu0 0.0
          %1015 = vmatprep.subr.mxu0 0.0
          %1016 = vmatpush1.msra.mxu0 0.0
          %1017 = vmatprep.subr.mxu0 0.0
          %1018 = vmatpush1.msra.mxu0 0.0
          %1019 = vmatprep.subr.mxu0 0.0
          %1020 = vmatpush1.msra.mxu0 0.0
          %1021 = vmatprep.subr.mxu0 0.0
          %1022 = vmatpush1.msra.mxu0 0.0
          %1023 = vmatprep.mubr.f32.mxu0 0.0
          %v1024 = vand.u32 %v953, 4294901760
          %v1025 = vsub.f32 %v953, %v1024
          %v1026 = vand.u32 %v1025, 4294901760
          %v1027 = vsub.f32 %v1025, %v1026
          %v1028 = vand.u32 %v1027, 4294901760
          %1029 = vmatmul.mubr.f32.gmra.mrb[0].mxu0 %v1028
          %v1030 = vpop.f32.mrb[0].mxu0
          %v1031 = vadd.f32 0.0, %v1030
          %v1032 = vpop.f32.mrb[0].mxu0
          %1033 = vmatprep.mubr.f32.mxu0 0.0
          %v1034 = vand.u32 %v956, 4294901760
          %v1035 = vsub.f32 %v956, %v1034
          %v1036 = vand.u32 %v1035, 4294901760
          %v1037 = vsub.f32 %v1035, %v1036
          %v1038 = vand.u32 %v1037, 4294901760
          %1039 = vmatmul.mubr.f32.gmra.mrb[0].mxu0 %v1038
          %v1040 = vpop.f32.mrb[0].mxu0
          %v1041 = vadd.f32 0.0, %v1040
          %v1042 = vpop.f32.mrb[0].mxu0
          %1043 = vdwg.mxu0
          %1044 = vmatprep.subr.mxu0 0.0
          %v1045 = vand.u32 %v914, 4294901760
          %v1046 = vsub.f32 %v914, %v1045
          %v1047 = vand.u32 %v1046, 4294901760
          %v1048 = vsub.f32 %v1046, %v1047
          %v1049 = vand.u32 %v1048, 4294901760
          %1050 = vmatpush1.msra.mxu0 %v1049
          %1051 = vmatprep.subr.mxu0 0.0
          %1052 = vmatpush1.msra.mxu0 0.0
          %1053 = vmatprep.subr.mxu0 0.0
          %1054 = vmatpush1.msra.mxu0 0.0
          %1055 = vmatprep.subr.mxu0 0.0
          %1056 = vmatpush1.msra.mxu0 0.0
          %1057 = vmatprep.subr.mxu0 0.0
          %1058 = vmatpush1.msra.mxu0 0.0
          %1059 = vmatprep.subr.mxu0 0.0
          %1060 = vmatpush1.msra.mxu0 0.0
          %1061 = vmatprep.subr.mxu0 0.0
          %1062 = vmatpush1.msra.mxu0 0.0
          %1063 = vmatprep.subr.mxu0 0.0
          %1064 = vmatpush1.msra.mxu0 0.0
          %1065 = vmatprep.subr.mxu0 0.0
          %1066 = vmatpush1.msra.mxu0 0.0
          %1067 = vmatprep.subr.mxu0 0.0
          %1068 = vmatpush1.msra.mxu0 0.0
          %1069 = vmatprep.subr.mxu0 0.0
          %1070 = vmatpush1.msra.mxu0 0.0
          %1071 = vmatprep.subr.mxu0 0.0
          %1072 = vmatpush1.msra.mxu0 0.0
          %1073 = vmatprep.subr.mxu0 0.0
          %1074 = vmatpush1.msra.mxu0 0.0
          %1075 = vmatprep.subr.mxu0 0.0
          %1076 = vmatpush1.msra.mxu0 0.0
          %1077 = vmatprep.subr.mxu0 0.0
          %1078 = vmatpush1.msra.mxu0 0.0
          %1079 = vmatprep.subr.mxu0 0.0
          %1080 = vmatpush1.msra.mxu0 0.0
          %1081 = vmatprep.subr.mxu0 0.0
          %1082 = vmatpush1.msra.mxu0 0.0
          %1083 = vmatprep.subr.mxu0 0.0
          %1084 = vmatpush1.msra.mxu0 0.0
          %1085 = vmatprep.subr.mxu0 0.0
          %1086 = vmatpush1.msra.mxu0 0.0
          %1087 = vmatprep.subr.mxu0 0.0
          %1088 = vmatpush1.msra.mxu0 0.0
          %1089 = vmatprep.subr.mxu0 0.0
          %1090 = vmatpush1.msra.mxu0 0.0
          %1091 = vmatprep.subr.mxu0 0.0
          %1092 = vmatpush1.msra.mxu0 0.0
          %1093 = vmatprep.subr.mxu0 0.0
          %1094 = vmatpush1.msra.mxu0 0.0
          %1095 = vmatprep.subr.mxu0 0.0
          %1096 = vmatpush1.msra.mxu0 0.0
          %1097 = vmatprep.subr.mxu0 0.0
          %1098 = vmatpush1.msra.mxu0 0.0
          %1099 = vmatprep.subr.mxu0 0.0
          %1100 = vmatpush1.msra.mxu0 0.0
          %1101 = vmatprep.subr.mxu0 0.0
          %1102 = vmatpush1.msra.mxu0 0.0
          %1103 = vmatprep.subr.mxu0 0.0
          %1104 = vmatpush1.msra.mxu0 0.0
          %1105 = vmatprep.subr.mxu0 0.0
          %1106 = vmatpush1.msra.mxu0 0.0
          %1107 = vmatprep.subr.mxu0 0.0
          %1108 = vmatpush1.msra.mxu0 0.0
          %1109 = vmatprep.subr.mxu0 0.0
          %1110 = vmatpush1.msra.mxu0 0.0
          %1111 = vmatprep.subr.mxu0 0.0
          %1112 = vmatpush1.msra.mxu0 0.0
          %1113 = vmatprep.mubr.f32.mxu0 0.0
          %v1114 = vand.u32 %v953, 4294901760
          %1115 = vmatmul.mubr.f32.gmra.mrb[0].mxu0 %v1114
          %v1116 = vpop.f32.mrb[0].mxu0
          %v1117 = vadd.f32 %v1031, %v1116
          %v1118 = vpop.f32.mrb[0].mxu0
          %1119 = vmatprep.mubr.f32.mxu0 0.0
          %v1120 = vand.u32 %v956, 4294901760
          %1121 = vmatmul.mubr.f32.gmra.mrb[0].mxu0 %v1120
          %v1122 = vpop.f32.mrb[0].mxu0
          %v1123 = vadd.f32 %v1041, %v1122
          %v1124 = vpop.f32.mrb[0].mxu0
          %1125 = vdwg.mxu0
          %1126 = vmatprep.subr.mxu0 0.0
          %v1127 = vand.u32 %v914, 4294901760
          %v1128 = vsub.f32 %v914, %v1127
          %1129 = vmatpush1.msra.mxu0 %v1128
          %1130 = vmatprep.subr.mxu0 0.0
          %1131 = vmatpush1.msra.mxu0 0.0
          %1132 = vmatprep.subr.mxu0 0.0
          %1133 = vmatpush1.msra.mxu0 0.0
          %1134 = vmatprep.subr.mxu0 0.0
          %1135 = vmatpush1.msra.mxu0 0.0
          %1136 = vmatprep.subr.mxu0 0.0
          %1137 = vmatpush1.msra.mxu0 0.0
          %1138 = vmatprep.subr.mxu0 0.0
          %1139 = vmatpush1.msra.mxu0 0.0
          %1140 = vmatprep.subr.mxu0 0.0
          %1141 = vmatpush1.msra.mxu0 0.0
          %1142 = vmatprep.subr.mxu0 0.0
          %1143 = vmatpush1.msra.mxu0 0.0
          %1144 = vmatprep.subr.mxu0 0.0
          %1145 = vmatpush1.msra.mxu0 0.0
          %1146 = vmatprep.subr.mxu0 0.0
          %1147 = vmatpush1.msra.mxu0 0.0
          %1148 = vmatprep.subr.mxu0 0.0
          %1149 = vmatpush1.msra.mxu0 0.0
          %1150 = vmatprep.subr.mxu0 0.0
          %1151 = vmatpush1.msra.mxu0 0.0
          %1152 = vmatprep.subr.mxu0 0.0
          %1153 = vmatpush1.msra.mxu0 0.0
          %1154 = vmatprep.subr.mxu0 0.0
          %1155 = vmatpush1.msra.mxu0 0.0
          %1156 = vmatprep.subr.mxu0 0.0
          %1157 = vmatpush1.msra.mxu0 0.0
          %1158 = vmatprep.subr.mxu0 0.0
          %1159 = vmatpush1.msra.mxu0 0.0
          %1160 = vmatprep.subr.mxu0 0.0
          %1161 = vmatpush1.msra.mxu0 0.0
          %1162 = vmatprep.subr.mxu0 0.0
          %1163 = vmatpush1.msra.mxu0 0.0
          %1164 = vmatprep.subr.mxu0 0.0
          %1165 = vmatpush1.msra.mxu0 0.0
          %1166 = vmatprep.subr.mxu0 0.0
          %1167 = vmatpush1.msra.mxu0 0.0
          %1168 = vmatprep.subr.mxu0 0.0
          %1169 = vmatpush1.msra.mxu0 0.0
          %1170 = vmatprep.subr.mxu0 0.0
          %1171 = vmatpush1.msra.mxu0 0.0
          %1172 = vmatprep.subr.mxu0 0.0
          %1173 = vmatpush1.msra.mxu0 0.0
          %1174 = vmatprep.subr.mxu0 0.0
          %1175 = vmatpush1.msra.mxu0 0.0
          %1176 = vmatprep.subr.mxu0 0.0
          %1177 = vmatpush1.msra.mxu0 0.0
          %1178 = vmatprep.subr.mxu0 0.0
          %1179 = vmatpush1.msra.mxu0 0.0
          %1180 = vmatprep.subr.mxu0 0.0
          %1181 = vmatpush1.msra.mxu0 0.0
          %1182 = vmatprep.subr.mxu0 0.0
          %1183 = vmatpush1.msra.mxu0 0.0
          %1184 = vmatprep.subr.mxu0 0.0
          %1185 = vmatpush1.msra.mxu0 0.0
          %1186 = vmatprep.subr.mxu0 0.0
          %1187 = vmatpush1.msra.mxu0 0.0
          %1188 = vmatprep.subr.mxu0 0.0
          %1189 = vmatpush1.msra.mxu0 0.0
          %1190 = vmatprep.subr.mxu0 0.0
          %1191 = vmatpush1.msra.mxu0 0.0
          %1192 = vmatprep.mubr.f32.mxu0 0.0
          %v1193 = vand.u32 %v953, 4294901760
          %v1194 = vsub.f32 %v953, %v1193
          %1195 = vmatmul.mubr.f32.gmra.mrb[0].mxu0 %v1194
          %v1196 = vpop.f32.mrb[0].mxu0
          %v1197 = vadd.f32 %v1117, %v1196
          %v1198 = vpop.f32.mrb[0].mxu0
          %1199 = vmatprep.mubr.f32.mxu0 0.0
          %v1200 = vand.u32 %v956, 4294901760
          %v1201 = vsub.f32 %v956, %v1200
          %1202 = vmatmul.mubr.f32.gmra.mrb[0].mxu0 %v1201
          %v1203 = vpop.f32.mrb[0].mxu0
          %v1204 = vadd.f32 %v1123, %v1203
          %v1205 = vpop.f32.mrb[0].mxu0
          %1206 = vdwg.mxu0
          %1207 = vmatprep.subr.mxu0 0.0
          %v1208 = vand.u32 %v914, 4294901760
          %1209 = vmatpush1.msra.mxu0 %v1208
          %1210 = vmatprep.subr.mxu0 0.0
          %1211 = vmatpush1.msra.mxu0 0.0
          %1212 = vmatprep.subr.mxu0 0.0
          %1213 = vmatpush1.msra.mxu0 0.0
          %1214 = vmatprep.subr.mxu0 0.0
          %1215 = vmatpush1.msra.mxu0 0.0
          %1216 = vmatprep.subr.mxu0 0.0
          %1217 = vmatpush1.msra.mxu0 0.0
          %1218 = vmatprep.subr.mxu0 0.0
          %1219 = vmatpush1.msra.mxu0 0.0
          %1220 = vmatprep.subr.mxu0 0.0
          %1221 = vmatpush1.msra.mxu0 0.0
          %1222 = vmatprep.subr.mxu0 0.0
          %1223 = vmatpush1.msra.mxu0 0.0
          %1224 = vmatprep.subr.mxu0 0.0
          %1225 = vmatpush1.msra.mxu0 0.0
          %1226 = vmatprep.subr.mxu0 0.0
          %1227 = vmatpush1.msra.mxu0 0.0
          %1228 = vmatprep.subr.mxu0 0.0
          %1229 = vmatpush1.msra.mxu0 0.0
          %1230 = vmatprep.subr.mxu0 0.0
          %1231 = vmatpush1.msra.mxu0 0.0
          %1232 = vmatprep.subr.mxu0 0.0
          %1233 = vmatpush1.msra.mxu0 0.0
          %1234 = vmatprep.subr.mxu0 0.0
          %1235 = vmatpush1.msra.mxu0 0.0
          %1236 = vmatprep.subr.mxu0 0.0
          %1237 = vmatpush1.msra.mxu0 0.0
          %1238 = vmatprep.subr.mxu0 0.0
          %1239 = vmatpush1.msra.mxu0 0.0
          %1240 = vmatprep.subr.mxu0 0.0
          %1241 = vmatpush1.msra.mxu0 0.0
          %1242 = vmatprep.subr.mxu0 0.0
          %1243 = vmatpush1.msra.mxu0 0.0
          %1244 = vmatprep.subr.mxu0 0.0
          %1245 = vmatpush1.msra.mxu0 0.0
          %1246 = vmatprep.subr.mxu0 0.0
          %1247 = vmatpush1.msra.mxu0 0.0
          %1248 = vmatprep.subr.mxu0 0.0
          %1249 = vmatpush1.msra.mxu0 0.0
          %1250 = vmatprep.subr.mxu0 0.0
          %1251 = vmatpush1.msra.mxu0 0.0
          %1252 = vmatprep.subr.mxu0 0.0
          %1253 = vmatpush1.msra.mxu0 0.0
          %1254 = vmatprep.subr.mxu0 0.0
          %1255 = vmatpush1.msra.mxu0 0.0
          %1256 = vmatprep.subr.mxu0 0.0
          %1257 = vmatpush1.msra.mxu0 0.0
          %1258 = vmatprep.subr.mxu0 0.0
          %1259 = vmatpush1.msra.mxu0 0.0
          %1260 = vmatprep.subr.mxu0 0.0
          %1261 = vmatpush1.msra.mxu0 0.0
          %1262 = vmatprep.subr.mxu0 0.0
          %1263 = vmatpush1.msra.mxu0 0.0
          %1264 = vmatprep.subr.mxu0 0.0
          %1265 = vmatpush1.msra.mxu0 0.0
          %1266 = vmatprep.subr.mxu0 0.0
          %1267 = vmatpush1.msra.mxu0 0.0
          %1268 = vmatprep.subr.mxu0 0.0
          %1269 = vmatpush1.msra.mxu0 0.0
          %1270 = vmatprep.subr.mxu0 0.0
          %1271 = vmatpush1.msra.mxu0 0.0
          %1272 = vmatprep.mubr.f32.mxu0 0.0
          %v1273 = vand.u32 %v953, 4294901760
          %v1274 = vsub.f32 %v953, %v1273
          %v1275 = vand.u32 %v1274, 4294901760
          %1276 = vmatmul.mubr.f32.gmra.mrb[0].mxu0 %v1275
          %v1277 = vpop.f32.mrb[0].mxu0
          %v1278 = vadd.f32 %v1197, %v1277
          %v1279 = vpop.f32.mrb[0].mxu0
          %1280 = vmatprep.mubr.f32.mxu0 0.0
          %v1281 = vand.u32 %v956, 4294901760
          %v1282 = vsub.f32 %v956, %v1281
          %v1283 = vand.u32 %v1282, 4294901760
          %1284 = vmatmul.mubr.f32.gmra.mrb[0].mxu0 %v1283
          %v1285 = vpop.f32.mrb[0].mxu0
          %v1286 = vadd.f32 %v1204, %v1285
          %v1287 = vpop.f32.mrb[0].mxu0
          %1288 = vdwg.mxu0
          %1289 = vmatprep.subr.mxu0 0.0
          %v1290 = vand.u32 %v914, 4294901760
          %v1291 = vsub.f32 %v914, %v1290
          %v1292 = vand.u32 %v1291, 4294901760
          %1293 = vmatpush1.msra.mxu0 %v1292
          %1294 = vmatprep.subr.mxu0 0.0
          %1295 = vmatpush1.msra.mxu0 0.0
          %1296 = vmatprep.subr.mxu0 0.0
          %1297 = vmatpush1.msra.mxu0 0.0
          %1298 = vmatprep.subr.mxu0 0.0
          %1299 = vmatpush1.msra.mxu0 0.0
          %1300 = vmatprep.subr.mxu0 0.0
          %1301 = vmatpush1.msra.mxu0 0.0
          %1302 = vmatprep.subr.mxu0 0.0
          %1303 = vmatpush1.msra.mxu0 0.0
          %1304 = vmatprep.subr.mxu0 0.0
          %1305 = vmatpush1.msra.mxu0 0.0
          %1306 = vmatprep.subr.mxu0 0.0
          %1307 = vmatpush1.msra.mxu0 0.0
          %1308 = vmatprep.subr.mxu0 0.0
          %1309 = vmatpush1.msra.mxu0 0.0
          %1310 = vmatprep.subr.mxu0 0.0
          %1311 = vmatpush1.msra.mxu0 0.0
          %1312 = vmatprep.subr.mxu0 0.0
          %1313 = vmatpush1.msra.mxu0 0.0
          %1314 = vmatprep.subr.mxu0 0.0
          %1315 = vmatpush1.msra.mxu0 0.0
          %1316 = vmatprep.subr.mxu0 0.0
          %1317 = vmatpush1.msra.mxu0 0.0
          %1318 = vmatprep.subr.mxu0 0.0
          %1319 = vmatpush1.msra.mxu0 0.0
          %1320 = vmatprep.subr.mxu0 0.0
          %1321 = vmatpush1.msra.mxu0 0.0
          %1322 = vmatprep.subr.mxu0 0.0
          %1323 = vmatpush1.msra.mxu0 0.0
          %1324 = vmatprep.subr.mxu0 0.0
          %1325 = vmatpush1.msra.mxu0 0.0
          %1326 = vmatprep.subr.mxu0 0.0
          %1327 = vmatpush1.msra.mxu0 0.0
          %1328 = vmatprep.subr.mxu0 0.0
          %1329 = vmatpush1.msra.mxu0 0.0
          %1330 = vmatprep.subr.mxu0 0.0
          %1331 = vmatpush1.msra.mxu0 0.0
          %1332 = vmatprep.subr.mxu0 0.0
          %1333 = vmatpush1.msra.mxu0 0.0
          %1334 = vmatprep.subr.mxu0 0.0
          %1335 = vmatpush1.msra.mxu0 0.0
          %1336 = vmatprep.subr.mxu0 0.0
          %1337 = vmatpush1.msra.mxu0 0.0
          %1338 = vmatprep.subr.mxu0 0.0
          %1339 = vmatpush1.msra.mxu0 0.0
          %1340 = vmatprep.subr.mxu0 0.0
          %1341 = vmatpush1.msra.mxu0 0.0
          %1342 = vmatprep.subr.mxu0 0.0
          %1343 = vmatpush1.msra.mxu0 0.0
          %1344 = vmatprep.subr.mxu0 0.0
          %1345 = vmatpush1.msra.mxu0 0.0
          %1346 = vmatprep.subr.mxu0 0.0
          %1347 = vmatpush1.msra.mxu0 0.0
          %1348 = vmatprep.subr.mxu0 0.0
          %1349 = vmatpush1.msra.mxu0 0.0
          %1350 = vmatprep.subr.mxu0 0.0
          %1351 = vmatpush1.msra.mxu0 0.0
          %1352 = vmatprep.subr.mxu0 0.0
          %1353 = vmatpush1.msra.mxu0 0.0
          %1354 = vmatprep.subr.mxu0 0.0
          %1355 = vmatpush1.msra.mxu0 0.0
          %1356 = vmatprep.mubr.f32.mxu0 0.0
          %v1357 = vand.u32 %v953, 4294901760
          %1358 = vmatmul.mubr.f32.gmra.mrb[0].mxu0 %v1357
          %v1359 = vpop.f32.mrb[0].mxu0
          %v1360 = vadd.f32 %v1278, %v1359
          %v1361 = vpop.f32.mrb[0].mxu0
          %1362 = vmatprep.mubr.f32.mxu0 0.0
          %v1363 = vand.u32 %v956, 4294901760
          %1364 = vmatmul.mubr.f32.gmra.mrb[0].mxu0 %v1363
          %v1365 = vpop.f32.mrb[0].mxu0
          %v1366 = vadd.f32 %v1286, %v1365
          %v1367 = vpop.f32.mrb[0].mxu0
          %1368 = vdwg.mxu0
          %1369 = vmatprep.subr.mxu0 0.0
          %v1370 = vand.u32 %v914, 4294901760
          %1371 = vmatpush1.msra.mxu0 %v1370
          %1372 = vmatprep.subr.mxu0 0.0
          %1373 = vmatpush1.msra.mxu0 0.0
          %1374 = vmatprep.subr.mxu0 0.0
          %1375 = vmatpush1.msra.mxu0 0.0
          %1376 = vmatprep.subr.mxu0 0.0
          %1377 = vmatpush1.msra.mxu0 0.0
          %1378 = vmatprep.subr.mxu0 0.0
          %1379 = vmatpush1.msra.mxu0 0.0
          %1380 = vmatprep.subr.mxu0 0.0
          %1381 = vmatpush1.msra.mxu0 0.0
          %1382 = vmatprep.subr.mxu0 0.0
          %1383 = vmatpush1.msra.mxu0 0.0
          %1384 = vmatprep.subr.mxu0 0.0
          %1385 = vmatpush1.msra.mxu0 0.0
          %1386 = vmatprep.subr.mxu0 0.0
          %1387 = vmatpush1.msra.mxu0 0.0
          %1388 = vmatprep.subr.mxu0 0.0
          %1389 = vmatpush1.msra.mxu0 0.0
          %1390 = vmatprep.subr.mxu0 0.0
          %1391 = vmatpush1.msra.mxu0 0.0
          %1392 = vmatprep.subr.mxu0 0.0
          %1393 = vmatpush1.msra.mxu0 0.0
          %1394 = vmatprep.subr.mxu0 0.0
          %1395 = vmatpush1.msra.mxu0 0.0
          %1396 = vmatprep.subr.mxu0 0.0
          %1397 = vmatpush1.msra.mxu0 0.0
          %1398 = vmatprep.subr.mxu0 0.0
          %1399 = vmatpush1.msra.mxu0 0.0
          %1400 = vmatprep.subr.mxu0 0.0
          %1401 = vmatpush1.msra.mxu0 0.0
          %1402 = vmatprep.subr.mxu0 0.0
          %1403 = vmatpush1.msra.mxu0 0.0
          %1404 = vmatprep.subr.mxu0 0.0
          %1405 = vmatpush1.msra.mxu0 0.0
          %1406 = vmatprep.subr.mxu0 0.0
          %1407 = vmatpush1.msra.mxu0 0.0
          %1408 = vmatprep.subr.mxu0 0.0
          %1409 = vmatpush1.msra.mxu0 0.0
          %1410 = vmatprep.subr.mxu0 0.0
          %1411 = vmatpush1.msra.mxu0 0.0
          %1412 = vmatprep.subr.mxu0 0.0
          %1413 = vmatpush1.msra.mxu0 0.0
          %1414 = vmatprep.subr.mxu0 0.0
          %1415 = vmatpush1.msra.mxu0 0.0
          %1416 = vmatprep.subr.mxu0 0.0
          %1417 = vmatpush1.msra.mxu0 0.0
          %1418 = vmatprep.subr.mxu0 0.0
          %1419 = vmatpush1.msra.mxu0 0.0
          %1420 = vmatprep.subr.mxu0 0.0
          %1421 = vmatpush1.msra.mxu0 0.0
          %1422 = vmatprep.subr.mxu0 0.0
          %1423 = vmatpush1.msra.mxu0 0.0
          %1424 = vmatprep.subr.mxu0 0.0
          %1425 = vmatpush1.msra.mxu0 0.0
          %1426 = vmatprep.subr.mxu0 0.0
          %1427 = vmatpush1.msra.mxu0 0.0
          %1428 = vmatprep.subr.mxu0 0.0
          %1429 = vmatpush1.msra.mxu0 0.0
          %1430 = vmatprep.subr.mxu0 0.0
          %1431 = vmatpush1.msra.mxu0 0.0
          %1432 = vmatprep.subr.mxu0 0.0
          %1433 = vmatpush1.msra.mxu0 0.0
          %1434 = vmatprep.mubr.f32.mxu0 0.0
          %v1435 = vand.u32 %v953, 4294901760
          %1436 = vmatmul.mubr.f32.gmra.mrb[0].mxu0 %v1435
          %v1437 = vpop.f32.mrb[0].mxu0
          %v1438 = vadd.f32 %v1360, %v1437
          %v1439 = vpop.f32.mrb[0].mxu0
          %1440 = vmatprep.mubr.f32.mxu0 0.0
          %v1441 = vand.u32 %v956, 4294901760
          %1442 = vmatmul.mubr.f32.gmra.mrb[0].mxu0 %v1441
          %v1443 = vpop.f32.mrb[0].mxu0
          %v1444 = vadd.f32 %v1366, %v1443
          %v1445 = vpop.f32.mrb[0].mxu0
          %1446 = vdwg.mxu0
          %1447 = vxpose.xlu0.b32.start [1/16] %v915, 128
          %1448 = vxpose.xlu0.b32.cont [2/16] 0.0, 128
          %1449 = vxpose.xlu0.b32.cont [3/16] 0.0, 128
          %1450 = vxpose.xlu0.b32.cont [4/16] 0.0, 128
          %1451 = vxpose.xlu0.b32.cont [5/16] 0.0, 128
          %1452 = vxpose.xlu0.b32.cont [6/16] 0.0, 128
          %1453 = vxpose.xlu0.b32.cont [7/16] 0.0, 128
          %1454 = vxpose.xlu0.b32.cont [8/16] 0.0, 128
          %1455 = vxpose.xlu0.b32.cont [9/16] 0.0, 128
          %1456 = vxpose.xlu0.b32.cont [10/16] 0.0, 128
          %1457 = vxpose.xlu0.b32.cont [11/16] 0.0, 128
          %1458 = vxpose.xlu0.b32.cont [12/16] 0.0, 128
          %1459 = vxpose.xlu0.b32.cont [13/16] 0.0, 128
          %1460 = vxpose.xlu0.b32.cont [14/16] 0.0, 128
          %1461 = vxpose.xlu0.b32.cont [15/16] 0.0, 128
          %1462 = vxpose.xlu0.b32.end [16/16] 0.0, 128
          %v1463 = vpop.trf.xlu0
          %v1464 = vpop.trf.xlu0
          %v1465 = vpop.trf.xlu0
          %v1466 = vpop.trf.xlu0
          %v1467 = vpop.trf.xlu0
          %v1468 = vpop.trf.xlu0
          %v1469 = vpop.trf.xlu0
          %v1470 = vpop.trf.xlu0
          %v1471 = vpop.trf.xlu0
          %v1472 = vpop.trf.xlu0
          %v1473 = vpop.trf.xlu0
          %v1474 = vpop.trf.xlu0
          %v1475 = vpop.trf.xlu0
          %v1476 = vpop.trf.xlu0
          %v1477 = vpop.trf.xlu0
          %v1478 = vpop.trf.xlu0
          %v1480 = vsel %vm951, %v1463, 0
          %v1483 = vsel %vm951, %v1464, 0
          %1485 = vmatprep.subr.mxu0 0.0
          %v1486 = vand.u32 %v888, 4294901760
          %1487 = vmatpush1.msra.mxu0 %v1486
          %1488 = vmatprep.subr.mxu0 0.0
          %1489 = vmatpush1.msra.mxu0 0.0
          %1490 = vmatprep.subr.mxu0 0.0
          %1491 = vmatpush1.msra.mxu0 0.0
          %1492 = vmatprep.subr.mxu0 0.0
          %1493 = vmatpush1.msra.mxu0 0.0
          %1494 = vmatprep.subr.mxu0 0.0
          %1495 = vmatpush1.msra.mxu0 0.0
          %1496 = vmatprep.subr.mxu0 0.0
          %1497 = vmatpush1.msra.mxu0 0.0
          %1498 = vmatprep.subr.mxu0 0.0
          %1499 = vmatpush1.msra.mxu0 0.0
          %1500 = vmatprep.subr.mxu0 0.0
          %1501 = vmatpush1.msra.mxu0 0.0
          %1502 = vmatprep.subr.mxu0 0.0
          %1503 = vmatpush1.msra.mxu0 0.0
          %1504 = vmatprep.subr.mxu0 0.0
          %1505 = vmatpush1.msra.mxu0 0.0
          %1506 = vmatprep.subr.mxu0 0.0
          %1507 = vmatpush1.msra.mxu0 0.0
          %1508 = vmatprep.subr.mxu0 0.0
          %1509 = vmatpush1.msra.mxu0 0.0
          %1510 = vmatprep.subr.mxu0 0.0
          %1511 = vmatpush1.msra.mxu0 0.0
          %1512 = vmatprep.subr.mxu0 0.0
          %1513 = vmatpush1.msra.mxu0 0.0
          %1514 = vmatprep.subr.mxu0 0.0
          %1515 = vmatpush1.msra.mxu0 0.0
          %1516 = vmatprep.subr.mxu0 0.0
          %1517 = vmatpush1.msra.mxu0 0.0
          %1518 = vmatprep.subr.mxu0 0.0
          %1519 = vmatpush1.msra.mxu0 0.0
          %1520 = vmatprep.subr.mxu0 0.0
          %1521 = vmatpush1.msra.mxu0 0.0
          %1522 = vmatprep.subr.mxu0 0.0
          %1523 = vmatpush1.msra.mxu0 0.0
          %1524 = vmatprep.subr.mxu0 0.0
          %1525 = vmatpush1.msra.mxu0 0.0
          %1526 = vmatprep.subr.mxu0 0.0
          %1527 = vmatpush1.msra.mxu0 0.0
          %1528 = vmatprep.subr.mxu0 0.0
          %1529 = vmatpush1.msra.mxu0 0.0
          %1530 = vmatprep.subr.mxu0 0.0
          %1531 = vmatpush1.msra.mxu0 0.0
          %1532 = vmatprep.subr.mxu0 0.0
          %1533 = vmatpush1.msra.mxu0 0.0
          %1534 = vmatprep.subr.mxu0 0.0
          %1535 = vmatpush1.msra.mxu0 0.0
          %1536 = vmatprep.subr.mxu0 0.0
          %1537 = vmatpush1.msra.mxu0 0.0
          %1538 = vmatprep.subr.mxu0 0.0
          %1539 = vmatpush1.msra.mxu0 0.0
          %1540 = vmatprep.subr.mxu0 0.0
          %1541 = vmatpush1.msra.mxu0 0.0
          %1542 = vmatprep.subr.mxu0 0.0
          %1543 = vmatpush1.msra.mxu0 0.0
          %1544 = vmatprep.subr.mxu0 0.0
          %1545 = vmatpush1.msra.mxu0 0.0
          %1546 = vmatprep.subr.mxu0 0.0
          %1547 = vmatpush1.msra.mxu0 0.0
          %1548 = vmatprep.subr.mxu0 0.0
          %1549 = vmatpush1.msra.mxu0 0.0
          %1550 = vmatprep.mubr.f32.mxu0 0.0
          %v1551 = vand.u32 %v1480, 4294901760
          %v1552 = vsub.f32 %v1480, %v1551
          %v1553 = vand.u32 %v1552, 4294901760
          %v1554 = vsub.f32 %v1552, %v1553
          %v1555 = vand.u32 %v1554, 4294901760
          %1556 = vmatmul.mubr.f32.gmra.mrb[0].mxu0 %v1555
          %v1557 = vpop.f32.mrb[0].mxu0
          %v1558 = vadd.f32 %v1438, %v1557
          %v1559 = vpop.f32.mrb[0].mxu0
          %1560 = vmatprep.mubr.f32.mxu0 0.0
          %v1561 = vand.u32 %v1483, 4294901760
          %v1562 = vsub.f32 %v1483, %v1561
          %v1563 = vand.u32 %v1562, 4294901760
          %v1564 = vsub.f32 %v1562, %v1563
          %v1565 = vand.u32 %v1564, 4294901760
          %1566 = vmatmul.mubr.f32.gmra.mrb[0].mxu0 %v1565
          %v1567 = vpop.f32.mrb[0].mxu0
          %v1568 = vadd.f32 %v1444, %v1567
          %v1569 = vpop.f32.mrb[0].mxu0
          %1570 = vdwg.mxu0
          %1571 = vmatprep.subr.mxu0 0.0
          %v1572 = vand.u32 %v888, 4294901760
          %v1573 = vsub.f32 %v888, %v1572
          %v1574 = vand.u32 %v1573, 4294901760
          %v1575 = vsub.f32 %v1573, %v1574
          %v1576 = vand.u32 %v1575, 4294901760
          %1577 = vmatpush1.msra.mxu0 %v1576
          %1578 = vmatprep.subr.mxu0 0.0
          %1579 = vmatpush1.msra.mxu0 0.0
          %1580 = vmatprep.subr.mxu0 0.0
          %1581 = vmatpush1.msra.mxu0 0.0
          %1582 = vmatprep.subr.mxu0 0.0
          %1583 = vmatpush1.msra.mxu0 0.0
          %1584 = vmatprep.subr.mxu0 0.0
          %1585 = vmatpush1.msra.mxu0 0.0
          %1586 = vmatprep.subr.mxu0 0.0
          %1587 = vmatpush1.msra.mxu0 0.0
          %1588 = vmatprep.subr.mxu0 0.0
          %1589 = vmatpush1.msra.mxu0 0.0
          %1590 = vmatprep.subr.mxu0 0.0
          %1591 = vmatpush1.msra.mxu0 0.0
          %1592 = vmatprep.subr.mxu0 0.0
          %1593 = vmatpush1.msra.mxu0 0.0
          %1594 = vmatprep.subr.mxu0 0.0
          %1595 = vmatpush1.msra.mxu0 0.0
          %1596 = vmatprep.subr.mxu0 0.0
          %1597 = vmatpush1.msra.mxu0 0.0
          %1598 = vmatprep.subr.mxu0 0.0
          %1599 = vmatpush1.msra.mxu0 0.0
          %1600 = vmatprep.subr.mxu0 0.0
          %1601 = vmatpush1.msra.mxu0 0.0
          %1602 = vmatprep.subr.mxu0 0.0
          %1603 = vmatpush1.msra.mxu0 0.0
          %1604 = vmatprep.subr.mxu0 0.0
          %1605 = vmatpush1.msra.mxu0 0.0
          %1606 = vmatprep.subr.mxu0 0.0
          %1607 = vmatpush1.msra.mxu0 0.0
          %1608 = vmatprep.subr.mxu0 0.0
          %1609 = vmatpush1.msra.mxu0 0.0
          %1610 = vmatprep.subr.mxu0 0.0
          %1611 = vmatpush1.msra.mxu0 0.0
          %1612 = vmatprep.subr.mxu0 0.0
          %1613 = vmatpush1.msra.mxu0 0.0
          %1614 = vmatprep.subr.mxu0 0.0
          %1615 = vmatpush1.msra.mxu0 0.0
          %1616 = vmatprep.subr.mxu0 0.0
          %1617 = vmatpush1.msra.mxu0 0.0
          %1618 = vmatprep.subr.mxu0 0.0
          %1619 = vmatpush1.msra.mxu0 0.0
          %1620 = vmatprep.subr.mxu0 0.0
          %1621 = vmatpush1.msra.mxu0 0.0
          %1622 = vmatprep.subr.mxu0 0.0
          %1623 = vmatpush1.msra.mxu0 0.0
          %1624 = vmatprep.subr.mxu0 0.0
          %1625 = vmatpush1.msra.mxu0 0.0
          %1626 = vmatprep.subr.mxu0 0.0
          %1627 = vmatpush1.msra.mxu0 0.0
          %1628 = vmatprep.subr.mxu0 0.0
          %1629 = vmatpush1.msra.mxu0 0.0
          %1630 = vmatprep.subr.mxu0 0.0
          %1631 = vmatpush1.msra.mxu0 0.0
          %1632 = vmatprep.subr.mxu0 0.0
          %1633 = vmatpush1.msra.mxu0 0.0
          %1634 = vmatprep.subr.mxu0 0.0
          %1635 = vmatpush1.msra.mxu0 0.0
          %1636 = vmatprep.subr.mxu0 0.0
          %1637 = vmatpush1.msra.mxu0 0.0
          %1638 = vmatprep.subr.mxu0 0.0
          %1639 = vmatpush1.msra.mxu0 0.0
          %1640 = vmatprep.mubr.f32.mxu0 0.0
          %v1641 = vand.u32 %v1480, 4294901760
          %1642 = vmatmul.mubr.f32.gmra.mrb[0].mxu0 %v1641
          %v1643 = vpop.f32.mrb[0].mxu0
          %v1644 = vadd.f32 %v1558, %v1643
          %v1645 = vpop.f32.mrb[0].mxu0
          %1646 = vmatprep.mubr.f32.mxu0 0.0
          %v1647 = vand.u32 %v1483, 4294901760
          %1648 = vmatmul.mubr.f32.gmra.mrb[0].mxu0 %v1647
          %v1649 = vpop.f32.mrb[0].mxu0
          %v1650 = vadd.f32 %v1568, %v1649
          %v1651 = vpop.f32.mrb[0].mxu0
          %1652 = vdwg.mxu0
          %1653 = vmatprep.subr.mxu0 0.0
          %v1654 = vand.u32 %v888, 4294901760
          %v1655 = vsub.f32 %v888, %v1654
          %1656 = vmatpush1.msra.mxu0 %v1655
          %1657 = vmatprep.subr.mxu0 0.0
          %1658 = vmatpush1.msra.mxu0 0.0
          %1659 = vmatprep.subr.mxu0 0.0
          %1660 = vmatpush1.msra.mxu0 0.0
          %1661 = vmatprep.subr.mxu0 0.0
          %1662 = vmatpush1.msra.mxu0 0.0
          %1663 = vmatprep.subr.mxu0 0.0
          %1664 = vmatpush1.msra.mxu0 0.0
          %1665 = vmatprep.subr.mxu0 0.0
          %1666 = vmatpush1.msra.mxu0 0.0
          %1667 = vmatprep.subr.mxu0 0.0
          %1668 = vmatpush1.msra.mxu0 0.0
          %1669 = vmatprep.subr.mxu0 0.0
          %1670 = vmatpush1.msra.mxu0 0.0
          %1671 = vmatprep.subr.mxu0 0.0
          %1672 = vmatpush1.msra.mxu0 0.0
          %1673 = vmatprep.subr.mxu0 0.0
          %1674 = vmatpush1.msra.mxu0 0.0
          %1675 = vmatprep.subr.mxu0 0.0
          %1676 = vmatpush1.msra.mxu0 0.0
          %1677 = vmatprep.subr.mxu0 0.0
          %1678 = vmatpush1.msra.mxu0 0.0
          %1679 = vmatprep.subr.mxu0 0.0
          %1680 = vmatpush1.msra.mxu0 0.0
          %1681 = vmatprep.subr.mxu0 0.0
          %1682 = vmatpush1.msra.mxu0 0.0
          %1683 = vmatprep.subr.mxu0 0.0
          %1684 = vmatpush1.msra.mxu0 0.0
          %1685 = vmatprep.subr.mxu0 0.0
          %1686 = vmatpush1.msra.mxu0 0.0
          %1687 = vmatprep.subr.mxu0 0.0
          %1688 = vmatpush1.msra.mxu0 0.0
          %1689 = vmatprep.subr.mxu0 0.0
          %1690 = vmatpush1.msra.mxu0 0.0
          %1691 = vmatprep.subr.mxu0 0.0
          %1692 = vmatpush1.msra.mxu0 0.0
          %1693 = vmatprep.subr.mxu0 0.0
          %1694 = vmatpush1.msra.mxu0 0.0
          %1695 = vmatprep.subr.mxu0 0.0
          %1696 = vmatpush1.msra.mxu0 0.0
          %1697 = vmatprep.subr.mxu0 0.0
          %1698 = vmatpush1.msra.mxu0 0.0
          %1699 = vmatprep.subr.mxu0 0.0
          %1700 = vmatpush1.msra.mxu0 0.0
          %1701 = vmatprep.subr.mxu0 0.0
          %1702 = vmatpush1.msra.mxu0 0.0
          %1703 = vmatprep.subr.mxu0 0.0
          %1704 = vmatpush1.msra.mxu0 0.0
          %1705 = vmatprep.subr.mxu0 0.0
          %1706 = vmatpush1.msra.mxu0 0.0
          %1707 = vmatprep.subr.mxu0 0.0
          %1708 = vmatpush1.msra.mxu0 0.0
          %1709 = vmatprep.subr.mxu0 0.0
          %1710 = vmatpush1.msra.mxu0 0.0
          %1711 = vmatprep.subr.mxu0 0.0
          %1712 = vmatpush1.msra.mxu0 0.0
          %1713 = vmatprep.subr.mxu0 0.0
          %1714 = vmatpush1.msra.mxu0 0.0
          %1715 = vmatprep.subr.mxu0 0.0
          %1716 = vmatpush1.msra.mxu0 0.0
          %1717 = vmatprep.subr.mxu0 0.0
          %1718 = vmatpush1.msra.mxu0 0.0
          %1719 = vmatprep.mubr.f32.mxu0 0.0
          %v1720 = vand.u32 %v1480, 4294901760
          %v1721 = vsub.f32 %v1480, %v1720
          %1722 = vmatmul.mubr.f32.gmra.mrb[0].mxu0 %v1721
          %v1723 = vpop.f32.mrb[0].mxu0
          %v1724 = vadd.f32 %v1644, %v1723
          %v1725 = vpop.f32.mrb[0].mxu0
          %1726 = vmatprep.mubr.f32.mxu0 0.0
          %v1727 = vand.u32 %v1483, 4294901760
          %v1728 = vsub.f32 %v1483, %v1727
          %1729 = vmatmul.mubr.f32.gmra.mrb[0].mxu0 %v1728
          %v1730 = vpop.f32.mrb[0].mxu0
          %v1731 = vadd.f32 %v1650, %v1730
          %v1732 = vpop.f32.mrb[0].mxu0
          %1733 = vdwg.mxu0
          %1734 = vmatprep.subr.mxu0 0.0
          %v1735 = vand.u32 %v888, 4294901760
          %1736 = vmatpush1.msra.mxu0 %v1735
          %1737 = vmatprep.subr.mxu0 0.0
          %1738 = vmatpush1.msra.mxu0 0.0
          %1739 = vmatprep.subr.mxu0 0.0
          %1740 = vmatpush1.msra.mxu0 0.0
          %1741 = vmatprep.subr.mxu0 0.0
          %1742 = vmatpush1.msra.mxu0 0.0
          %1743 = vmatprep.subr.mxu0 0.0
          %1744 = vmatpush1.msra.mxu0 0.0
          %1745 = vmatprep.subr.mxu0 0.0
          %1746 = vmatpush1.msra.mxu0 0.0
          %1747 = vmatprep.subr.mxu0 0.0
          %1748 = vmatpush1.msra.mxu0 0.0
          %1749 = vmatprep.subr.mxu0 0.0
          %1750 = vmatpush1.msra.mxu0 0.0
          %1751 = vmatprep.subr.mxu0 0.0
          %1752 = vmatpush1.msra.mxu0 0.0
          %1753 = vmatprep.subr.mxu0 0.0
          %1754 = vmatpush1.msra.mxu0 0.0
          %1755 = vmatprep.subr.mxu0 0.0
          %1756 = vmatpush1.msra.mxu0 0.0
          %1757 = vmatprep.subr.mxu0 0.0
          %1758 = vmatpush1.msra.mxu0 0.0
          %1759 = vmatprep.subr.mxu0 0.0
          %1760 = vmatpush1.msra.mxu0 0.0
          %1761 = vmatprep.subr.mxu0 0.0
          %1762 = vmatpush1.msra.mxu0 0.0
          %1763 = vmatprep.subr.mxu0 0.0
          %1764 = vmatpush1.msra.mxu0 0.0
          %1765 = vmatprep.subr.mxu0 0.0
          %1766 = vmatpush1.msra.mxu0 0.0
          %1767 = vmatprep.subr.mxu0 0.0
          %1768 = vmatpush1.msra.mxu0 0.0
          %1769 = vmatprep.subr.mxu0 0.0
          %1770 = vmatpush1.msra.mxu0 0.0
          %1771 = vmatprep.subr.mxu0 0.0
          %1772 = vmatpush1.msra.mxu0 0.0
          %1773 = vmatprep.subr.mxu0 0.0
          %1774 = vmatpush1.msra.mxu0 0.0
          %1775 = vmatprep.subr.mxu0 0.0
          %1776 = vmatpush1.msra.mxu0 0.0
          %1777 = vmatprep.subr.mxu0 0.0
          %1778 = vmatpush1.msra.mxu0 0.0
          %1779 = vmatprep.subr.mxu0 0.0
          %1780 = vmatpush1.msra.mxu0 0.0
          %1781 = vmatprep.subr.mxu0 0.0
          %1782 = vmatpush1.msra.mxu0 0.0
          %1783 = vmatprep.subr.mxu0 0.0
          %1784 = vmatpush1.msra.mxu0 0.0
          %1785 = vmatprep.subr.mxu0 0.0
          %1786 = vmatpush1.msra.mxu0 0.0
          %1787 = vmatprep.subr.mxu0 0.0
          %1788 = vmatpush1.msra.mxu0 0.0
          %1789 = vmatprep.subr.mxu0 0.0
          %1790 = vmatpush1.msra.mxu0 0.0
          %1791 = vmatprep.subr.mxu0 0.0
          %1792 = vmatpush1.msra.mxu0 0.0
          %1793 = vmatprep.subr.mxu0 0.0
          %1794 = vmatpush1.msra.mxu0 0.0
          %1795 = vmatprep.subr.mxu0 0.0
          %1796 = vmatpush1.msra.mxu0 0.0
          %1797 = vmatprep.subr.mxu0 0.0
          %1798 = vmatpush1.msra.mxu0 0.0
          %1799 = vmatprep.mubr.f32.mxu0 0.0
          %v1800 = vand.u32 %v1480, 4294901760
          %v1801 = vsub.f32 %v1480, %v1800
          %v1802 = vand.u32 %v1801, 4294901760
          %1803 = vmatmul.mubr.f32.gmra.mrb[0].mxu0 %v1802
          %v1804 = vpop.f32.mrb[0].mxu0
          %v1805 = vadd.f32 %v1724, %v1804
          %v1806 = vpop.f32.mrb[0].mxu0
          %1807 = vmatprep.mubr.f32.mxu0 0.0
          %v1808 = vand.u32 %v1483, 4294901760
          %v1809 = vsub.f32 %v1483, %v1808
          %v1810 = vand.u32 %v1809, 4294901760
          %1811 = vmatmul.mubr.f32.gmra.mrb[0].mxu0 %v1810
          %v1812 = vpop.f32.mrb[0].mxu0
          %v1813 = vadd.f32 %v1731, %v1812
          %v1814 = vpop.f32.mrb[0].mxu0
          %1815 = vdwg.mxu0
          %1816 = vmatprep.subr.mxu0 0.0
          %v1817 = vand.u32 %v888, 4294901760
          %v1818 = vsub.f32 %v888, %v1817
          %v1819 = vand.u32 %v1818, 4294901760
          %1820 = vmatpush1.msra.mxu0 %v1819
          %1821 = vmatprep.subr.mxu0 0.0
          %1822 = vmatpush1.msra.mxu0 0.0
          %1823 = vmatprep.subr.mxu0 0.0
          %1824 = vmatpush1.msra.mxu0 0.0
          %1825 = vmatprep.subr.mxu0 0.0
          %1826 = vmatpush1.msra.mxu0 0.0
          %1827 = vmatprep.subr.mxu0 0.0
          %1828 = vmatpush1.msra.mxu0 0.0
          %1829 = vmatprep.subr.mxu0 0.0
          %1830 = vmatpush1.msra.mxu0 0.0
          %1831 = vmatprep.subr.mxu0 0.0
          %1832 = vmatpush1.msra.mxu0 0.0
          %1833 = vmatprep.subr.mxu0 0.0
          %1834 = vmatpush1.msra.mxu0 0.0
          %1835 = vmatprep.subr.mxu0 0.0
          %1836 = vmatpush1.msra.mxu0 0.0
          %1837 = vmatprep.subr.mxu0 0.0
          %1838 = vmatpush1.msra.mxu0 0.0
          %1839 = vmatprep.subr.mxu0 0.0
          %1840 = vmatpush1.msra.mxu0 0.0
          %1841 = vmatprep.subr.mxu0 0.0
          %1842 = vmatpush1.msra.mxu0 0.0
          %1843 = vmatprep.subr.mxu0 0.0
          %1844 = vmatpush1.msra.mxu0 0.0
          %1845 = vmatprep.subr.mxu0 0.0
          %1846 = vmatpush1.msra.mxu0 0.0
          %1847 = vmatprep.subr.mxu0 0.0
          %1848 = vmatpush1.msra.mxu0 0.0
          %1849 = vmatprep.subr.mxu0 0.0
          %1850 = vmatpush1.msra.mxu0 0.0
          %1851 = vmatprep.subr.mxu0 0.0
          %1852 = vmatpush1.msra.mxu0 0.0
          %1853 = vmatprep.subr.mxu0 0.0
          %1854 = vmatpush1.msra.mxu0 0.0
          %1855 = vmatprep.subr.mxu0 0.0
          %1856 = vmatpush1.msra.mxu0 0.0
          %1857 = vmatprep.subr.mxu0 0.0
          %1858 = vmatpush1.msra.mxu0 0.0
          %1859 = vmatprep.subr.mxu0 0.0
          %1860 = vmatpush1.msra.mxu0 0.0
          %1861 = vmatprep.subr.mxu0 0.0
          %1862 = vmatpush1.msra.mxu0 0.0
          %1863 = vmatprep.subr.mxu0 0.0
          %1864 = vmatpush1.msra.mxu0 0.0
          %1865 = vmatprep.subr.mxu0 0.0
          %1866 = vmatpush1.msra.mxu0 0.0
          %1867 = vmatprep.subr.mxu0 0.0
          %1868 = vmatpush1.msra.mxu0 0.0
          %1869 = vmatprep.subr.mxu0 0.0
          %1870 = vmatpush1.msra.mxu0 0.0
          %1871 = vmatprep.subr.mxu0 0.0
          %1872 = vmatpush1.msra.mxu0 0.0
          %1873 = vmatprep.subr.mxu0 0.0
          %1874 = vmatpush1.msra.mxu0 0.0
          %1875 = vmatprep.subr.mxu0 0.0
          %1876 = vmatpush1.msra.mxu0 0.0
          %1877 = vmatprep.subr.mxu0 0.0
          %1878 = vmatpush1.msra.mxu0 0.0
          %1879 = vmatprep.subr.mxu0 0.0
          %1880 = vmatpush1.msra.mxu0 0.0
          %1881 = vmatprep.subr.mxu0 0.0
          %1882 = vmatpush1.msra.mxu0 0.0
          %1883 = vmatprep.mubr.f32.mxu0 0.0
          %v1884 = vand.u32 %v1480, 4294901760
          %1885 = vmatmul.mubr.f32.gmra.mrb[0].mxu0 %v1884
          %v1886 = vpop.f32.mrb[0].mxu0
          %v1887 = vadd.f32 %v1805, %v1886
          %v1888 = vpop.f32.mrb[0].mxu0
          %1889 = vmatprep.mubr.f32.mxu0 0.0
          %v1890 = vand.u32 %v1483, 4294901760
          %1891 = vmatmul.mubr.f32.gmra.mrb[0].mxu0 %v1890
          %v1892 = vpop.f32.mrb[0].mxu0
          %v1893 = vadd.f32 %v1813, %v1892
          %v1894 = vpop.f32.mrb[0].mxu0
          %1895 = vdwg.mxu0
          %1896 = vmatprep.subr.mxu0 0.0
          %v1897 = vand.u32 %v888, 4294901760
          %1898 = vmatpush1.msra.mxu0 %v1897
          %1899 = vmatprep.subr.mxu0 0.0
          %1900 = vmatpush1.msra.mxu0 0.0
          %1901 = vmatprep.subr.mxu0 0.0
          %1902 = vmatpush1.msra.mxu0 0.0
          %1903 = vmatprep.subr.mxu0 0.0
          %1904 = vmatpush1.msra.mxu0 0.0
          %1905 = vmatprep.subr.mxu0 0.0
          %1906 = vmatpush1.msra.mxu0 0.0
          %1907 = vmatprep.subr.mxu0 0.0
          %1908 = vmatpush1.msra.mxu0 0.0
          %1909 = vmatprep.subr.mxu0 0.0
          %1910 = vmatpush1.msra.mxu0 0.0
          %1911 = vmatprep.subr.mxu0 0.0
          %1912 = vmatpush1.msra.mxu0 0.0
          %1913 = vmatprep.subr.mxu0 0.0
          %1914 = vmatpush1.msra.mxu0 0.0
          %1915 = vmatprep.subr.mxu0 0.0
          %1916 = vmatpush1.msra.mxu0 0.0
          %1917 = vmatprep.subr.mxu0 0.0
          %1918 = vmatpush1.msra.mxu0 0.0
          %1919 = vmatprep.subr.mxu0 0.0
          %1920 = vmatpush1.msra.mxu0 0.0
          %1921 = vmatprep.subr.mxu0 0.0
          %1922 = vmatpush1.msra.mxu0 0.0
          %1923 = vmatprep.subr.mxu0 0.0
          %1924 = vmatpush1.msra.mxu0 0.0
          %1925 = vmatprep.subr.mxu0 0.0
          %1926 = vmatpush1.msra.mxu0 0.0
          %1927 = vmatprep.subr.mxu0 0.0
          %1928 = vmatpush1.msra.mxu0 0.0
          %1929 = vmatprep.subr.mxu0 0.0
          %1930 = vmatpush1.msra.mxu0 0.0
          %1931 = vmatprep.subr.mxu0 0.0
          %1932 = vmatpush1.msra.mxu0 0.0
          %1933 = vmatprep.subr.mxu0 0.0
          %1934 = vmatpush1.msra.mxu0 0.0
          %1935 = vmatprep.subr.mxu0 0.0
          %1936 = vmatpush1.msra.mxu0 0.0
          %1937 = vmatprep.subr.mxu0 0.0
          %1938 = vmatpush1.msra.mxu0 0.0
          %1939 = vmatprep.subr.mxu0 0.0
          %1940 = vmatpush1.msra.mxu0 0.0
          %1941 = vmatprep.subr.mxu0 0.0
          %1942 = vmatpush1.msra.mxu0 0.0
          %1943 = vmatprep.subr.mxu0 0.0
          %1944 = vmatpush1.msra.mxu0 0.0
          %1945 = vmatprep.subr.mxu0 0.0
          %1946 = vmatpush1.msra.mxu0 0.0
          %1947 = vmatprep.subr.mxu0 0.0
          %1948 = vmatpush1.msra.mxu0 0.0
          %1949 = vmatprep.subr.mxu0 0.0
          %1950 = vmatpush1.msra.mxu0 0.0
          %1951 = vmatprep.subr.mxu0 0.0
          %1952 = vmatpush1.msra.mxu0 0.0
          %1953 = vmatprep.subr.mxu0 0.0
          %1954 = vmatpush1.msra.mxu0 0.0
          %1955 = vmatprep.subr.mxu0 0.0
          %1956 = vmatpush1.msra.mxu0 0.0
          %1957 = vmatprep.subr.mxu0 0.0
          %1958 = vmatpush1.msra.mxu0 0.0
          %1959 = vmatprep.subr.mxu0 0.0
          %1960 = vmatpush1.msra.mxu0 0.0
          %1961 = vmatprep.mubr.f32.mxu0 0.0
          %v1962 = vand.u32 %v1480, 4294901760
          %1963 = vmatmul.mubr.f32.gmra.mrb[0].mxu0 %v1962
          %v1964 = vpop.f32.mrb[0].mxu0
          %v1965 = vadd.f32 %v1887, %v1964
          %v1966 = vpop.f32.mrb[0].mxu0
          %1967 = vmatprep.mubr.f32.mxu0 0.0
          %v1968 = vand.u32 %v1483, 4294901760
          %1969 = vmatmul.mubr.f32.gmra.mrb[0].mxu0 %v1968
          %v1970 = vpop.f32.mrb[0].mxu0
          %v1971 = vadd.f32 %v1893, %v1970
          %v1972 = vpop.f32.mrb[0].mxu0
          %1973 = vdwg.mxu0
          %v1974 = vld [vmem:[%s2 + $0x10] sm:$0xff]
          %v1975 = vsub.f32 %v909, %v888
          %v1976 = vand.u32 2147483647, %v1975
          %1977 = vxpose.xlu0.b32.start [1/16] %v1974, 128
          %1978 = vxpose.xlu0.b32.cont [2/16] 0.0, 128
          %1979 = vxpose.xlu0.b32.cont [3/16] 0.0, 128
          %1980 = vxpose.xlu0.b32.cont [4/16] 0.0, 128
          %1981 = vxpose.xlu0.b32.cont [5/16] 0.0, 128
          %1982 = vxpose.xlu0.b32.cont [6/16] 0.0, 128
          %1983 = vxpose.xlu0.b32.cont [7/16] 0.0, 128
          %1984 = vxpose.xlu0.b32.cont [8/16] 0.0, 128
          %1985 = vxpose.xlu0.b32.cont [9/16] 0.0, 128
          %1986 = vxpose.xlu0.b32.cont [10/16] 0.0, 128
          %1987 = vxpose.xlu0.b32.cont [11/16] 0.0, 128
          %1988 = vxpose.xlu0.b32.cont [12/16] 0.0, 128
          %1989 = vxpose.xlu0.b32.cont [13/16] 0.0, 128
          %1990 = vxpose.xlu0.b32.cont [14/16] 0.0, 128
          %1991 = vxpose.xlu0.b32.cont [15/16] 0.0, 128
          %1992 = vxpose.xlu0.b32.end [16/16] 0.0, 128
          %v1993 = vpop.trf.xlu0
          %v1994 = vpop.trf.xlu0
          %v1995 = vpop.trf.xlu0
          %v1996 = vpop.trf.xlu0
          %v1997 = vpop.trf.xlu0
          %v1998 = vpop.trf.xlu0
          %v1999 = vpop.trf.xlu0
          %v2000 = vpop.trf.xlu0
          %v2001 = vpop.trf.xlu0
          %v2002 = vpop.trf.xlu0
          %v2003 = vpop.trf.xlu0
          %v2004 = vpop.trf.xlu0
          %v2005 = vpop.trf.xlu0
          %v2006 = vpop.trf.xlu0
          %v2007 = vpop.trf.xlu0
          %v2008 = vpop.trf.xlu0
          %v2010 = vsel %vm951, %v1993, 0
          %v2013 = vsel %vm951, %v1994, 0
          %2015 = vmatprep.subr.mxu0 0.0
          %v2016 = vand.u32 %v1976, 4294901760
          %2017 = vmatpush1.msra.mxu0 %v2016
          %2018 = vmatprep.subr.mxu0 0.0
          %2019 = vmatpush1.msra.mxu0 0.0
          %2020 = vmatprep.subr.mxu0 0.0
          %2021 = vmatpush1.msra.mxu0 0.0
          %2022 = vmatprep.subr.mxu0 0.0
          %2023 = vmatpush1.msra.mxu0 0.0
          %2024 = vmatprep.subr.mxu0 0.0
          %2025 = vmatpush1.msra.mxu0 0.0
          %2026 = vmatprep.subr.mxu0 0.0
          %2027 = vmatpush1.msra.mxu0 0.0
          %2028 = vmatprep.subr.mxu0 0.0
          %2029 = vmatpush1.msra.mxu0 0.0
          %2030 = vmatprep.subr.mxu0 0.0
          %2031 = vmatpush1.msra.mxu0 0.0
          %2032 = vmatprep.subr.mxu0 0.0
          %2033 = vmatpush1.msra.mxu0 0.0
          %2034 = vmatprep.subr.mxu0 0.0
          %2035 = vmatpush1.msra.mxu0 0.0
          %2036 = vmatprep.subr.mxu0 0.0
          %2037 = vmatpush1.msra.mxu0 0.0
          %2038 = vmatprep.subr.mxu0 0.0
          %2039 = vmatpush1.msra.mxu0 0.0
          %2040 = vmatprep.subr.mxu0 0.0
          %2041 = vmatpush1.msra.mxu0 0.0
          %2042 = vmatprep.subr.mxu0 0.0
          %2043 = vmatpush1.msra.mxu0 0.0
          %2044 = vmatprep.subr.mxu0 0.0
          %2045 = vmatpush1.msra.mxu0 0.0
          %2046 = vmatprep.subr.mxu0 0.0
          %2047 = vmatpush1.msra.mxu0 0.0
          %2048 = vmatprep.subr.mxu0 0.0
          %2049 = vmatpush1.msra.mxu0 0.0
          %2050 = vmatprep.subr.mxu0 0.0
          %2051 = vmatpush1.msra.mxu0 0.0
          %2052 = vmatprep.subr.mxu0 0.0
          %2053 = vmatpush1.msra.mxu0 0.0
          %2054 = vmatprep.subr.mxu0 0.0
          %2055 = vmatpush1.msra.mxu0 0.0
          %2056 = vmatprep.subr.mxu0 0.0
          %2057 = vmatpush1.msra.mxu0 0.0
          %2058 = vmatprep.subr.mxu0 0.0
          %2059 = vmatpush1.msra.mxu0 0.0
          %2060 = vmatprep.subr.mxu0 0.0
          %2061 = vmatpush1.msra.mxu0 0.0
          %2062 = vmatprep.subr.mxu0 0.0
          %2063 = vmatpush1.msra.mxu0 0.0
          %2064 = vmatprep.subr.mxu0 0.0
          %2065 = vmatpush1.msra.mxu0 0.0
          %2066 = vmatprep.subr.mxu0 0.0
          %2067 = vmatpush1.msra.mxu0 0.0
          %2068 = vmatprep.subr.mxu0 0.0
          %2069 = vmatpush1.msra.mxu0 0.0
          %2070 = vmatprep.subr.mxu0 0.0
          %2071 = vmatpush1.msra.mxu0 0.0
          %2072 = vmatprep.subr.mxu0 0.0
          %2073 = vmatpush1.msra.mxu0 0.0
          %2074 = vmatprep.subr.mxu0 0.0
          %2075 = vmatpush1.msra.mxu0 0.0
          %2076 = vmatprep.subr.mxu0 0.0
          %2077 = vmatpush1.msra.mxu0 0.0
          %2078 = vmatprep.subr.mxu0 0.0
          %2079 = vmatpush1.msra.mxu0 0.0
          %2080 = vmatprep.mubr.f32.mxu0 0.0
          %v2081 = vand.u32 %v2010, 4294901760
          %v2082 = vsub.f32 %v2010, %v2081
          %v2083 = vand.u32 %v2082, 4294901760
          %v2084 = vsub.f32 %v2082, %v2083
          %v2085 = vand.u32 %v2084, 4294901760
          %2086 = vmatmul.mubr.f32.gmra.mrb[0].mxu0 %v2085
          %v2087 = vpop.f32.mrb[0].mxu0
          %v2088 = vadd.f32 0.0, %v2087
          %v2089 = vpop.f32.mrb[0].mxu0
          %2090 = vmatprep.mubr.f32.mxu0 0.0
          %v2091 = vand.u32 %v2013, 4294901760
          %v2092 = vsub.f32 %v2013, %v2091
          %v2093 = vand.u32 %v2092, 4294901760
          %v2094 = vsub.f32 %v2092, %v2093
          %v2095 = vand.u32 %v2094, 4294901760
          %2096 = vmatmul.mubr.f32.gmra.mrb[0].mxu0 %v2095
          %v2097 = vpop.f32.mrb[0].mxu0
          %v2098 = vadd.f32 0.0, %v2097
          %v2099 = vpop.f32.mrb[0].mxu0
          %2100 = vdwg.mxu0
          %2101 = vmatprep.subr.mxu0 0.0
          %v2102 = vand.u32 %v1976, 4294901760
          %v2103 = vsub.f32 %v1976, %v2102
          %v2104 = vand.u32 %v2103, 4294901760
          %v2105 = vsub.f32 %v2103, %v2104
          %v2106 = vand.u32 %v2105, 4294901760
          %2107 = vmatpush1.msra.mxu0 %v2106
          %2108 = vmatprep.subr.mxu0 0.0
          %2109 = vmatpush1.msra.mxu0 0.0
          %2110 = vmatprep.subr.mxu0 0.0
          %2111 = vmatpush1.msra.mxu0 0.0
          %2112 = vmatprep.subr.mxu0 0.0
          %2113 = vmatpush1.msra.mxu0 0.0
          %2114 = vmatprep.subr.mxu0 0.0
          %2115 = vmatpush1.msra.mxu0 0.0
          %2116 = vmatprep.subr.mxu0 0.0
          %2117 = vmatpush1.msra.mxu0 0.0
          %2118 = vmatprep.subr.mxu0 0.0
          %2119 = vmatpush1.msra.mxu0 0.0
          %2120 = vmatprep.subr.mxu0 0.0
          %2121 = vmatpush1.msra.mxu0 0.0
          %2122 = vmatprep.subr.mxu0 0.0
          %2123 = vmatpush1.msra.mxu0 0.0
          %2124 = vmatprep.subr.mxu0 0.0
          %2125 = vmatpush1.msra.mxu0 0.0
          %2126 = vmatprep.subr.mxu0 0.0
          %2127 = vmatpush1.msra.mxu0 0.0
          %2128 = vmatprep.subr.mxu0 0.0
          %2129 = vmatpush1.msra.mxu0 0.0
          %2130 = vmatprep.subr.mxu0 0.0
          %2131 = vmatpush1.msra.mxu0 0.0
          %2132 = vmatprep.subr.mxu0 0.0
          %2133 = vmatpush1.msra.mxu0 0.0
          %2134 = vmatprep.subr.mxu0 0.0
          %2135 = vmatpush1.msra.mxu0 0.0
          %2136 = vmatprep.subr.mxu0 0.0
          %2137 = vmatpush1.msra.mxu0 0.0
          %2138 = vmatprep.subr.mxu0 0.0
          %2139 = vmatpush1.msra.mxu0 0.0
          %2140 = vmatprep.subr.mxu0 0.0
          %2141 = vmatpush1.msra.mxu0 0.0
          %2142 = vmatprep.subr.mxu0 0.0
          %2143 = vmatpush1.msra.mxu0 0.0
          %2144 = vmatprep.subr.mxu0 0.0
          %2145 = vmatpush1.msra.mxu0 0.0
          %2146 = vmatprep.subr.mxu0 0.0
          %2147 = vmatpush1.msra.mxu0 0.0
          %2148 = vmatprep.subr.mxu0 0.0
          %2149 = vmatpush1.msra.mxu0 0.0
          %2150 = vmatprep.subr.mxu0 0.0
          %2151 = vmatpush1.msra.mxu0 0.0
          %2152 = vmatprep.subr.mxu0 0.0
          %2153 = vmatpush1.msra.mxu0 0.0
          %2154 = vmatprep.subr.mxu0 0.0
          %2155 = vmatpush1.msra.mxu0 0.0
          %2156 = vmatprep.subr.mxu0 0.0
          %2157 = vmatpush1.msra.mxu0 0.0
          %2158 = vmatprep.subr.mxu0 0.0
          %2159 = vmatpush1.msra.mxu0 0.0
          %2160 = vmatprep.subr.mxu0 0.0
          %2161 = vmatpush1.msra.mxu0 0.0
          %2162 = vmatprep.subr.mxu0 0.0
          %2163 = vmatpush1.msra.mxu0 0.0
          %2164 = vmatprep.subr.mxu0 0.0
          %2165 = vmatpush1.msra.mxu0 0.0
          %2166 = vmatprep.subr.mxu0 0.0
          %2167 = vmatpush1.msra.mxu0 0.0
          %2168 = vmatprep.subr.mxu0 0.0
          %2169 = vmatpush1.msra.mxu0 0.0
          %2170 = vmatprep.mubr.f32.mxu0 0.0
          %v2171 = vand.u32 %v2010, 4294901760
          %2172 = vmatmul.mubr.f32.gmra.mrb[0].mxu0 %v2171
          %v2173 = vpop.f32.mrb[0].mxu0
          %v2174 = vadd.f32 %v2088, %v2173
          %v2175 = vpop.f32.mrb[0].mxu0
          %2176 = vmatprep.mubr.f32.mxu0 0.0
          %v2177 = vand.u32 %v2013, 4294901760
          %2178 = vmatmul.mubr.f32.gmra.mrb[0].mxu0 %v2177
          %v2179 = vpop.f32.mrb[0].mxu0
          %v2180 = vadd.f32 %v2098, %v2179
          %v2181 = vpop.f32.mrb[0].mxu0
          %2182 = vdwg.mxu0
          %2183 = vmatprep.subr.mxu0 0.0
          %v2184 = vand.u32 %v1976, 4294901760
          %v2185 = vsub.f32 %v1976, %v2184
          %2186 = vmatpush1.msra.mxu0 %v2185
          %2187 = vmatprep.subr.mxu0 0.0
          %2188 = vmatpush1.msra.mxu0 0.0
          %2189 = vmatprep.subr.mxu0 0.0
          %2190 = vmatpush1.msra.mxu0 0.0
          %2191 = vmatprep.subr.mxu0 0.0
          %2192 = vmatpush1.msra.mxu0 0.0
          %2193 = vmatprep.subr.mxu0 0.0
          %2194 = vmatpush1.msra.mxu0 0.0
          %2195 = vmatprep.subr.mxu0 0.0
          %2196 = vmatpush1.msra.mxu0 0.0
          %2197 = vmatprep.subr.mxu0 0.0
          %2198 = vmatpush1.msra.mxu0 0.0
          %2199 = vmatprep.subr.mxu0 0.0
          %2200 = vmatpush1.msra.mxu0 0.0
          %2201 = vmatprep.subr.mxu0 0.0
          %2202 = vmatpush1.msra.mxu0 0.0
          %2203 = vmatprep.subr.mxu0 0.0
          %2204 = vmatpush1.msra.mxu0 0.0
          %2205 = vmatprep.subr.mxu0 0.0
          %2206 = vmatpush1.msra.mxu0 0.0
          %2207 = vmatprep.subr.mxu0 0.0
          %2208 = vmatpush1.msra.mxu0 0.0
          %2209 = vmatprep.subr.mxu0 0.0
          %2210 = vmatpush1.msra.mxu0 0.0
          %2211 = vmatprep.subr.mxu0 0.0
          %2212 = vmatpush1.msra.mxu0 0.0
          %2213 = vmatprep.subr.mxu0 0.0
          %2214 = vmatpush1.msra.mxu0 0.0
          %2215 = vmatprep.subr.mxu0 0.0
          %2216 = vmatpush1.msra.mxu0 0.0
          %2217 = vmatprep.subr.mxu0 0.0
          %2218 = vmatpush1.msra.mxu0 0.0
          %2219 = vmatprep.subr.mxu0 0.0
          %2220 = vmatpush1.msra.mxu0 0.0
          %2221 = vmatprep.subr.mxu0 0.0
          %2222 = vmatpush1.msra.mxu0 0.0
          %2223 = vmatprep.subr.mxu0 0.0
          %2224 = vmatpush1.msra.mxu0 0.0
          %2225 = vmatprep.subr.mxu0 0.0
          %2226 = vmatpush1.msra.mxu0 0.0
          %2227 = vmatprep.subr.mxu0 0.0
          %2228 = vmatpush1.msra.mxu0 0.0
          %2229 = vmatprep.subr.mxu0 0.0
          %2230 = vmatpush1.msra.mxu0 0.0
          %2231 = vmatprep.subr.mxu0 0.0
          %2232 = vmatpush1.msra.mxu0 0.0
          %2233 = vmatprep.subr.mxu0 0.0
          %2234 = vmatpush1.msra.mxu0 0.0
          %2235 = vmatprep.subr.mxu0 0.0
          %2236 = vmatpush1.msra.mxu0 0.0
          %2237 = vmatprep.subr.mxu0 0.0
          %2238 = vmatpush1.msra.mxu0 0.0
          %2239 = vmatprep.subr.mxu0 0.0
          %2240 = vmatpush1.msra.mxu0 0.0
          %2241 = vmatprep.subr.mxu0 0.0
          %2242 = vmatpush1.msra.mxu0 0.0
          %2243 = vmatprep.subr.mxu0 0.0
          %2244 = vmatpush1.msra.mxu0 0.0
          %2245 = vmatprep.subr.mxu0 0.0
          %2246 = vmatpush1.msra.mxu0 0.0
          %2247 = vmatprep.subr.mxu0 0.0
          %2248 = vmatpush1.msra.mxu0 0.0
          %2249 = vmatprep.mubr.f32.mxu0 0.0
          %v2250 = vand.u32 %v2010, 4294901760
          %v2251 = vsub.f32 %v2010, %v2250
          %2252 = vmatmul.mubr.f32.gmra.mrb[0].mxu0 %v2251
          %v2253 = vpop.f32.mrb[0].mxu0
          %v2254 = vadd.f32 %v2174, %v2253
          %v2255 = vpop.f32.mrb[0].mxu0
          %2256 = vmatprep.mubr.f32.mxu0 0.0
          %v2257 = vand.u32 %v2013, 4294901760
          %v2258 = vsub.f32 %v2013, %v2257
          %2259 = vmatmul.mubr.f32.gmra.mrb[0].mxu0 %v2258
          %v2260 = vpop.f32.mrb[0].mxu0
          %v2261 = vadd.f32 %v2180, %v2260
          %v2262 = vpop.f32.mrb[0].mxu0
          %2263 = vdwg.mxu0
          %2264 = vmatprep.subr.mxu0 0.0
          %v2265 = vand.u32 %v1976, 4294901760
          %2266 = vmatpush1.msra.mxu0 %v2265
          %2267 = vmatprep.subr.mxu0 0.0
          %2268 = vmatpush1.msra.mxu0 0.0
          %2269 = vmatprep.subr.mxu0 0.0
          %2270 = vmatpush1.msra.mxu0 0.0
          %2271 = vmatprep.subr.mxu0 0.0
          %2272 = vmatpush1.msra.mxu0 0.0
          %2273 = vmatprep.subr.mxu0 0.0
          %2274 = vmatpush1.msra.mxu0 0.0
          %2275 = vmatprep.subr.mxu0 0.0
          %2276 = vmatpush1.msra.mxu0 0.0
          %2277 = vmatprep.subr.mxu0 0.0
          %2278 = vmatpush1.msra.mxu0 0.0
          %2279 = vmatprep.subr.mxu0 0.0
          %2280 = vmatpush1.msra.mxu0 0.0
          %2281 = vmatprep.subr.mxu0 0.0
          %2282 = vmatpush1.msra.mxu0 0.0
          %2283 = vmatprep.subr.mxu0 0.0
          %2284 = vmatpush1.msra.mxu0 0.0
          %2285 = vmatprep.subr.mxu0 0.0
          %2286 = vmatpush1.msra.mxu0 0.0
          %2287 = vmatprep.subr.mxu0 0.0
          %2288 = vmatpush1.msra.mxu0 0.0
          %2289 = vmatprep.subr.mxu0 0.0
          %2290 = vmatpush1.msra.mxu0 0.0
          %2291 = vmatprep.subr.mxu0 0.0
          %2292 = vmatpush1.msra.mxu0 0.0
          %2293 = vmatprep.subr.mxu0 0.0
          %2294 = vmatpush1.msra.mxu0 0.0
          %2295 = vmatprep.subr.mxu0 0.0
          %2296 = vmatpush1.msra.mxu0 0.0
          %2297 = vmatprep.subr.mxu0 0.0
          %2298 = vmatpush1.msra.mxu0 0.0
          %2299 = vmatprep.subr.mxu0 0.0
          %2300 = vmatpush1.msra.mxu0 0.0
          %2301 = vmatprep.subr.mxu0 0.0
          %2302 = vmatpush1.msra.mxu0 0.0
          %2303 = vmatprep.subr.mxu0 0.0
          %2304 = vmatpush1.msra.mxu0 0.0
          %2305 = vmatprep.subr.mxu0 0.0
          %2306 = vmatpush1.msra.mxu0 0.0
          %2307 = vmatprep.subr.mxu0 0.0
          %2308 = vmatpush1.msra.mxu0 0.0
          %2309 = vmatprep.subr.mxu0 0.0
          %2310 = vmatpush1.msra.mxu0 0.0
          %2311 = vmatprep.subr.mxu0 0.0
          %2312 = vmatpush1.msra.mxu0 0.0
          %2313 = vmatprep.subr.mxu0 0.0
          %2314 = vmatpush1.msra.mxu0 0.0
          %2315 = vmatprep.subr.mxu0 0.0
          %2316 = vmatpush1.msra.mxu0 0.0
          %2317 = vmatprep.subr.mxu0 0.0
          %2318 = vmatpush1.msra.mxu0 0.0
          %2319 = vmatprep.subr.mxu0 0.0
          %2320 = vmatpush1.msra.mxu0 0.0
          %2321 = vmatprep.subr.mxu0 0.0
          %2322 = vmatpush1.msra.mxu0 0.0
          %2323 = vmatprep.subr.mxu0 0.0
          %2324 = vmatpush1.msra.mxu0 0.0
          %2325 = vmatprep.subr.mxu0 0.0
          %2326 = vmatpush1.msra.mxu0 0.0
          %2327 = vmatprep.subr.mxu0 0.0
          %2328 = vmatpush1.msra.mxu0 0.0
          %2329 = vmatprep.mubr.f32.mxu0 0.0
          %v2330 = vand.u32 %v2010, 4294901760
          %v2331 = vsub.f32 %v2010, %v2330
          %v2332 = vand.u32 %v2331, 4294901760
          %2333 = vmatmul.mubr.f32.gmra.mrb[0].mxu0 %v2332
          %v2334 = vpop.f32.mrb[0].mxu0
          %v2335 = vadd.f32 %v2254, %v2334
          %v2336 = vpop.f32.mrb[0].mxu0
          %2337 = vmatprep.mubr.f32.mxu0 0.0
          %v2338 = vand.u32 %v2013, 4294901760
          %v2339 = vsub.f32 %v2013, %v2338
          %v2340 = vand.u32 %v2339, 4294901760
          %2341 = vmatmul.mubr.f32.gmra.mrb[0].mxu0 %v2340
          %v2342 = vpop.f32.mrb[0].mxu0
          %v2343 = vadd.f32 %v2261, %v2342
          %v2344 = vpop.f32.mrb[0].mxu0
          %2345 = vdwg.mxu0
          %2346 = vmatprep.subr.mxu0 0.0
          %v2347 = vand.u32 %v1976, 4294901760
          %v2348 = vsub.f32 %v1976, %v2347
          %v2349 = vand.u32 %v2348, 4294901760
          %2350 = vmatpush1.msra.mxu0 %v2349
          %2351 = vmatprep.subr.mxu0 0.0
          %2352 = vmatpush1.msra.mxu0 0.0
          %2353 = vmatprep.subr.mxu0 0.0
          %2354 = vmatpush1.msra.mxu0 0.0
          %2355 = vmatprep.subr.mxu0 0.0
          %2356 = vmatpush1.msra.mxu0 0.0
          %2357 = vmatprep.subr.mxu0 0.0
          %2358 = vmatpush1.msra.mxu0 0.0
          %2359 = vmatprep.subr.mxu0 0.0
          %2360 = vmatpush1.msra.mxu0 0.0
          %2361 = vmatprep.subr.mxu0 0.0
          %2362 = vmatpush1.msra.mxu0 0.0
          %2363 = vmatprep.subr.mxu0 0.0
          %2364 = vmatpush1.msra.mxu0 0.0
          %2365 = vmatprep.subr.mxu0 0.0
          %2366 = vmatpush1.msra.mxu0 0.0
          %2367 = vmatprep.subr.mxu0 0.0
          %2368 = vmatpush1.msra.mxu0 0.0
          %2369 = vmatprep.subr.mxu0 0.0
          %2370 = vmatpush1.msra.mxu0 0.0
          %2371 = vmatprep.subr.mxu0 0.0
          %2372 = vmatpush1.msra.mxu0 0.0
          %2373 = vmatprep.subr.mxu0 0.0
          %2374 = vmatpush1.msra.mxu0 0.0
          %2375 = vmatprep.subr.mxu0 0.0
          %2376 = vmatpush1.msra.mxu0 0.0
          %2377 = vmatprep.subr.mxu0 0.0
          %2378 = vmatpush1.msra.mxu0 0.0
          %2379 = vmatprep.subr.mxu0 0.0
          %2380 = vmatpush1.msra.mxu0 0.0
          %2381 = vmatprep.subr.mxu0 0.0
          %2382 = vmatpush1.msra.mxu0 0.0
          %2383 = vmatprep.subr.mxu0 0.0
          %2384 = vmatpush1.msra.mxu0 0.0
          %2385 = vmatprep.subr.mxu0 0.0
          %2386 = vmatpush1.msra.mxu0 0.0
          %2387 = vmatprep.subr.mxu0 0.0
          %2388 = vmatpush1.msra.mxu0 0.0
          %2389 = vmatprep.subr.mxu0 0.0
          %2390 = vmatpush1.msra.mxu0 0.0
          %2391 = vmatprep.subr.mxu0 0.0
          %2392 = vmatpush1.msra.mxu0 0.0
          %2393 = vmatprep.subr.mxu0 0.0
          %2394 = vmatpush1.msra.mxu0 0.0
          %2395 = vmatprep.subr.mxu0 0.0
          %2396 = vmatpush1.msra.mxu0 0.0
          %2397 = vmatprep.subr.mxu0 0.0
          %2398 = vmatpush1.msra.mxu0 0.0
          %2399 = vmatprep.subr.mxu0 0.0
          %2400 = vmatpush1.msra.mxu0 0.0
          %2401 = vmatprep.subr.mxu0 0.0
          %2402 = vmatpush1.msra.mxu0 0.0
          %2403 = vmatprep.subr.mxu0 0.0
          %2404 = vmatpush1.msra.mxu0 0.0
          %2405 = vmatprep.subr.mxu0 0.0
          %2406 = vmatpush1.msra.mxu0 0.0
          %2407 = vmatprep.subr.mxu0 0.0
          %2408 = vmatpush1.msra.mxu0 0.0
          %2409 = vmatprep.subr.mxu0 0.0
          %2410 = vmatpush1.msra.mxu0 0.0
          %2411 = vmatprep.subr.mxu0 0.0
          %2412 = vmatpush1.msra.mxu0 0.0
          %2413 = vmatprep.mubr.f32.mxu0 0.0
          %v2414 = vand.u32 %v2010, 4294901760
          %2415 = vmatmul.mubr.f32.gmra.mrb[0].mxu0 %v2414
          %v2416 = vpop.f32.mrb[0].mxu0
          %v2417 = vadd.f32 %v2335, %v2416
          %v2418 = vpop.f32.mrb[0].mxu0
          %2419 = vmatprep.mubr.f32.mxu0 0.0
          %v2420 = vand.u32 %v2013, 4294901760
          %2421 = vmatmul.mubr.f32.gmra.mrb[0].mxu0 %v2420
          %v2422 = vpop.f32.mrb[0].mxu0
          %v2423 = vadd.f32 %v2343, %v2422
          %v2424 = vpop.f32.mrb[0].mxu0
          %2425 = vdwg.mxu0
          %2426 = vmatprep.subr.mxu0 0.0
          %v2427 = vand.u32 %v1976, 4294901760
          %2428 = vmatpush1.msra.mxu0 %v2427
          %2429 = vmatprep.subr.mxu0 0.0
          %2430 = vmatpush1.msra.mxu0 0.0
          %2431 = vmatprep.subr.mxu0 0.0
          %2432 = vmatpush1.msra.mxu0 0.0
          %2433 = vmatprep.subr.mxu0 0.0
          %2434 = vmatpush1.msra.mxu0 0.0
          %2435 = vmatprep.subr.mxu0 0.0
          %2436 = vmatpush1.msra.mxu0 0.0
          %2437 = vmatprep.subr.mxu0 0.0
          %2438 = vmatpush1.msra.mxu0 0.0
          %2439 = vmatprep.subr.mxu0 0.0
          %2440 = vmatpush1.msra.mxu0 0.0
          %2441 = vmatprep.subr.mxu0 0.0
          %2442 = vmatpush1.msra.mxu0 0.0
          %2443 = vmatprep.subr.mxu0 0.0
          %2444 = vmatpush1.msra.mxu0 0.0
          %2445 = vmatprep.subr.mxu0 0.0
          %2446 = vmatpush1.msra.mxu0 0.0
          %2447 = vmatprep.subr.mxu0 0.0
          %2448 = vmatpush1.msra.mxu0 0.0
          %2449 = vmatprep.subr.mxu0 0.0
          %2450 = vmatpush1.msra.mxu0 0.0
          %2451 = vmatprep.subr.mxu0 0.0
          %2452 = vmatpush1.msra.mxu0 0.0
          %2453 = vmatprep.subr.mxu0 0.0
          %2454 = vmatpush1.msra.mxu0 0.0
          %2455 = vmatprep.subr.mxu0 0.0
          %2456 = vmatpush1.msra.mxu0 0.0
          %2457 = vmatprep.subr.mxu0 0.0
          %2458 = vmatpush1.msra.mxu0 0.0
          %2459 = vmatprep.subr.mxu0 0.0
          %2460 = vmatpush1.msra.mxu0 0.0
          %2461 = vmatprep.subr.mxu0 0.0
          %2462 = vmatpush1.msra.mxu0 0.0
          %2463 = vmatprep.subr.mxu0 0.0
          %2464 = vmatpush1.msra.mxu0 0.0
          %2465 = vmatprep.subr.mxu0 0.0
          %2466 = vmatpush1.msra.mxu0 0.0
          %2467 = vmatprep.subr.mxu0 0.0
          %2468 = vmatpush1.msra.mxu0 0.0
          %2469 = vmatprep.subr.mxu0 0.0
          %2470 = vmatpush1.msra.mxu0 0.0
          %2471 = vmatprep.subr.mxu0 0.0
          %2472 = vmatpush1.msra.mxu0 0.0
          %2473 = vmatprep.subr.mxu0 0.0
          %2474 = vmatpush1.msra.mxu0 0.0
          %2475 = vmatprep.subr.mxu0 0.0
          %2476 = vmatpush1.msra.mxu0 0.0
          %2477 = vmatprep.subr.mxu0 0.0
          %2478 = vmatpush1.msra.mxu0 0.0
          %2479 = vmatprep.subr.mxu0 0.0
          %2480 = vmatpush1.msra.mxu0 0.0
          %2481 = vmatprep.subr.mxu0 0.0
          %2482 = vmatpush1.msra.mxu0 0.0
          %2483 = vmatprep.subr.mxu0 0.0
          %2484 = vmatpush1.msra.mxu0 0.0
          %2485 = vmatprep.subr.mxu0 0.0
          %2486 = vmatpush1.msra.mxu0 0.0
          %2487 = vmatprep.subr.mxu0 0.0
          %2488 = vmatpush1.msra.mxu0 0.0
          %2489 = vmatprep.subr.mxu0 0.0
          %2490 = vmatpush1.msra.mxu0 0.0
          %2491 = vmatprep.mubr.f32.mxu0 0.0
          %v2492 = vand.u32 %v2010, 4294901760
          %2493 = vmatmul.mubr.f32.gmra.mrb[0].mxu0 %v2492
          %v2494 = vpop.f32.mrb[0].mxu0
          %v2495 = vadd.f32 %v2417, %v2494
          %v2496 = vpop.f32.mrb[0].mxu0
          %2497 = vmatprep.mubr.f32.mxu0 0.0
          %v2498 = vand.u32 %v2013, 4294901760
          %2499 = vmatmul.mubr.f32.gmra.mrb[0].mxu0 %v2498
          %v2500 = vpop.f32.mrb[0].mxu0
          %v2501 = vadd.f32 %v2423, %v2500
          %v2502 = vpop.f32.mrb[0].mxu0
          %2503 = vdwg.mxu0
          %v2504 = vadd.f32 %v1965, %v2495
          %v2505 = vadd.f32 %v1971, %v2501
          %v2506 = vld [vmem:[%s2 + $0x20] sm:$0xff]
          %v2507 = vsub.f32 %v912, %v909
          %v2508 = vand.u32 2147483647, %v2507
          %2509 = vxpose.xlu0.b32.start [1/16] %v2506, 128
          %2510 = vxpose.xlu0.b32.cont [2/16] 0.0, 128
          %2511 = vxpose.xlu0.b32.cont [3/16] 0.0, 128
          %2512 = vxpose.xlu0.b32.cont [4/16] 0.0, 128
          %2513 = vxpose.xlu0.b32.cont [5/16] 0.0, 128
          %2514 = vxpose.xlu0.b32.cont [6/16] 0.0, 128
          %2515 = vxpose.xlu0.b32.cont [7/16] 0.0, 128
          %2516 = vxpose.xlu0.b32.cont [8/16] 0.0, 128
          %2517 = vxpose.xlu0.b32.cont [9/16] 0.0, 128
          %2518 = vxpose.xlu0.b32.cont [10/16] 0.0, 128
          %2519 = vxpose.xlu0.b32.cont [11/16] 0.0, 128
          %2520 = vxpose.xlu0.b32.cont [12/16] 0.0, 128
          %2521 = vxpose.xlu0.b32.cont [13/16] 0.0, 128
          %2522 = vxpose.xlu0.b32.cont [14/16] 0.0, 128
          %2523 = vxpose.xlu0.b32.cont [15/16] 0.0, 128
          %2524 = vxpose.xlu0.b32.end [16/16] 0.0, 128
          %v2525 = vpop.trf.xlu0
          %v2526 = vpop.trf.xlu0
          %v2527 = vpop.trf.xlu0
          %v2528 = vpop.trf.xlu0
          %v2529 = vpop.trf.xlu0
          %v2530 = vpop.trf.xlu0
          %v2531 = vpop.trf.xlu0
          %v2532 = vpop.trf.xlu0
          %v2533 = vpop.trf.xlu0
          %v2534 = vpop.trf.xlu0
          %v2535 = vpop.trf.xlu0
          %v2536 = vpop.trf.xlu0
          %v2537 = vpop.trf.xlu0
          %v2538 = vpop.trf.xlu0
          %v2539 = vpop.trf.xlu0
          %v2540 = vpop.trf.xlu0
          %v2542 = vsel %vm951, %v2525, 0
          %v2545 = vsel %vm951, %v2526, 0
          %2547 = vmatprep.subr.mxu0 0.0
          %v2548 = vand.u32 %v2508, 4294901760
          %2549 = vmatpush1.msra.mxu0 %v2548
          %2550 = vmatprep.subr.mxu0 0.0
          %2551 = vmatpush1.msra.mxu0 0.0
          %2552 = vmatprep.subr.mxu0 0.0
          %2553 = vmatpush1.msra.mxu0 0.0
          %2554 = vmatprep.subr.mxu0 0.0
          %2555 = vmatpush1.msra.mxu0 0.0
          %2556 = vmatprep.subr.mxu0 0.0
          %2557 = vmatpush1.msra.mxu0 0.0
          %2558 = vmatprep.subr.mxu0 0.0
          %2559 = vmatpush1.msra.mxu0 0.0
          %2560 = vmatprep.subr.mxu0 0.0
          %2561 = vmatpush1.msra.mxu0 0.0
          %2562 = vmatprep.subr.mxu0 0.0
          %2563 = vmatpush1.msra.mxu0 0.0
          %2564 = vmatprep.subr.mxu0 0.0
          %2565 = vmatpush1.msra.mxu0 0.0
          %2566 = vmatprep.subr.mxu0 0.0
          %2567 = vmatpush1.msra.mxu0 0.0
          %2568 = vmatprep.subr.mxu0 0.0
          %2569 = vmatpush1.msra.mxu0 0.0
          %2570 = vmatprep.subr.mxu0 0.0
          %2571 = vmatpush1.msra.mxu0 0.0
          %2572 = vmatprep.subr.mxu0 0.0
          %2573 = vmatpush1.msra.mxu0 0.0
          %2574 = vmatprep.subr.mxu0 0.0
          %2575 = vmatpush1.msra.mxu0 0.0
          %2576 = vmatprep.subr.mxu0 0.0
          %2577 = vmatpush1.msra.mxu0 0.0
          %2578 = vmatprep.subr.mxu0 0.0
          %2579 = vmatpush1.msra.mxu0 0.0
          %2580 = vmatprep.subr.mxu0 0.0
          %2581 = vmatpush1.msra.mxu0 0.0
          %2582 = vmatprep.subr.mxu0 0.0
          %2583 = vmatpush1.msra.mxu0 0.0
          %2584 = vmatprep.subr.mxu0 0.0
          %2585 = vmatpush1.msra.mxu0 0.0
          %2586 = vmatprep.subr.mxu0 0.0
          %2587 = vmatpush1.msra.mxu0 0.0
          %2588 = vmatprep.subr.mxu0 0.0
          %2589 = vmatpush1.msra.mxu0 0.0
          %2590 = vmatprep.subr.mxu0 0.0
          %2591 = vmatpush1.msra.mxu0 0.0
          %2592 = vmatprep.subr.mxu0 0.0
          %2593 = vmatpush1.msra.mxu0 0.0
          %2594 = vmatprep.subr.mxu0 0.0
          %2595 = vmatpush1.msra.mxu0 0.0
          %2596 = vmatprep.subr.mxu0 0.0
          %2597 = vmatpush1.msra.mxu0 0.0
          %2598 = vmatprep.subr.mxu0 0.0
          %2599 = vmatpush1.msra.mxu0 0.0
          %2600 = vmatprep.subr.mxu0 0.0
          %2601 = vmatpush1.msra.mxu0 0.0
          %2602 = vmatprep.subr.mxu0 0.0
          %2603 = vmatpush1.msra.mxu0 0.0
          %2604 = vmatprep.subr.mxu0 0.0
          %2605 = vmatpush1.msra.mxu0 0.0
          %2606 = vmatprep.subr.mxu0 0.0
          %2607 = vmatpush1.msra.mxu0 0.0
          %2608 = vmatprep.subr.mxu0 0.0
          %2609 = vmatpush1.msra.mxu0 0.0
          %2610 = vmatprep.subr.mxu0 0.0
          %2611 = vmatpush1.msra.mxu0 0.0
          %2612 = vmatprep.mubr.f32.mxu0 0.0
          %v2613 = vand.u32 %v2542, 4294901760
          %v2614 = vsub.f32 %v2542, %v2613
          %v2615 = vand.u32 %v2614, 4294901760
          %v2616 = vsub.f32 %v2614, %v2615
          %v2617 = vand.u32 %v2616, 4294901760
          %2618 = vmatmul.mubr.f32.gmra.mrb[0].mxu0 %v2617
          %v2619 = vpop.f32.mrb[0].mxu0
          %v2620 = vadd.f32 0.0, %v2619
          %v2621 = vpop.f32.mrb[0].mxu0
          %2622 = vmatprep.mubr.f32.mxu0 0.0
          %v2623 = vand.u32 %v2545, 4294901760
          %v2624 = vsub.f32 %v2545, %v2623
          %v2625 = vand.u32 %v2624, 4294901760
          %v2626 = vsub.f32 %v2624, %v2625
          %v2627 = vand.u32 %v2626, 4294901760
          %2628 = vmatmul.mubr.f32.gmra.mrb[0].mxu0 %v2627
          %v2629 = vpop.f32.mrb[0].mxu0
          %v2630 = vadd.f32 0.0, %v2629
          %v2631 = vpop.f32.mrb[0].mxu0
          %2632 = vdwg.mxu0
          %2633 = vmatprep.subr.mxu0 0.0
          %v2634 = vand.u32 %v2508, 4294901760
          %v2635 = vsub.f32 %v2508, %v2634
          %v2636 = vand.u32 %v2635, 4294901760
          %v2637 = vsub.f32 %v2635, %v2636
          %v2638 = vand.u32 %v2637, 4294901760
          %2639 = vmatpush1.msra.mxu0 %v2638
          %2640 = vmatprep.subr.mxu0 0.0
          %2641 = vmatpush1.msra.mxu0 0.0
          %2642 = vmatprep.subr.mxu0 0.0
          %2643 = vmatpush1.msra.mxu0 0.0
          %2644 = vmatprep.subr.mxu0 0.0
          %2645 = vmatpush1.msra.mxu0 0.0
          %2646 = vmatprep.subr.mxu0 0.0
          %2647 = vmatpush1.msra.mxu0 0.0
          %2648 = vmatprep.subr.mxu0 0.0
          %2649 = vmatpush1.msra.mxu0 0.0
          %2650 = vmatprep.subr.mxu0 0.0
          %2651 = vmatpush1.msra.mxu0 0.0
          %2652 = vmatprep.subr.mxu0 0.0
          %2653 = vmatpush1.msra.mxu0 0.0
          %2654 = vmatprep.subr.mxu0 0.0
          %2655 = vmatpush1.msra.mxu0 0.0
          %2656 = vmatprep.subr.mxu0 0.0
          %2657 = vmatpush1.msra.mxu0 0.0
          %2658 = vmatprep.subr.mxu0 0.0
          %2659 = vmatpush1.msra.mxu0 0.0
          %2660 = vmatprep.subr.mxu0 0.0
          %2661 = vmatpush1.msra.mxu0 0.0
          %2662 = vmatprep.subr.mxu0 0.0
          %2663 = vmatpush1.msra.mxu0 0.0
          %2664 = vmatprep.subr.mxu0 0.0
          %2665 = vmatpush1.msra.mxu0 0.0
          %2666 = vmatprep.subr.mxu0 0.0
          %2667 = vmatpush1.msra.mxu0 0.0
          %2668 = vmatprep.subr.mxu0 0.0
          %2669 = vmatpush1.msra.mxu0 0.0
          %2670 = vmatprep.subr.mxu0 0.0
          %2671 = vmatpush1.msra.mxu0 0.0
          %2672 = vmatprep.subr.mxu0 0.0
          %2673 = vmatpush1.msra.mxu0 0.0
          %2674 = vmatprep.subr.mxu0 0.0
          %2675 = vmatpush1.msra.mxu0 0.0
          %2676 = vmatprep.subr.mxu0 0.0
          %2677 = vmatpush1.msra.mxu0 0.0
          %2678 = vmatprep.subr.mxu0 0.0
          %2679 = vmatpush1.msra.mxu0 0.0
          %2680 = vmatprep.subr.mxu0 0.0
          %2681 = vmatpush1.msra.mxu0 0.0
          %2682 = vmatprep.subr.mxu0 0.0
          %2683 = vmatpush1.msra.mxu0 0.0
          %2684 = vmatprep.subr.mxu0 0.0
          %2685 = vmatpush1.msra.mxu0 0.0
          %2686 = vmatprep.subr.mxu0 0.0
          %2687 = vmatpush1.msra.mxu0 0.0
          %2688 = vmatprep.subr.mxu0 0.0
          %2689 = vmatpush1.msra.mxu0 0.0
          %2690 = vmatprep.subr.mxu0 0.0
          %2691 = vmatpush1.msra.mxu0 0.0
          %2692 = vmatprep.subr.mxu0 0.0
          %2693 = vmatpush1.msra.mxu0 0.0
          %2694 = vmatprep.subr.mxu0 0.0
          %2695 = vmatpush1.msra.mxu0 0.0
          %2696 = vmatprep.subr.mxu0 0.0
          %2697 = vmatpush1.msra.mxu0 0.0
          %2698 = vmatprep.subr.mxu0 0.0
          %2699 = vmatpush1.msra.mxu0 0.0
          %2700 = vmatprep.subr.mxu0 0.0
          %2701 = vmatpush1.msra.mxu0 0.0
          %2702 = vmatprep.mubr.f32.mxu0 0.0
          %v2703 = vand.u32 %v2542, 4294901760
          %2704 = vmatmul.mubr.f32.gmra.mrb[0].mxu0 %v2703
          %v2705 = vpop.f32.mrb[0].mxu0
          %v2706 = vadd.f32 %v2620, %v2705
          %v2707 = vpop.f32.mrb[0].mxu0
          %2708 = vmatprep.mubr.f32.mxu0 0.0
          %v2709 = vand.u32 %v2545, 4294901760
          %2710 = vmatmul.mubr.f32.gmra.mrb[0].mxu0 %v2709
          %v2711 = vpop.f32.mrb[0].mxu0
          %v2712 = vadd.f32 %v2630, %v2711
          %v2713 = vpop.f32.mrb[0].mxu0
          %2714 = vdwg.mxu0
          %2715 = vmatprep.subr.mxu0 0.0
          %v2716 = vand.u32 %v2508, 4294901760
          %v2717 = vsub.f32 %v2508, %v2716
          %2718 = vmatpush1.msra.mxu0 %v2717
          %2719 = vmatprep.subr.mxu0 0.0
          %2720 = vmatpush1.msra.mxu0 0.0
          %2721 = vmatprep.subr.mxu0 0.0
          %2722 = vmatpush1.msra.mxu0 0.0
          %2723 = vmatprep.subr.mxu0 0.0
          %2724 = vmatpush1.msra.mxu0 0.0
          %2725 = vmatprep.subr.mxu0 0.0
          %2726 = vmatpush1.msra.mxu0 0.0
          %2727 = vmatprep.subr.mxu0 0.0
          %2728 = vmatpush1.msra.mxu0 0.0
          %2729 = vmatprep.subr.mxu0 0.0
          %2730 = vmatpush1.msra.mxu0 0.0
          %2731 = vmatprep.subr.mxu0 0.0
          %2732 = vmatpush1.msra.mxu0 0.0
          %2733 = vmatprep.subr.mxu0 0.0
          %2734 = vmatpush1.msra.mxu0 0.0
          %2735 = vmatprep.subr.mxu0 0.0
          %2736 = vmatpush1.msra.mxu0 0.0
          %2737 = vmatprep.subr.mxu0 0.0
          %2738 = vmatpush1.msra.mxu0 0.0
          %2739 = vmatprep.subr.mxu0 0.0
          %2740 = vmatpush1.msra.mxu0 0.0
          %2741 = vmatprep.subr.mxu0 0.0
          %2742 = vmatpush1.msra.mxu0 0.0
          %2743 = vmatprep.subr.mxu0 0.0
          %2744 = vmatpush1.msra.mxu0 0.0
          %2745 = vmatprep.subr.mxu0 0.0
          %2746 = vmatpush1.msra.mxu0 0.0
          %2747 = vmatprep.subr.mxu0 0.0
          %2748 = vmatpush1.msra.mxu0 0.0
          %2749 = vmatprep.subr.mxu0 0.0
          %2750 = vmatpush1.msra.mxu0 0.0
          %2751 = vmatprep.subr.mxu0 0.0
          %2752 = vmatpush1.msra.mxu0 0.0
          %2753 = vmatprep.subr.mxu0 0.0
          %2754 = vmatpush1.msra.mxu0 0.0
          %2755 = vmatprep.subr.mxu0 0.0
          %2756 = vmatpush1.msra.mxu0 0.0
          %2757 = vmatprep.subr.mxu0 0.0
          %2758 = vmatpush1.msra.mxu0 0.0
          %2759 = vmatprep.subr.mxu0 0.0
          %2760 = vmatpush1.msra.mxu0 0.0
          %2761 = vmatprep.subr.mxu0 0.0
          %2762 = vmatpush1.msra.mxu0 0.0
          %2763 = vmatprep.subr.mxu0 0.0
          %2764 = vmatpush1.msra.mxu0 0.0
          %2765 = vmatprep.subr.mxu0 0.0
          %2766 = vmatpush1.msra.mxu0 0.0
          %2767 = vmatprep.subr.mxu0 0.0
          %2768 = vmatpush1.msra.mxu0 0.0
          %2769 = vmatprep.subr.mxu0 0.0
          %2770 = vmatpush1.msra.mxu0 0.0
          %2771 = vmatprep.subr.mxu0 0.0
          %2772 = vmatpush1.msra.mxu0 0.0
          %2773 = vmatprep.subr.mxu0 0.0
          %2774 = vmatpush1.msra.mxu0 0.0
          %2775 = vmatprep.subr.mxu0 0.0
          %2776 = vmatpush1.msra.mxu0 0.0
          %2777 = vmatprep.subr.mxu0 0.0
          %2778 = vmatpush1.msra.mxu0 0.0
          %2779 = vmatprep.subr.mxu0 0.0
          %2780 = vmatpush1.msra.mxu0 0.0
          %2781 = vmatprep.mubr.f32.mxu0 0.0
          %v2782 = vand.u32 %v2542, 4294901760
          %v2783 = vsub.f32 %v2542, %v2782
          %2784 = vmatmul.mubr.f32.gmra.mrb[0].mxu0 %v2783
          %v2785 = vpop.f32.mrb[0].mxu0
          %v2786 = vadd.f32 %v2706, %v2785
          %v2787 = vpop.f32.mrb[0].mxu0
          %2788 = vmatprep.mubr.f32.mxu0 0.0
          %v2789 = vand.u32 %v2545, 4294901760
          %v2790 = vsub.f32 %v2545, %v2789
          %2791 = vmatmul.mubr.f32.gmra.mrb[0].mxu0 %v2790
          %v2792 = vpop.f32.mrb[0].mxu0
          %v2793 = vadd.f32 %v2712, %v2792
          %v2794 = vpop.f32.mrb[0].mxu0
          %2795 = vdwg.mxu0
          %2796 = vmatprep.subr.mxu0 0.0
          %v2797 = vand.u32 %v2508, 4294901760
          %2798 = vmatpush1.msra.mxu0 %v2797
          %2799 = vmatprep.subr.mxu0 0.0
          %2800 = vmatpush1.msra.mxu0 0.0
          %2801 = vmatprep.subr.mxu0 0.0
          %2802 = vmatpush1.msra.mxu0 0.0
          %2803 = vmatprep.subr.mxu0 0.0
          %2804 = vmatpush1.msra.mxu0 0.0
          %2805 = vmatprep.subr.mxu0 0.0
          %2806 = vmatpush1.msra.mxu0 0.0
          %2807 = vmatprep.subr.mxu0 0.0
          %2808 = vmatpush1.msra.mxu0 0.0
          %2809 = vmatprep.subr.mxu0 0.0
          %2810 = vmatpush1.msra.mxu0 0.0
          %2811 = vmatprep.subr.mxu0 0.0
          %2812 = vmatpush1.msra.mxu0 0.0
          %2813 = vmatprep.subr.mxu0 0.0
          %2814 = vmatpush1.msra.mxu0 0.0
          %2815 = vmatprep.subr.mxu0 0.0
          %2816 = vmatpush1.msra.mxu0 0.0
          %2817 = vmatprep.subr.mxu0 0.0
          %2818 = vmatpush1.msra.mxu0 0.0
          %2819 = vmatprep.subr.mxu0 0.0
          %2820 = vmatpush1.msra.mxu0 0.0
          %2821 = vmatprep.subr.mxu0 0.0
          %2822 = vmatpush1.msra.mxu0 0.0
          %2823 = vmatprep.subr.mxu0 0.0
          %2824 = vmatpush1.msra.mxu0 0.0
          %2825 = vmatprep.subr.mxu0 0.0
          %2826 = vmatpush1.msra.mxu0 0.0
          %2827 = vmatprep.subr.mxu0 0.0
          %2828 = vmatpush1.msra.mxu0 0.0
          %2829 = vmatprep.subr.mxu0 0.0
          %2830 = vmatpush1.msra.mxu0 0.0
          %2831 = vmatprep.subr.mxu0 0.0
          %2832 = vmatpush1.msra.mxu0 0.0
          %2833 = vmatprep.subr.mxu0 0.0
          %2834 = vmatpush1.msra.mxu0 0.0
          %2835 = vmatprep.subr.mxu0 0.0
          %2836 = vmatpush1.msra.mxu0 0.0
          %2837 = vmatprep.subr.mxu0 0.0
          %2838 = vmatpush1.msra.mxu0 0.0
          %2839 = vmatprep.subr.mxu0 0.0
          %2840 = vmatpush1.msra.mxu0 0.0
          %2841 = vmatprep.subr.mxu0 0.0
          %2842 = vmatpush1.msra.mxu0 0.0
          %2843 = vmatprep.subr.mxu0 0.0
          %2844 = vmatpush1.msra.mxu0 0.0
          %2845 = vmatprep.subr.mxu0 0.0
          %2846 = vmatpush1.msra.mxu0 0.0
          %2847 = vmatprep.subr.mxu0 0.0
          %2848 = vmatpush1.msra.mxu0 0.0
          %2849 = vmatprep.subr.mxu0 0.0
          %2850 = vmatpush1.msra.mxu0 0.0
          %2851 = vmatprep.subr.mxu0 0.0
          %2852 = vmatpush1.msra.mxu0 0.0
          %2853 = vmatprep.subr.mxu0 0.0
          %2854 = vmatpush1.msra.mxu0 0.0
          %2855 = vmatprep.subr.mxu0 0.0
          %2856 = vmatpush1.msra.mxu0 0.0
          %2857 = vmatprep.subr.mxu0 0.0
          %2858 = vmatpush1.msra.mxu0 0.0
          %2859 = vmatprep.subr.mxu0 0.0
          %2860 = vmatpush1.msra.mxu0 0.0
          %2861 = vmatprep.mubr.f32.mxu0 0.0
          %v2862 = vand.u32 %v2542, 4294901760
          %v2863 = vsub.f32 %v2542, %v2862
          %v2864 = vand.u32 %v2863, 4294901760
          %2865 = vmatmul.mubr.f32.gmra.mrb[0].mxu0 %v2864
          %v2866 = vpop.f32.mrb[0].mxu0
          %v2867 = vadd.f32 %v2786, %v2866
          %v2868 = vpop.f32.mrb[0].mxu0
          %2869 = vmatprep.mubr.f32.mxu0 0.0
          %v2870 = vand.u32 %v2545, 4294901760
          %v2871 = vsub.f32 %v2545, %v2870
          %v2872 = vand.u32 %v2871, 4294901760
          %2873 = vmatmul.mubr.f32.gmra.mrb[0].mxu0 %v2872
          %v2874 = vpop.f32.mrb[0].mxu0
          %v2875 = vadd.f32 %v2793, %v2874
          %v2876 = vpop.f32.mrb[0].mxu0
          %2877 = vdwg.mxu0
          %2878 = vmatprep.subr.mxu0 0.0
          %v2879 = vand.u32 %v2508, 4294901760
          %v2880 = vsub.f32 %v2508, %v2879
          %v2881 = vand.u32 %v2880, 4294901760
          %2882 = vmatpush1.msra.mxu0 %v2881
          %2883 = vmatprep.subr.mxu0 0.0
          %2884 = vmatpush1.msra.mxu0 0.0
          %2885 = vmatprep.subr.mxu0 0.0
          %2886 = vmatpush1.msra.mxu0 0.0
          %2887 = vmatprep.subr.mxu0 0.0
          %2888 = vmatpush1.msra.mxu0 0.0
          %2889 = vmatprep.subr.mxu0 0.0
          %2890 = vmatpush1.msra.mxu0 0.0
          %2891 = vmatprep.subr.mxu0 0.0
          %2892 = vmatpush1.msra.mxu0 0.0
          %2893 = vmatprep.subr.mxu0 0.0
          %2894 = vmatpush1.msra.mxu0 0.0
          %2895 = vmatprep.subr.mxu0 0.0
          %2896 = vmatpush1.msra.mxu0 0.0
          %2897 = vmatprep.subr.mxu0 0.0
          %2898 = vmatpush1.msra.mxu0 0.0
          %2899 = vmatprep.subr.mxu0 0.0
          %2900 = vmatpush1.msra.mxu0 0.0
          %2901 = vmatprep.subr.mxu0 0.0
          %2902 = vmatpush1.msra.mxu0 0.0
          %2903 = vmatprep.subr.mxu0 0.0
          %2904 = vmatpush1.msra.mxu0 0.0
          %2905 = vmatprep.subr.mxu0 0.0
          %2906 = vmatpush1.msra.mxu0 0.0
          %2907 = vmatprep.subr.mxu0 0.0
          %2908 = vmatpush1.msra.mxu0 0.0
          %2909 = vmatprep.subr.mxu0 0.0
          %2910 = vmatpush1.msra.mxu0 0.0
          %2911 = vmatprep.subr.mxu0 0.0
          %2912 = vmatpush1.msra.mxu0 0.0
          %2913 = vmatprep.subr.mxu0 0.0
          %2914 = vmatpush1.msra.mxu0 0.0
          %2915 = vmatprep.subr.mxu0 0.0
          %2916 = vmatpush1.msra.mxu0 0.0
          %2917 = vmatprep.subr.mxu0 0.0
          %2918 = vmatpush1.msra.mxu0 0.0
          %2919 = vmatprep.subr.mxu0 0.0
          %2920 = vmatpush1.msra.mxu0 0.0
          %2921 = vmatprep.subr.mxu0 0.0
          %2922 = vmatpush1.msra.mxu0 0.0
          %2923 = vmatprep.subr.mxu0 0.0
          %2924 = vmatpush1.msra.mxu0 0.0
          %2925 = vmatprep.subr.mxu0 0.0
          %2926 = vmatpush1.msra.mxu0 0.0
          %2927 = vmatprep.subr.mxu0 0.0
          %2928 = vmatpush1.msra.mxu0 0.0
          %2929 = vmatprep.subr.mxu0 0.0
          %2930 = vmatpush1.msra.mxu0 0.0
          %2931 = vmatprep.subr.mxu0 0.0
          %2932 = vmatpush1.msra.mxu0 0.0
          %2933 = vmatprep.subr.mxu0 0.0
          %2934 = vmatpush1.msra.mxu0 0.0
          %2935 = vmatprep.subr.mxu0 0.0
          %2936 = vmatpush1.msra.mxu0 0.0
          %2937 = vmatprep.subr.mxu0 0.0
          %2938 = vmatpush1.msra.mxu0 0.0
          %2939 = vmatprep.subr.mxu0 0.0
          %2940 = vmatpush1.msra.mxu0 0.0
          %2941 = vmatprep.subr.mxu0 0.0
          %2942 = vmatpush1.msra.mxu0 0.0
          %2943 = vmatprep.subr.mxu0 0.0
          %2944 = vmatpush1.msra.mxu0 0.0
          %2945 = vmatprep.mubr.f32.mxu0 0.0
          %v2946 = vand.u32 %v2542, 4294901760
          %2947 = vmatmul.mubr.f32.gmra.mrb[0].mxu0 %v2946
          %v2948 = vpop.f32.mrb[0].mxu0
          %v2949 = vadd.f32 %v2867, %v2948
          %v2950 = vpop.f32.mrb[0].mxu0
          %2951 = vmatprep.mubr.f32.mxu0 0.0
          %v2952 = vand.u32 %v2545, 4294901760
          %2953 = vmatmul.mubr.f32.gmra.mrb[0].mxu0 %v2952
          %v2954 = vpop.f32.mrb[0].mxu0
          %v2955 = vadd.f32 %v2875, %v2954
          %v2956 = vpop.f32.mrb[0].mxu0
          %2957 = vdwg.mxu0
          %2958 = vmatprep.subr.mxu0 0.0
          %v2959 = vand.u32 %v2508, 4294901760
          %2960 = vmatpush1.msra.mxu0 %v2959
          %2961 = vmatprep.subr.mxu0 0.0
          %2962 = vmatpush1.msra.mxu0 0.0
          %2963 = vmatprep.subr.mxu0 0.0
          %2964 = vmatpush1.msra.mxu0 0.0
          %2965 = vmatprep.subr.mxu0 0.0
          %2966 = vmatpush1.msra.mxu0 0.0
          %2967 = vmatprep.subr.mxu0 0.0
          %2968 = vmatpush1.msra.mxu0 0.0
          %2969 = vmatprep.subr.mxu0 0.0
          %2970 = vmatpush1.msra.mxu0 0.0
          %2971 = vmatprep.subr.mxu0 0.0
          %2972 = vmatpush1.msra.mxu0 0.0
          %2973 = vmatprep.subr.mxu0 0.0
          %2974 = vmatpush1.msra.mxu0 0.0
          %2975 = vmatprep.subr.mxu0 0.0
          %2976 = vmatpush1.msra.mxu0 0.0
          %2977 = vmatprep.subr.mxu0 0.0
          %2978 = vmatpush1.msra.mxu0 0.0
          %2979 = vmatprep.subr.mxu0 0.0
          %2980 = vmatpush1.msra.mxu0 0.0
          %2981 = vmatprep.subr.mxu0 0.0
          %2982 = vmatpush1.msra.mxu0 0.0
          %2983 = vmatprep.subr.mxu0 0.0
          %2984 = vmatpush1.msra.mxu0 0.0
          %2985 = vmatprep.subr.mxu0 0.0
          %2986 = vmatpush1.msra.mxu0 0.0
          %2987 = vmatprep.subr.mxu0 0.0
          %2988 = vmatpush1.msra.mxu0 0.0
          %2989 = vmatprep.subr.mxu0 0.0
          %2990 = vmatpush1.msra.mxu0 0.0
          %2991 = vmatprep.subr.mxu0 0.0
          %2992 = vmatpush1.msra.mxu0 0.0
          %2993 = vmatprep.subr.mxu0 0.0
          %2994 = vmatpush1.msra.mxu0 0.0
          %2995 = vmatprep.subr.mxu0 0.0
          %2996 = vmatpush1.msra.mxu0 0.0
          %2997 = vmatprep.subr.mxu0 0.0
          %2998 = vmatpush1.msra.mxu0 0.0
          %2999 = vmatprep.subr.mxu0 0.0
          %3000 = vmatpush1.msra.mxu0 0.0
          %3001 = vmatprep.subr.mxu0 0.0
          %3002 = vmatpush1.msra.mxu0 0.0
          %3003 = vmatprep.subr.mxu0 0.0
          %3004 = vmatpush1.msra.mxu0 0.0
          %3005 = vmatprep.subr.mxu0 0.0
          %3006 = vmatpush1.msra.mxu0 0.0
          %3007 = vmatprep.subr.mxu0 0.0
          %3008 = vmatpush1.msra.mxu0 0.0
          %3009 = vmatprep.subr.mxu0 0.0
          %3010 = vmatpush1.msra.mxu0 0.0
          %3011 = vmatprep.subr.mxu0 0.0
          %3012 = vmatpush1.msra.mxu0 0.0
          %3013 = vmatprep.subr.mxu0 0.0
          %3014 = vmatpush1.msra.mxu0 0.0
          %3015 = vmatprep.subr.mxu0 0.0
          %3016 = vmatpush1.msra.mxu0 0.0
          %3017 = vmatprep.subr.mxu0 0.0
          %3018 = vmatpush1.msra.mxu0 0.0
          %3019 = vmatprep.subr.mxu0 0.0
          %3020 = vmatpush1.msra.mxu0 0.0
          %3021 = vmatprep.subr.mxu0 0.0
          %3022 = vmatpush1.msra.mxu0 0.0
          %3023 = vmatprep.mubr.f32.mxu0 0.0
          %v3024 = vand.u32 %v2542, 4294901760
          %3025 = vmatmul.mubr.f32.gmra.mrb[0].mxu0 %v3024
          %v3026 = vpop.f32.mrb[0].mxu0
          %v3027 = vadd.f32 %v2949, %v3026
          %v3028 = vpop.f32.mrb[0].mxu0
          %3029 = vmatprep.mubr.f32.mxu0 0.0
          %v3030 = vand.u32 %v2545, 4294901760
          %3031 = vmatmul.mubr.f32.gmra.mrb[0].mxu0 %v3030
          %v3032 = vpop.f32.mrb[0].mxu0
          %v3033 = vadd.f32 %v2955, %v3032
          %v3034 = vpop.f32.mrb[0].mxu0
          %3035 = vdwg.mxu0
          %v3036 = vadd.f32 %v2504, %v3027
          %v3037 = vadd.f32 %v2505, %v3033
          %v3038 = vld [vmem:[%s2 + $0x28] sm:$0xff]
          %v3039 = vsub.f32 %v888, %v912
          %v3040 = vand.u32 2147483647, %v3039
          %3041 = vxpose.xlu0.b32.start [1/16] %v3038, 128
          %3042 = vxpose.xlu0.b32.cont [2/16] 0.0, 128
          %3043 = vxpose.xlu0.b32.cont [3/16] 0.0, 128
          %3044 = vxpose.xlu0.b32.cont [4/16] 0.0, 128
          %3045 = vxpose.xlu0.b32.cont [5/16] 0.0, 128
          %3046 = vxpose.xlu0.b32.cont [6/16] 0.0, 128
          %3047 = vxpose.xlu0.b32.cont [7/16] 0.0, 128
          %3048 = vxpose.xlu0.b32.cont [8/16] 0.0, 128
          %3049 = vxpose.xlu0.b32.cont [9/16] 0.0, 128
          %3050 = vxpose.xlu0.b32.cont [10/16] 0.0, 128
          %3051 = vxpose.xlu0.b32.cont [11/16] 0.0, 128
          %3052 = vxpose.xlu0.b32.cont [12/16] 0.0, 128
          %3053 = vxpose.xlu0.b32.cont [13/16] 0.0, 128
          %3054 = vxpose.xlu0.b32.cont [14/16] 0.0, 128
          %3055 = vxpose.xlu0.b32.cont [15/16] 0.0, 128
          %3056 = vxpose.xlu0.b32.end [16/16] 0.0, 128
          %v3057 = vpop.trf.xlu0
          %v3058 = vpop.trf.xlu0
          %v3059 = vpop.trf.xlu0
          %v3060 = vpop.trf.xlu0
          %v3061 = vpop.trf.xlu0
          %v3062 = vpop.trf.xlu0
          %v3063 = vpop.trf.xlu0
          %v3064 = vpop.trf.xlu0
          %v3065 = vpop.trf.xlu0
          %v3066 = vpop.trf.xlu0
          %v3067 = vpop.trf.xlu0
          %v3068 = vpop.trf.xlu0
          %v3069 = vpop.trf.xlu0
          %v3070 = vpop.trf.xlu0
          %v3071 = vpop.trf.xlu0
          %v3072 = vpop.trf.xlu0
          %v3074 = vsel %vm951, %v3057, 0
          %v3077 = vsel %vm951, %v3058, 0
          %3079 = vmatprep.subr.mxu0 0.0
          %v3080 = vand.u32 %v3040, 4294901760
          %3081 = vmatpush1.msra.mxu0 %v3080
          %3082 = vmatprep.subr.mxu0 0.0
          %3083 = vmatpush1.msra.mxu0 0.0
          %3084 = vmatprep.subr.mxu0 0.0
          %3085 = vmatpush1.msra.mxu0 0.0
          %3086 = vmatprep.subr.mxu0 0.0
          %3087 = vmatpush1.msra.mxu0 0.0
          %3088 = vmatprep.subr.mxu0 0.0
          %3089 = vmatpush1.msra.mxu0 0.0
          %3090 = vmatprep.subr.mxu0 0.0
          %3091 = vmatpush1.msra.mxu0 0.0
          %3092 = vmatprep.subr.mxu0 0.0
          %3093 = vmatpush1.msra.mxu0 0.0
          %3094 = vmatprep.subr.mxu0 0.0
          %3095 = vmatpush1.msra.mxu0 0.0
          %3096 = vmatprep.subr.mxu0 0.0
          %3097 = vmatpush1.msra.mxu0 0.0
          %3098 = vmatprep.subr.mxu0 0.0
          %3099 = vmatpush1.msra.mxu0 0.0
          %3100 = vmatprep.subr.mxu0 0.0
          %3101 = vmatpush1.msra.mxu0 0.0
          %3102 = vmatprep.subr.mxu0 0.0
          %3103 = vmatpush1.msra.mxu0 0.0
          %3104 = vmatprep.subr.mxu0 0.0
          %3105 = vmatpush1.msra.mxu0 0.0
          %3106 = vmatprep.subr.mxu0 0.0
          %3107 = vmatpush1.msra.mxu0 0.0
          %3108 = vmatprep.subr.mxu0 0.0
          %3109 = vmatpush1.msra.mxu0 0.0
          %3110 = vmatprep.subr.mxu0 0.0
          %3111 = vmatpush1.msra.mxu0 0.0
          %3112 = vmatprep.subr.mxu0 0.0
          %3113 = vmatpush1.msra.mxu0 0.0
          %3114 = vmatprep.subr.mxu0 0.0
          %3115 = vmatpush1.msra.mxu0 0.0
          %3116 = vmatprep.subr.mxu0 0.0
          %3117 = vmatpush1.msra.mxu0 0.0
          %3118 = vmatprep.subr.mxu0 0.0
          %3119 = vmatpush1.msra.mxu0 0.0
          %3120 = vmatprep.subr.mxu0 0.0
          %3121 = vmatpush1.msra.mxu0 0.0
          %3122 = vmatprep.subr.mxu0 0.0
          %3123 = vmatpush1.msra.mxu0 0.0
          %3124 = vmatprep.subr.mxu0 0.0
          %3125 = vmatpush1.msra.mxu0 0.0
          %3126 = vmatprep.subr.mxu0 0.0
          %3127 = vmatpush1.msra.mxu0 0.0
          %3128 = vmatprep.subr.mxu0 0.0
          %3129 = vmatpush1.msra.mxu0 0.0
          %3130 = vmatprep.subr.mxu0 0.0
          %3131 = vmatpush1.msra.mxu0 0.0
          %3132 = vmatprep.subr.mxu0 0.0
          %3133 = vmatpush1.msra.mxu0 0.0
          %3134 = vmatprep.subr.mxu0 0.0
          %3135 = vmatpush1.msra.mxu0 0.0
          %3136 = vmatprep.subr.mxu0 0.0
          %3137 = vmatpush1.msra.mxu0 0.0
          %3138 = vmatprep.subr.mxu0 0.0
          %3139 = vmatpush1.msra.mxu0 0.0
          %3140 = vmatprep.subr.mxu0 0.0
          %3141 = vmatpush1.msra.mxu0 0.0
          %3142 = vmatprep.subr.mxu0 0.0
          %3143 = vmatpush1.msra.mxu0 0.0
          %3144 = vmatprep.mubr.f32.mxu0 0.0
          %v3145 = vand.u32 %v3074, 4294901760
          %v3146 = vsub.f32 %v3074, %v3145
          %v3147 = vand.u32 %v3146, 4294901760
          %v3148 = vsub.f32 %v3146, %v3147
          %v3149 = vand.u32 %v3148, 4294901760
          %3150 = vmatmul.mubr.f32.gmra.mrb[0].mxu0 %v3149
          %v3151 = vpop.f32.mrb[0].mxu0
          %v3152 = vadd.f32 0.0, %v3151
          %v3153 = vpop.f32.mrb[0].mxu0
          %3154 = vmatprep.mubr.f32.mxu0 0.0
          %v3155 = vand.u32 %v3077, 4294901760
          %v3156 = vsub.f32 %v3077, %v3155
          %v3157 = vand.u32 %v3156, 4294901760
          %v3158 = vsub.f32 %v3156, %v3157
          %v3159 = vand.u32 %v3158, 4294901760
          %3160 = vmatmul.mubr.f32.gmra.mrb[0].mxu0 %v3159
          %v3161 = vpop.f32.mrb[0].mxu0
          %v3162 = vadd.f32 0.0, %v3161
          %v3163 = vpop.f32.mrb[0].mxu0
          %3164 = vdwg.mxu0
          %3165 = vmatprep.subr.mxu0 0.0
          %v3166 = vand.u32 %v3040, 4294901760
          %v3167 = vsub.f32 %v3040, %v3166
          %v3168 = vand.u32 %v3167, 4294901760
          %v3169 = vsub.f32 %v3167, %v3168
          %v3170 = vand.u32 %v3169, 4294901760
          %3171 = vmatpush1.msra.mxu0 %v3170
          %3172 = vmatprep.subr.mxu0 0.0
          %3173 = vmatpush1.msra.mxu0 0.0
          %3174 = vmatprep.subr.mxu0 0.0
          %3175 = vmatpush1.msra.mxu0 0.0
          %3176 = vmatprep.subr.mxu0 0.0
          %3177 = vmatpush1.msra.mxu0 0.0
          %3178 = vmatprep.subr.mxu0 0.0
          %3179 = vmatpush1.msra.mxu0 0.0
          %3180 = vmatprep.subr.mxu0 0.0
          %3181 = vmatpush1.msra.mxu0 0.0
          %3182 = vmatprep.subr.mxu0 0.0
          %3183 = vmatpush1.msra.mxu0 0.0
          %3184 = vmatprep.subr.mxu0 0.0
          %3185 = vmatpush1.msra.mxu0 0.0
          %3186 = vmatprep.subr.mxu0 0.0
          %3187 = vmatpush1.msra.mxu0 0.0
          %3188 = vmatprep.subr.mxu0 0.0
          %3189 = vmatpush1.msra.mxu0 0.0
          %3190 = vmatprep.subr.mxu0 0.0
          %3191 = vmatpush1.msra.mxu0 0.0
          %3192 = vmatprep.subr.mxu0 0.0
          %3193 = vmatpush1.msra.mxu0 0.0
          %3194 = vmatprep.subr.mxu0 0.0
          %3195 = vmatpush1.msra.mxu0 0.0
          %3196 = vmatprep.subr.mxu0 0.0
          %3197 = vmatpush1.msra.mxu0 0.0
          %3198 = vmatprep.subr.mxu0 0.0
          %3199 = vmatpush1.msra.mxu0 0.0
          %3200 = vmatprep.subr.mxu0 0.0
          %3201 = vmatpush1.msra.mxu0 0.0
          %3202 = vmatprep.subr.mxu0 0.0
          %3203 = vmatpush1.msra.mxu0 0.0
          %3204 = vmatprep.subr.mxu0 0.0
          %3205 = vmatpush1.msra.mxu0 0.0
          %3206 = vmatprep.subr.mxu0 0.0
          %3207 = vmatpush1.msra.mxu0 0.0
          %3208 = vmatprep.subr.mxu0 0.0
          %3209 = vmatpush1.msra.mxu0 0.0
          %3210 = vmatprep.subr.mxu0 0.0
          %3211 = vmatpush1.msra.mxu0 0.0
          %3212 = vmatprep.subr.mxu0 0.0
          %3213 = vmatpush1.msra.mxu0 0.0
          %3214 = vmatprep.subr.mxu0 0.0
          %3215 = vmatpush1.msra.mxu0 0.0
          %3216 = vmatprep.subr.mxu0 0.0
          %3217 = vmatpush1.msra.mxu0 0.0
          %3218 = vmatprep.subr.mxu0 0.0
          %3219 = vmatpush1.msra.mxu0 0.0
          %3220 = vmatprep.subr.mxu0 0.0
          %3221 = vmatpush1.msra.mxu0 0.0
          %3222 = vmatprep.subr.mxu0 0.0
          %3223 = vmatpush1.msra.mxu0 0.0
          %3224 = vmatprep.subr.mxu0 0.0
          %3225 = vmatpush1.msra.mxu0 0.0
          %3226 = vmatprep.subr.mxu0 0.0
          %3227 = vmatpush1.msra.mxu0 0.0
          %3228 = vmatprep.subr.mxu0 0.0
          %3229 = vmatpush1.msra.mxu0 0.0
          %3230 = vmatprep.subr.mxu0 0.0
          %3231 = vmatpush1.msra.mxu0 0.0
          %3232 = vmatprep.subr.mxu0 0.0
          %3233 = vmatpush1.msra.mxu0 0.0
          %3234 = vmatprep.mubr.f32.mxu0 0.0
          %v3235 = vand.u32 %v3074, 4294901760
          %3236 = vmatmul.mubr.f32.gmra.mrb[0].mxu0 %v3235
          %v3237 = vpop.f32.mrb[0].mxu0
          %v3238 = vadd.f32 %v3152, %v3237
          %v3239 = vpop.f32.mrb[0].mxu0
          %3240 = vmatprep.mubr.f32.mxu0 0.0
          %v3241 = vand.u32 %v3077, 4294901760
          %3242 = vmatmul.mubr.f32.gmra.mrb[0].mxu0 %v3241
          %v3243 = vpop.f32.mrb[0].mxu0
          %v3244 = vadd.f32 %v3162, %v3243
          %v3245 = vpop.f32.mrb[0].mxu0
          %3246 = vdwg.mxu0
          %3247 = vmatprep.subr.mxu0 0.0
          %v3248 = vand.u32 %v3040, 4294901760
          %v3249 = vsub.f32 %v3040, %v3248
          %3250 = vmatpush1.msra.mxu0 %v3249
          %3251 = vmatprep.subr.mxu0 0.0
          %3252 = vmatpush1.msra.mxu0 0.0
          %3253 = vmatprep.subr.mxu0 0.0
          %3254 = vmatpush1.msra.mxu0 0.0
          %3255 = vmatprep.subr.mxu0 0.0
          %3256 = vmatpush1.msra.mxu0 0.0
          %3257 = vmatprep.subr.mxu0 0.0
          %3258 = vmatpush1.msra.mxu0 0.0
          %3259 = vmatprep.subr.mxu0 0.0
          %3260 = vmatpush1.msra.mxu0 0.0
          %3261 = vmatprep.subr.mxu0 0.0
          %3262 = vmatpush1.msra.mxu0 0.0
          %3263 = vmatprep.subr.mxu0 0.0
          %3264 = vmatpush1.msra.mxu0 0.0
          %3265 = vmatprep.subr.mxu0 0.0
          %3266 = vmatpush1.msra.mxu0 0.0
          %3267 = vmatprep.subr.mxu0 0.0
          %3268 = vmatpush1.msra.mxu0 0.0
          %3269 = vmatprep.subr.mxu0 0.0
          %3270 = vmatpush1.msra.mxu0 0.0
          %3271 = vmatprep.subr.mxu0 0.0
          %3272 = vmatpush1.msra.mxu0 0.0
          %3273 = vmatprep.subr.mxu0 0.0
          %3274 = vmatpush1.msra.mxu0 0.0
          %3275 = vmatprep.subr.mxu0 0.0
          %3276 = vmatpush1.msra.mxu0 0.0
          %3277 = vmatprep.subr.mxu0 0.0
          %3278 = vmatpush1.msra.mxu0 0.0
          %3279 = vmatprep.subr.mxu0 0.0
          %3280 = vmatpush1.msra.mxu0 0.0
          %3281 = vmatprep.subr.mxu0 0.0
          %3282 = vmatpush1.msra.mxu0 0.0
          %3283 = vmatprep.subr.mxu0 0.0
          %3284 = vmatpush1.msra.mxu0 0.0
          %3285 = vmatprep.subr.mxu0 0.0
          %3286 = vmatpush1.msra.mxu0 0.0
          %3287 = vmatprep.subr.mxu0 0.0
          %3288 = vmatpush1.msra.mxu0 0.0
          %3289 = vmatprep.subr.mxu0 0.0
          %3290 = vmatpush1.msra.mxu0 0.0
          %3291 = vmatprep.subr.mxu0 0.0
          %3292 = vmatpush1.msra.mxu0 0.0
          %3293 = vmatprep.subr.mxu0 0.0
          %3294 = vmatpush1.msra.mxu0 0.0
          %3295 = vmatprep.subr.mxu0 0.0
          %3296 = vmatpush1.msra.mxu0 0.0
          %3297 = vmatprep.subr.mxu0 0.0
          %3298 = vmatpush1.msra.mxu0 0.0
          %3299 = vmatprep.subr.mxu0 0.0
          %3300 = vmatpush1.msra.mxu0 0.0
          %3301 = vmatprep.subr.mxu0 0.0
          %3302 = vmatpush1.msra.mxu0 0.0
          %3303 = vmatprep.subr.mxu0 0.0
          %3304 = vmatpush1.msra.mxu0 0.0
          %3305 = vmatprep.subr.mxu0 0.0
          %3306 = vmatpush1.msra.mxu0 0.0
          %3307 = vmatprep.subr.mxu0 0.0
          %3308 = vmatpush1.msra.mxu0 0.0
          %3309 = vmatprep.subr.mxu0 0.0
          %3310 = vmatpush1.msra.mxu0 0.0
          %3311 = vmatprep.subr.mxu0 0.0
          %3312 = vmatpush1.msra.mxu0 0.0
          %3313 = vmatprep.mubr.f32.mxu0 0.0
          %v3314 = vand.u32 %v3074, 4294901760
          %v3315 = vsub.f32 %v3074, %v3314
          %3316 = vmatmul.mubr.f32.gmra.mrb[0].mxu0 %v3315
          %v3317 = vpop.f32.mrb[0].mxu0
          %v3318 = vadd.f32 %v3238, %v3317
          %v3319 = vpop.f32.mrb[0].mxu0
          %3320 = vmatprep.mubr.f32.mxu0 0.0
          %v3321 = vand.u32 %v3077, 4294901760
          %v3322 = vsub.f32 %v3077, %v3321
          %3323 = vmatmul.mubr.f32.gmra.mrb[0].mxu0 %v3322
          %v3324 = vpop.f32.mrb[0].mxu0
          %v3325 = vadd.f32 %v3244, %v3324
          %v3326 = vpop.f32.mrb[0].mxu0
          %3327 = vdwg.mxu0
          %3328 = vmatprep.subr.mxu0 0.0
          %v3329 = vand.u32 %v3040, 4294901760
          %3330 = vmatpush1.msra.mxu0 %v3329
          %3331 = vmatprep.subr.mxu0 0.0
          %3332 = vmatpush1.msra.mxu0 0.0
          %3333 = vmatprep.subr.mxu0 0.0
          %3334 = vmatpush1.msra.mxu0 0.0
          %3335 = vmatprep.subr.mxu0 0.0
          %3336 = vmatpush1.msra.mxu0 0.0
          %3337 = vmatprep.subr.mxu0 0.0
          %3338 = vmatpush1.msra.mxu0 0.0
          %3339 = vmatprep.subr.mxu0 0.0
          %3340 = vmatpush1.msra.mxu0 0.0
          %3341 = vmatprep.subr.mxu0 0.0
          %3342 = vmatpush1.msra.mxu0 0.0
          %3343 = vmatprep.subr.mxu0 0.0
          %3344 = vmatpush1.msra.mxu0 0.0
          %3345 = vmatprep.subr.mxu0 0.0
          %3346 = vmatpush1.msra.mxu0 0.0
          %3347 = vmatprep.subr.mxu0 0.0
          %3348 = vmatpush1.msra.mxu0 0.0
          %3349 = vmatprep.subr.mxu0 0.0
          %3350 = vmatpush1.msra.mxu0 0.0
          %3351 = vmatprep.subr.mxu0 0.0
          %3352 = vmatpush1.msra.mxu0 0.0
          %3353 = vmatprep.subr.mxu0 0.0
          %3354 = vmatpush1.msra.mxu0 0.0
          %3355 = vmatprep.subr.mxu0 0.0
          %3356 = vmatpush1.msra.mxu0 0.0
          %3357 = vmatprep.subr.mxu0 0.0
          %3358 = vmatpush1.msra.mxu0 0.0
          %3359 = vmatprep.subr.mxu0 0.0
          %3360 = vmatpush1.msra.mxu0 0.0
          %3361 = vmatprep.subr.mxu0 0.0
          %3362 = vmatpush1.msra.mxu0 0.0
          %3363 = vmatprep.subr.mxu0 0.0
          %3364 = vmatpush1.msra.mxu0 0.0
          %3365 = vmatprep.subr.mxu0 0.0
          %3366 = vmatpush1.msra.mxu0 0.0
          %3367 = vmatprep.subr.mxu0 0.0
          %3368 = vmatpush1.msra.mxu0 0.0
          %3369 = vmatprep.subr.mxu0 0.0
          %3370 = vmatpush1.msra.mxu0 0.0
          %3371 = vmatprep.subr.mxu0 0.0
          %3372 = vmatpush1.msra.mxu0 0.0
          %3373 = vmatprep.subr.mxu0 0.0
          %3374 = vmatpush1.msra.mxu0 0.0
          %3375 = vmatprep.subr.mxu0 0.0
          %3376 = vmatpush1.msra.mxu0 0.0
          %3377 = vmatprep.subr.mxu0 0.0
          %3378 = vmatpush1.msra.mxu0 0.0
          %3379 = vmatprep.subr.mxu0 0.0
          %3380 = vmatpush1.msra.mxu0 0.0
          %3381 = vmatprep.subr.mxu0 0.0
          %3382 = vmatpush1.msra.mxu0 0.0
          %3383 = vmatprep.subr.mxu0 0.0
          %3384 = vmatpush1.msra.mxu0 0.0
          %3385 = vmatprep.subr.mxu0 0.0
          %3386 = vmatpush1.msra.mxu0 0.0
          %3387 = vmatprep.subr.mxu0 0.0
          %3388 = vmatpush1.msra.mxu0 0.0
          %3389 = vmatprep.subr.mxu0 0.0
          %3390 = vmatpush1.msra.mxu0 0.0
          %3391 = vmatprep.subr.mxu0 0.0
          %3392 = vmatpush1.msra.mxu0 0.0
          %3393 = vmatprep.mubr.f32.mxu0 0.0
          %v3394 = vand.u32 %v3074, 4294901760
          %v3395 = vsub.f32 %v3074, %v3394
          %v3396 = vand.u32 %v3395, 4294901760
          %3397 = vmatmul.mubr.f32.gmra.mrb[0].mxu0 %v3396
          %v3398 = vpop.f32.mrb[0].mxu0
          %v3399 = vadd.f32 %v3318, %v3398
          %v3400 = vpop.f32.mrb[0].mxu0
          %3401 = vmatprep.mubr.f32.mxu0 0.0
          %v3402 = vand.u32 %v3077, 4294901760
          %v3403 = vsub.f32 %v3077, %v3402
          %v3404 = vand.u32 %v3403, 4294901760
          %3405 = vmatmul.mubr.f32.gmra.mrb[0].mxu0 %v3404
          %v3406 = vpop.f32.mrb[0].mxu0
          %v3407 = vadd.f32 %v3325, %v3406
          %v3408 = vpop.f32.mrb[0].mxu0
          %3409 = vdwg.mxu0
          %3410 = vmatprep.subr.mxu0 0.0
          %v3411 = vand.u32 %v3040, 4294901760
          %v3412 = vsub.f32 %v3040, %v3411
          %v3413 = vand.u32 %v3412, 4294901760
          %3414 = vmatpush1.msra.mxu0 %v3413
          %3415 = vmatprep.subr.mxu0 0.0
          %3416 = vmatpush1.msra.mxu0 0.0
          %3417 = vmatprep.subr.mxu0 0.0
          %3418 = vmatpush1.msra.mxu0 0.0
          %3419 = vmatprep.subr.mxu0 0.0
          %3420 = vmatpush1.msra.mxu0 0.0
          %3421 = vmatprep.subr.mxu0 0.0
          %3422 = vmatpush1.msra.mxu0 0.0
          %3423 = vmatprep.subr.mxu0 0.0
          %3424 = vmatpush1.msra.mxu0 0.0
          %3425 = vmatprep.subr.mxu0 0.0
          %3426 = vmatpush1.msra.mxu0 0.0
          %3427 = vmatprep.subr.mxu0 0.0
          %3428 = vmatpush1.msra.mxu0 0.0
          %3429 = vmatprep.subr.mxu0 0.0
          %3430 = vmatpush1.msra.mxu0 0.0
          %3431 = vmatprep.subr.mxu0 0.0
          %3432 = vmatpush1.msra.mxu0 0.0
          %3433 = vmatprep.subr.mxu0 0.0
          %3434 = vmatpush1.msra.mxu0 0.0
          %3435 = vmatprep.subr.mxu0 0.0
          %3436 = vmatpush1.msra.mxu0 0.0
          %3437 = vmatprep.subr.mxu0 0.0
          %3438 = vmatpush1.msra.mxu0 0.0
          %3439 = vmatprep.subr.mxu0 0.0
          %3440 = vmatpush1.msra.mxu0 0.0
          %3441 = vmatprep.subr.mxu0 0.0
          %3442 = vmatpush1.msra.mxu0 0.0
          %3443 = vmatprep.subr.mxu0 0.0
          %3444 = vmatpush1.msra.mxu0 0.0
          %3445 = vmatprep.subr.mxu0 0.0
          %3446 = vmatpush1.msra.mxu0 0.0
          %3447 = vmatprep.subr.mxu0 0.0
          %3448 = vmatpush1.msra.mxu0 0.0
          %3449 = vmatprep.subr.mxu0 0.0
          %3450 = vmatpush1.msra.mxu0 0.0
          %3451 = vmatprep.subr.mxu0 0.0
          %3452 = vmatpush1.msra.mxu0 0.0
          %3453 = vmatprep.subr.mxu0 0.0
          %3454 = vmatpush1.msra.mxu0 0.0
          %3455 = vmatprep.subr.mxu0 0.0
          %3456 = vmatpush1.msra.mxu0 0.0
          %3457 = vmatprep.subr.mxu0 0.0
          %3458 = vmatpush1.msra.mxu0 0.0
          %3459 = vmatprep.subr.mxu0 0.0
          %3460 = vmatpush1.msra.mxu0 0.0
          %3461 = vmatprep.subr.mxu0 0.0
          %3462 = vmatpush1.msra.mxu0 0.0
          %3463 = vmatprep.subr.mxu0 0.0
          %3464 = vmatpush1.msra.mxu0 0.0
          %3465 = vmatprep.subr.mxu0 0.0
          %3466 = vmatpush1.msra.mxu0 0.0
          %3467 = vmatprep.subr.mxu0 0.0
          %3468 = vmatpush1.msra.mxu0 0.0
          %3469 = vmatprep.subr.mxu0 0.0
          %3470 = vmatpush1.msra.mxu0 0.0
          %3471 = vmatprep.subr.mxu0 0.0
          %3472 = vmatpush1.msra.mxu0 0.0
          %3473 = vmatprep.subr.mxu0 0.0
          %3474 = vmatpush1.msra.mxu0 0.0
          %3475 = vmatprep.subr.mxu0 0.0
          %3476 = vmatpush1.msra.mxu0 0.0
          %3477 = vmatprep.mubr.f32.mxu0 0.0
          %v3478 = vand.u32 %v3074, 4294901760
          %3479 = vmatmul.mubr.f32.gmra.mrb[0].mxu0 %v3478
          %v3480 = vpop.f32.mrb[0].mxu0
          %v3481 = vadd.f32 %v3399, %v3480
          %v3482 = vpop.f32.mrb[0].mxu0
          %3483 = vmatprep.mubr.f32.mxu0 0.0
          %v3484 = vand.u32 %v3077, 4294901760
          %3485 = vmatmul.mubr.f32.gmra.mrb[0].mxu0 %v3484
          %v3486 = vpop.f32.mrb[0].mxu0
          %v3487 = vadd.f32 %v3407, %v3486
          %v3488 = vpop.f32.mrb[0].mxu0
          %3489 = vdwg.mxu0
          %3490 = vmatprep.subr.mxu0 0.0
          %v3491 = vand.u32 %v3040, 4294901760
          %3492 = vmatpush1.msra.mxu0 %v3491
          %3493 = vmatprep.subr.mxu0 0.0
          %3494 = vmatpush1.msra.mxu0 0.0
          %3495 = vmatprep.subr.mxu0 0.0
          %3496 = vmatpush1.msra.mxu0 0.0
          %3497 = vmatprep.subr.mxu0 0.0
          %3498 = vmatpush1.msra.mxu0 0.0
          %3499 = vmatprep.subr.mxu0 0.0
          %3500 = vmatpush1.msra.mxu0 0.0
          %3501 = vmatprep.subr.mxu0 0.0
          %3502 = vmatpush1.msra.mxu0 0.0
          %3503 = vmatprep.subr.mxu0 0.0
          %3504 = vmatpush1.msra.mxu0 0.0
          %3505 = vmatprep.subr.mxu0 0.0
          %3506 = vmatpush1.msra.mxu0 0.0
          %3507 = vmatprep.subr.mxu0 0.0
          %3508 = vmatpush1.msra.mxu0 0.0
          %3509 = vmatprep.subr.mxu0 0.0
          %3510 = vmatpush1.msra.mxu0 0.0
          %3511 = vmatprep.subr.mxu0 0.0
          %3512 = vmatpush1.msra.mxu0 0.0
          %3513 = vmatprep.subr.mxu0 0.0
          %3514 = vmatpush1.msra.mxu0 0.0
          %3515 = vmatprep.subr.mxu0 0.0
          %3516 = vmatpush1.msra.mxu0 0.0
          %3517 = vmatprep.subr.mxu0 0.0
          %3518 = vmatpush1.msra.mxu0 0.0
          %3519 = vmatprep.subr.mxu0 0.0
          %3520 = vmatpush1.msra.mxu0 0.0
          %3521 = vmatprep.subr.mxu0 0.0
          %3522 = vmatpush1.msra.mxu0 0.0
          %3523 = vmatprep.subr.mxu0 0.0
          %3524 = vmatpush1.msra.mxu0 0.0
          %3525 = vmatprep.subr.mxu0 0.0
          %3526 = vmatpush1.msra.mxu0 0.0
          %3527 = vmatprep.subr.mxu0 0.0
          %3528 = vmatpush1.msra.mxu0 0.0
          %3529 = vmatprep.subr.mxu0 0.0
          %3530 = vmatpush1.msra.mxu0 0.0
          %3531 = vmatprep.subr.mxu0 0.0
          %3532 = vmatpush1.msra.mxu0 0.0
          %3533 = vmatprep.subr.mxu0 0.0
          %3534 = vmatpush1.msra.mxu0 0.0
          %3535 = vmatprep.subr.mxu0 0.0
          %3536 = vmatpush1.msra.mxu0 0.0
          %3537 = vmatprep.subr.mxu0 0.0
          %3538 = vmatpush1.msra.mxu0 0.0
          %3539 = vmatprep.subr.mxu0 0.0
          %3540 = vmatpush1.msra.mxu0 0.0
          %3541 = vmatprep.subr.mxu0 0.0
          %3542 = vmatpush1.msra.mxu0 0.0
          %3543 = vmatprep.subr.mxu0 0.0
          %3544 = vmatpush1.msra.mxu0 0.0
          %3545 = vmatprep.subr.mxu0 0.0
          %3546 = vmatpush1.msra.mxu0 0.0
          %3547 = vmatprep.subr.mxu0 0.0
          %3548 = vmatpush1.msra.mxu0 0.0
          %3549 = vmatprep.subr.mxu0 0.0
          %3550 = vmatpush1.msra.mxu0 0.0
          %3551 = vmatprep.subr.mxu0 0.0
          %3552 = vmatpush1.msra.mxu0 0.0
          %3553 = vmatprep.subr.mxu0 0.0
          %3554 = vmatpush1.msra.mxu0 0.0
          %3555 = vmatprep.mubr.f32.mxu0 0.0
          %v3556 = vand.u32 %v3074, 4294901760
          %3557 = vmatmul.mubr.f32.gmra.mrb[0].mxu0 %v3556
          %v3558 = vpop.f32.mrb[0].mxu0
          %v3559 = vadd.f32 %v3481, %v3558
          %v3560 = vpop.f32.mrb[0].mxu0
          %3561 = vmatprep.mubr.f32.mxu0 0.0
          %v3562 = vand.u32 %v3077, 4294901760
          %3563 = vmatmul.mubr.f32.gmra.mrb[0].mxu0 %v3562
          %v3564 = vpop.f32.mrb[0].mxu0
          %v3565 = vadd.f32 %v3487, %v3564
          %v3566 = vpop.f32.mrb[0].mxu0
          %3567 = vdwg.mxu0
          %v3568 = vadd.f32 %v3036, %v3559
          %v3569 = vadd.f32 %v3037, %v3565
          %v3570 = vld [vmem:[%s3] sm:$0xff]
          %v3571 = vld [vmem:[%s3 + $0x8] sm:$0xff]
          %3573 = vset.pattern.permute.xlu0 0
          %3574 = vperm.xlu0 %3573, %v3570
          %v3575 = vpop.permute.xlu0 %3574
          %3578 = vset.pattern.permute.xlu0 0
          %3579 = vperm.xlu0 %3578, %v3571
          %v3580 = vpop.permute.xlu0 %3579
          %v3582 = vadd.f32 %v3568, %v3575
          %v3583 = vadd.f32 %v3569, %v3580
          %s3584 = sld [smem:[#allocation3]]
          %vm3585 = vcmp.gt.f32.partialorder %v3582, 0.0
          %vm3586 = vcmp.gt.f32.partialorder %v3583, 0.0
          %v3587 = vstv %s3584
          %v3588 = vmul.f32 %v3587, %v3582
          %v3589 = vmul.f32 %v3587, %v3583
          %v3590 = vsel %vm3585, %v3582, %v3588
          %v3591 = vsel %vm3586, %v3583, %v3589
          %s3592 = scalar_lea.vmem [#allocation7], %s228
          %3593 = vst [vmem:[%s3592] sm:$0xff] %v3590
          %3594 = vst [vmem:[%s3592 + $0x8] sm:$0xff] %v3591
        $region56: #{tpu_custom_call.1} parent=39 // pred_fallthru
          _
        // Predicated region
        $region57: #{tpu_custom_call.1} parent=39 // pred_check
          %p3595 = pneg %p149
        $region58: #{tpu_custom_call.1} parent=39 // pred_check_branch
          %3597 = sbr.rel (%p3595) target = $region60
        $region59: #{tpu_custom_call.1} parent=39 // pred_region
          %s3599 = ssub.s32 256, 256
          %3600 = vsyncadd [#allocation6], %s3599
          %s3601 = sshll.u32 [#allocation7], 4
          %s3602 = int_to_ptr.vmem [resolvable:$true] %s3601
          %3607 = dma.vmem_to_hbm [thread:$0]  %s3602, 256, %s5, [#allocation6], 128, 128, 8
        $region60: #{tpu_custom_call.1} parent=39 // pred_fallthru
          _
        // Predicated region
        $region61: #{tpu_custom_call.1} parent=39 // pred_check
          %p3608 = pneg %p149
        $region62: #{tpu_custom_call.1} parent=39 // pred_check_branch
          %3610 = sbr.rel (%p3608) target = $region64
        $region63: #{tpu_custom_call.1} parent=39 // pred_region
          %3611 = dma.done [#allocation6], 256
        $region64: #{tpu_custom_call.1} parent=39 // pred_fallthru
          _
      $region40: #{tpu_custom_call.1} parent=5 // pred_fallthru
        _
      %p3612 = scmp.le.s32.totalorder 2, %s14
      // Predicated region
      $region65: #{tpu_custom_call.1} parent=5 // pred_check
        %p3613 = pneg %p3612
      $region66: #{tpu_custom_call.1} parent=5 // pred_check_branch
        %3615 = sbr.rel (%p3613) target = $region68
      $region67: #{tpu_custom_call.1} parent=5 // pred_region
        %s3616 = ssub.s32 %s14, 2
      $region68: #{tpu_custom_call.1} parent=5 // pred_fallthru
        _
    $region6: #{tpu_custom_call.1} parent=1 // loop_footer
      %s18 = sadd.s32 1, %s14
    $region7: #{tpu_custom_call.1} parent=1 // loop_footer_branch
      %13 = sbr.rel target = $region3
    $region8: #{tpu_custom_call.1} parent=1 // loop_exit
      _
    %3617 = vsyncpa [#allocation5], 1
    %s3618 = scalar_lea.sflag [#allocation5], 1
    %3619 = vsyncpa %s3618, 1
    %3620 = vsyncpa [#allocation6], 1
    %s3621 = scalar_lea.sflag [#allocation6], 1
    %3622 = vsyncpa %s3621, 1

</llo_original>
